<compile_context>
chip_gen: v6e
topology: v6e:2x2x1
jax: 0.10.0
libtpu: 0.0.40
codegen_flags: <defaults>
</compile_context>

<pallas_src>
from functools import partial

import jax
import jax.numpy as jnp
from jax.experimental import pallas as pl
from jax.experimental.pallas import tpu as pltpu

LEAKY_SLOPE = 0.01  # nn.LeakyReLU default negative_slope


def _lrelu(x):
    # For 0 < slope < 1, leaky_relu(x) == max(x, slope * x).
    return jnp.maximum(x, LEAKY_SLOPE * x)


def _round_up8(x):
    return ((x + 7) // 8) * 8


def _slab_offsets(emb_size, edge_dim):
    """Static row offsets of each section inside the packed weight slab.

    Every section start is rounded up to a sublane multiple (8) so the static
    slices inside the kernel are always sublane-aligned, regardless of D.
    """
    D = emb_size
    off_sd = 0                                    # vstack(wm_s, wm_d)      2D rows
    off_node = _round_up8(off_sd + 2 * D)         # vstack(wn_h, wn_a, wn_g) 3D rows
    off_glob = _round_up8(off_node + 3 * D)       # vstack(wg_g, wg_p)      2D rows
    off_e = _round_up8(off_glob + 2 * D)          # wm_e                   F_e rows
    off_b = _round_up8(off_e + edge_dim)          # bm, bn, bg               3 rows
    total = _round_up8(off_b + 3)
    return dict(sd=off_sd, node=off_node, glob=off_glob, e=off_e, b=off_b,
                total=total)


def _pack_weight_slab(params, emb_size, edge_dim):
    """Pack all weights/biases into one (total, D) f32 slab (wrapper-side,
    sublane-dim concatenation only — free)."""
    D = emb_size
    offs = _slab_offsets(D, edge_dim)
    slab = jnp.zeros((offs["total"], D), jnp.float32)
    slab = slab.at[offs["sd"]:offs["sd"] + 2 * D].set(
        jnp.concatenate([params["wm_s"], params["wm_d"]], axis=0))
    slab = slab.at[offs["node"]:offs["node"] + 3 * D].set(
        jnp.concatenate([params["wn_h"], params["wn_a"], params["wn_g"]],
                        axis=0))
    slab = slab.at[offs["glob"]:offs["glob"] + 2 * D].set(
        jnp.concatenate([params["wg_g"], params["wg_p"]], axis=0))
    slab = slab.at[offs["e"]:offs["e"] + edge_dim].set(params["wm_e"])
    slab = slab.at[offs["b"] + 0].set(params["bm"][0])
    slab = slab.at[offs["b"] + 1].set(params["bn"][0])
    slab = slab.at[offs["b"] + 2].set(params["bg"][0])
    return slab, offs


def _gnn_kernel(steps, D, edge_dim, offs,
                nf_ref, gf_ref, ef_ref,
                sgat_ref, adst_ref, ppool_ref, pt_ref, invc_ref,
                w_ref,
                node_out_ref, glob_out_ref):
    dot = partial(jnp.dot, preferred_element_type=jnp.float32)

    h = nf_ref[...]                                   # (N, D) f32
    g = gf_ref[...]                                   # (B, D) f32
    e = ef_ref[...]                                   # (E, F_e) f32

    # 0/1 connectivity operators arrive as bf16 (exact); upcast ONCE here.
    s_gat = sgat_ref[...].astype(jnp.float32)         # (2E, N) src||dst gather
    a_dst = adst_ref[...].astype(jnp.float32)         # (N, E)  scatter-sum
    p_t = pt_ref[...].astype(jnp.float32)             # (N, B)  global->node
    # Mean-pool operator: fold the per-graph 1/|graph| divide into the pooling
    # matrix ONCE (loop-hoisted, exact f32 scaling of exact 0/1 entries).
    p_mean = ppool_ref[...].astype(jnp.float32) * invc_ref[...]   # (B, N)

    N = h.shape[0]
    B = g.shape[0]
    E = a_dst.shape[1]

    # Weight slab: static, sublane-aligned slices, loaded once (not per step).
    w_sd = w_ref[offs["sd"]:offs["sd"] + 2 * D, :]       # (2D, D)
    w_node = w_ref[offs["node"]:offs["node"] + 3 * D, :] # (3D, D)
    w_glob = w_ref[offs["glob"]:offs["glob"] + 2 * D, :] # (2D, D)
    w_e = w_ref[offs["e"]:offs["e"] + edge_dim, :]       # (F_e, D)
    biases = w_ref[offs["b"]:offs["b"] + 3, :]           # (3, D)

    # Pre-broadcast biases once (JAX does not CSE broadcast_in_dim).
    bn_b = jnp.broadcast_to(biases[1:2, :], (N, D))
    bg_b = jnp.broadcast_to(biases[2:3, :], (B, D))

    # Loop-invariant edge projection (includes bm): computed ONCE.
    e_proj = dot(e, w_e) + biases[0:1, :]                # (E, D)

    # Fixed, small trip count -> Python unroll (LLO scheduler visibility).
    for _ in range(steps):
        # --- edge / message model (fused: gather stack + stacked weights) ---
        hs = dot(s_gat, h)                               # (2E, D)
        msg_in = jnp.concatenate([hs[:E, :], hs[E:, :]], axis=-1)   # (E, 2D)
        m = _lrelu(dot(msg_in, w_sd) + e_proj)           # (E, D)

        # --- aggregate messages per destination node ---
        agg = dot(a_dst, m)                              # (N, D)

        # --- node update (fused 3-way matmul) ---
        g_node = dot(p_t, g)                             # (N, D)
        node_in = jnp.concatenate([h, agg, g_node], axis=-1)        # (N, 3D)
        h = _lrelu(dot(node_in, w_node) + bn_b)          # (N, D)

        # --- global update (fused 2-way matmul, mean pool of node states) ---
        pooled = dot(p_mean, h)                          # (B, D)
        glob_in = jnp.concatenate([g, pooled], axis=-1)  # (B, 2D)
        g = _lrelu(dot(glob_in, w_glob) + bg_b)          # (B, D)

    node_out_ref[...] = h
    glob_out_ref[...] = g


def init_params(key, emb_size, edge_dim):
    def lin(k, fan_in, fan_out):
        return (jax.random.normal(k, (fan_in, fan_out), jnp.float32)
                / jnp.sqrt(jnp.float32(fan_in)))

    ks = jax.random.split(key, 11)
    D = emb_size
    return dict(
        wm_s=lin(ks[0], D, D), wm_d=lin(ks[1], D, D),
        wm_e=lin(ks[2], edge_dim, D),
        bm=jnp.zeros((1, D), jnp.float32) + 0.01,
        wn_h=lin(ks[3], D, D), wn_a=lin(ks[4], D, D), wn_g=lin(ks[5], D, D),
        bn=jnp.zeros((1, D), jnp.float32) + 0.01,
        wg_g=lin(ks[6], D, D), wg_p=lin(ks[7], D, D),
        bg=jnp.zeros((1, D), jnp.float32) + 0.01,
    )


def gnn_extractor_forward(node_features, global_features, edge_features,
                          edge_indices, batch_ind, params, steps=5):
    N, D = node_features.shape
    B = global_features.shape[0]
    E, edge_dim = edge_features.shape

    src = edge_indices[0]
    dst = edge_indices[1]

    # Dense connectivity operators (glue; plain JAX). 0/1 valued -> exact in
    # bf16, halving DMA bytes / VMEM for the O(E*N) arrays.
    # TODO(synk): if connectivity is static across calls, cache these operators
    # outside the forward (they are pure functions of edge_indices/batch_ind).
    s_src = jax.nn.one_hot(src, N, dtype=jnp.float32)          # (E, N)
    s_dst = jax.nn.one_hot(dst, N, dtype=jnp.float32)          # (E, N)
    s_gat = jnp.concatenate([s_src, s_dst], axis=0).astype(jnp.bfloat16)  # (2E,N)
    a_dst = s_dst.T.astype(jnp.bfloat16)                       # (N, E)
    p = jax.nn.one_hot(batch_ind, B, dtype=jnp.float32).T      # (B, N)
    counts = jnp.maximum(p.sum(axis=1, keepdims=True), 1.0)
    p_pool = p.astype(jnp.bfloat16)                            # (B, N) sum op
    inv_cnt = (1.0 / counts).astype(jnp.float32)               # (B, 1)
    p_t = p.T.astype(jnp.bfloat16)                             # (N, B)

    # All weights / biases in one slab -> one DMA descriptor, one VMEM buffer.
    w_slab, offs = _pack_weight_slab(params, D, edge_dim)

    inputs = (node_features, global_features, edge_features,
              s_gat, a_dst, p_pool, p_t, inv_cnt, w_slab)

    # Everything is tiny; single grid point, full-array blocks resident in VMEM.
    # TODO(synk): for v7x (2 TCs) / large graphs, add a parallel per-graph grid
    # axis and tile the edge dimension (accumulating agg via pl.when).
    in_specs = [pl.BlockSpec(x.shape, lambda i, n=x.ndim: (0,) * n)
                for x in inputs]
    out_specs = (pl.BlockSpec((N, D), lambda i: (0, 0)),
                 pl.BlockSpec((B, D), lambda i: (0, 0)))
    out_shape = (jax.ShapeDtypeStruct((N, D), jnp.float32),
                 jax.ShapeDtypeStruct((B, D), jnp.float32))

    return pl.pallas_call(
        partial(_gnn_kernel, steps, D, edge_dim, offs),
        grid=(1,),
        in_specs=in_specs,
        out_specs=out_specs,
        out_shape=out_shape,
        compiler_params=pltpu.CompilerParams(
            dimension_semantics=("arbitrary",),
            vmem_limit_bytes=32 * 1024 * 1024),
    )(*inputs)


def reference_forward(node_features, global_features, edge_features,
                      edge_indices, batch_ind, params, steps=5):
    """Pure-JAX reference (segment ops) for correctness checking."""
    N = node_features.shape[0]
    B = global_features.shape[0]
    src, dst = edge_indices[0], edge_indices[1]
    h, g = node_features, global_features
    cnt = jnp.maximum(
        jax.ops.segment_sum(jnp.ones((N, 1)), batch_ind, num_segments=B), 1.0)
    for _ in range(steps):
        m = _lrelu(h[src] @ params["wm_s"] + h[dst] @ params["wm_d"] +
                   edge_features @ params["wm_e"] + params["bm"])
        agg = jax.ops.segment_sum(m, dst, num_segments=N)
        h = _lrelu(h @ params["wn_h"] + agg @ params["wn_a"] +
                   g[batch_ind] @ params["wn_g"] + params["bn"])
        pooled = jax.ops.segment_sum(h, batch_ind, num_segments=B) / cnt
        g = _lrelu(g @ params["wg_g"] + pooled @ params["wg_p"] + params["bg"])
    return h, g


if __name__ == "__main__":
    emb_size = 32
    edge_dim = 2
    steps = 5
    N, E, B = 8, 16, 2

    key = jax.random.PRNGKey(0)
    k_nf, k_gf, k_ef, k_e0, k_e1, k_p = jax.random.split(key, 6)

    node_features = jax.random.normal(k_nf, (N, emb_size), jnp.float32)
    global_features = jax.random.normal(k_gf, (B, emb_size), jnp.float32)
    edge_features = jax.random.normal(k_ef, (E, edge_dim), jnp.float32)

    # Two graphs of 4 nodes each; edges stay within their graph.
    src0 = jax.random.randint(k_e0, (E // 2,), 0, 4)
    dst0 = (src0 + 1) % 4
    src1 = jax.random.randint(k_e1, (E // 2,), 4, 8)
    dst1 = 4 + (src1 - 4 + 1) % 4
    edge_indices = jnp.stack([jnp.concatenate([src0, src1]),
                              jnp.concatenate([dst0, dst1])], axis=0)  # (2, E)
    batch_ind = jnp.concatenate([jnp.zeros(4, jnp.int32),
                                 jnp.ones(4, jnp.int32)])              # (N,)

    params = init_params(k_p, emb_size, edge_dim)

    node_out, glob_out = gnn_extractor_forward(
        node_features, global_features, edge_features,
        edge_indices, batch_ind, params, steps=steps)
    jax.block_until_ready((node_out, glob_out))

    ref_node, ref_glob = reference_forward(
        node_features, global_features, edge_features,
        edge_indices, batch_ind, params, steps=steps)

    assert node_out.shape == (N, emb_size) and glob_out.shape == (B, emb_size)
    assert jnp.allclose(node_out, ref_node, atol=1e-4, rtol=1e-4)
    assert jnp.allclose(glob_out, ref_glob, atol=1e-4, rtol=1e-4)

    print("KERNEL_OK")
</pallas_src>

<mosaic_0001>
module attributes {stable_mosaic.version = 11 : i64} {
  func.func @_gnn_kernel(%arg0: i32, %arg1: memref<8x32xf32, #tpu.memory_space<vmem>>, %arg2: memref<2x32xf32, #tpu.memory_space<vmem>>, %arg3: memref<16x2xf32, #tpu.memory_space<vmem>>, %arg4: memref<32x8xbf16, #tpu.memory_space<vmem>>, %arg5: memref<8x16xbf16, #tpu.memory_space<vmem>>, %arg6: memref<2x8xbf16, #tpu.memory_space<vmem>>, %arg7: memref<8x2xbf16, #tpu.memory_space<vmem>>, %arg8: memref<2x1xf32, #tpu.memory_space<vmem>>, %arg9: memref<240x32xf32, #tpu.memory_space<vmem>>, %arg10: memref<8x32xf32, #tpu.memory_space<vmem>>, %arg11: memref<2x32xf32, #tpu.memory_space<vmem>>) attributes {dimension_semantics = [#tpu.dimension_semantics<arbitrary>], iteration_bounds = array<i64: 1>, scalar_prefetch = 0 : i64, scratch_operands = 0 : i64, tpu.core_type = #tpu.core_type<tc>, window_params = [{pipeline_mode = #tpu.pipeline_mode<synchronous>, transform_indices = @transform_0, window_bounds = array<i64: 8, 32>}, {pipeline_mode = #tpu.pipeline_mode<synchronous>, transform_indices = @transform_1, window_bounds = array<i64: 2, 32>}, {pipeline_mode = #tpu.pipeline_mode<synchronous>, transform_indices = @transform_2, window_bounds = array<i64: 16, 2>}, {pipeline_mode = #tpu.pipeline_mode<synchronous>, transform_indices = @transform_3, window_bounds = array<i64: 32, 8>}, {pipeline_mode = #tpu.pipeline_mode<synchronous>, transform_indices = @transform_4, window_bounds = array<i64: 8, 16>}, {pipeline_mode = #tpu.pipeline_mode<synchronous>, transform_indices = @transform_5, window_bounds = array<i64: 2, 8>}, {pipeline_mode = #tpu.pipeline_mode<synchronous>, transform_indices = @transform_6, window_bounds = array<i64: 8, 2>}, {pipeline_mode = #tpu.pipeline_mode<synchronous>, transform_indices = @transform_7, window_bounds = array<i64: 2, 1>}, {pipeline_mode = #tpu.pipeline_mode<synchronous>, transform_indices = @transform_8, window_bounds = array<i64: 240, 32>}, {pipeline_mode = #tpu.pipeline_mode<synchronous>, transform_indices = @transform_9, window_bounds = array<i64: 8, 32>}, {pipeline_mode = #tpu.pipeline_mode<synchronous>, transform_indices = @transform_10, window_bounds = array<i64: 2, 32>}]} {
    %c0 = arith.constant 0 : index
    %c0_0 = arith.constant 0 : index
    %0 = vector.load %arg1[%c0, %c0_0] : memref<8x32xf32, #tpu.memory_space<vmem>>, vector<8x32xf32>
    %c0_1 = arith.constant 0 : index
    %c0_2 = arith.constant 0 : index
    %1 = vector.load %arg2[%c0_1, %c0_2] : memref<2x32xf32, #tpu.memory_space<vmem>>, vector<2x32xf32>
    %c0_3 = arith.constant 0 : index
    %c0_4 = arith.constant 0 : index
    %2 = vector.load %arg3[%c0_3, %c0_4] : memref<16x2xf32, #tpu.memory_space<vmem>>, vector<16x2xf32>
    %c0_5 = arith.constant 0 : index
    %c0_6 = arith.constant 0 : index
    %3 = vector.load %arg4[%c0_5, %c0_6] : memref<32x8xbf16, #tpu.memory_space<vmem>>, vector<32x8xbf16>
    %4 = arith.extf %3 : vector<32x8xbf16> to vector<32x8xf32>
    %c0_7 = arith.constant 0 : index
    %c0_8 = arith.constant 0 : index
    %5 = vector.load %arg5[%c0_7, %c0_8] : memref<8x16xbf16, #tpu.memory_space<vmem>>, vector<8x16xbf16>
    %6 = arith.extf %5 : vector<8x16xbf16> to vector<8x16xf32>
    %c0_9 = arith.constant 0 : index
    %c0_10 = arith.constant 0 : index
    %7 = vector.load %arg7[%c0_9, %c0_10] : memref<8x2xbf16, #tpu.memory_space<vmem>>, vector<8x2xbf16>
    %8 = arith.extf %7 : vector<8x2xbf16> to vector<8x2xf32>
    %c0_11 = arith.constant 0 : index
    %c0_12 = arith.constant 0 : index
    %9 = vector.load %arg6[%c0_11, %c0_12] : memref<2x8xbf16, #tpu.memory_space<vmem>>, vector<2x8xbf16>
    %10 = arith.extf %9 : vector<2x8xbf16> to vector<2x8xf32>
    %c0_13 = arith.constant 0 : index
    %c0_14 = arith.constant 0 : index
    %11 = vector.load %arg8[%c0_13, %c0_14] : memref<2x1xf32, #tpu.memory_space<vmem>>, vector<2x1xf32>
    %12 = vector.broadcast %11 : vector<2x1xf32> to vector<2x8xf32>
    %13 = arith.mulf %10, %12 : vector<2x8xf32>
    %c0_15 = arith.constant 0 : index
    %c0_16 = arith.constant 0 : index
    %14 = vector.load %arg9[%c0_15, %c0_16] : memref<240x32xf32, #tpu.memory_space<vmem>>, vector<64x32xf32>
    %c64 = arith.constant 64 : index
    %c0_17 = arith.constant 0 : index
    %15 = vector.load %arg9[%c64, %c0_17] : memref<240x32xf32, #tpu.memory_space<vmem>>, vector<96x32xf32>
    %c160 = arith.constant 160 : index
    %c0_18 = arith.constant 0 : index
    %16 = vector.load %arg9[%c160, %c0_18] : memref<240x32xf32, #tpu.memory_space<vmem>>, vector<64x32xf32>
    %c224 = arith.constant 224 : index
    %c0_19 = arith.constant 0 : index
    %17 = vector.load %arg9[%c224, %c0_19] : memref<240x32xf32, #tpu.memory_space<vmem>>, vector<2x32xf32>
    %c232 = arith.constant 232 : index
    %c0_20 = arith.constant 0 : index
    %18 = vector.load %arg9[%c232, %c0_20] : memref<240x32xf32, #tpu.memory_space<vmem>>, vector<3x32xf32>
    %19 = vector.extract_strided_slice %18 {offsets = [1, 0], sizes = [1, 32], strides = [1, 1]} : vector<3x32xf32> to vector<1x32xf32>
    %20 = vector.shape_cast %19 : vector<1x32xf32> to vector<1x32xf32>
    %21 = vector.broadcast %20 : vector<1x32xf32> to vector<8x32xf32>
    %22 = vector.extract_strided_slice %18 {offsets = [2, 0], sizes = [1, 32], strides = [1, 1]} : vector<3x32xf32> to vector<1x32xf32>
    %23 = vector.shape_cast %22 : vector<1x32xf32> to vector<1x32xf32>
    %24 = vector.broadcast %23 : vector<1x32xf32> to vector<2x32xf32>
    %cst = arith.constant dense<0.000000e+00> : vector<16x32xf32>
    %25 = tpu.matmul %2, %17, %cst {dimension_numbers = #tpu.dot_dimension_numbers<[1], [0], [0], [1], [0, 0, 1, 1], [], []>} : vector<16x2xf32>, vector<2x32xf32>, vector<16x32xf32> -> vector<16x32xf32>
    %26 = vector.extract_strided_slice %18 {offsets = [0, 0], sizes = [1, 32], strides = [1, 1]} : vector<3x32xf32> to vector<1x32xf32>
    %27 = vector.broadcast %26 : vector<1x32xf32> to vector<16x32xf32>
    %28 = arith.addf %25, %27 : vector<16x32xf32>
    %cst_21 = arith.constant dense<0.000000e+00> : vector<32x32xf32>
    %29 = tpu.matmul %4, %0, %cst_21 {dimension_numbers = #tpu.dot_dimension_numbers<[1], [0], [0], [1], [0, 0, 1, 1], [], []>} : vector<32x8xf32>, vector<8x32xf32>, vector<32x32xf32> -> vector<32x32xf32>
    %30 = vector.extract_strided_slice %29 {offsets = [0, 0], sizes = [16, 32], strides = [1, 1]} : vector<32x32xf32> to vector<16x32xf32>
    %31 = vector.extract_strided_slice %29 {offsets = [16, 0], sizes = [16, 32], strides = [1, 1]} : vector<32x32xf32> to vector<16x32xf32>
    %32 = tpu.concatenate %30, %31 in 1 : vector<16x32xf32>, vector<16x32xf32> -> vector<16x64xf32>
    %cst_22 = arith.constant dense<0.000000e+00> : vector<16x32xf32>
    %33 = tpu.matmul %32, %14, %cst_22 {dimension_numbers = #tpu.dot_dimension_numbers<[1], [0], [0], [1], [0, 0, 1, 1], [], []>} : vector<16x64xf32>, vector<64x32xf32>, vector<16x32xf32> -> vector<16x32xf32>
    %34 = arith.addf %33, %28 : vector<16x32xf32>
    %cst_23 = arith.constant 0.00999999977 : f32
    %35 = vector.broadcast %cst_23 : f32 to vector<16x32xf32>
    %36 = arith.mulf %35, %34 : vector<16x32xf32>
    %37 = arith.maximumf %34, %36 : vector<16x32xf32>
    %cst_24 = arith.constant dense<0.000000e+00> : vector<8x32xf32>
    %38 = tpu.matmul %6, %37, %cst_24 {dimension_numbers = #tpu.dot_dimension_numbers<[1], [0], [0], [1], [0, 0, 1, 1], [], []>} : vector<8x16xf32>, vector<16x32xf32>, vector<8x32xf32> -> vector<8x32xf32>
    %cst_25 = arith.constant dense<0.000000e+00> : vector<8x32xf32>
    %39 = tpu.matmul %8, %1, %cst_25 {dimension_numbers = #tpu.dot_dimension_numbers<[1], [0], [0], [1], [0, 0, 1, 1], [], []>} : vector<8x2xf32>, vector<2x32xf32>, vector<8x32xf32> -> vector<8x32xf32>
    %40 = tpu.concatenate %0, %38, %39 in 1 : vector<8x32xf32>, vector<8x32xf32>, vector<8x32xf32> -> vector<8x96xf32>
    %cst_26 = arith.constant dense<0.000000e+00> : vector<8x32xf32>
    %41 = tpu.matmul %40, %15, %cst_26 {dimension_numbers = #tpu.dot_dimension_numbers<[1], [0], [0], [1], [0, 0, 1, 1], [], []>} : vector<8x96xf32>, vector<96x32xf32>, vector<8x32xf32> -> vector<8x32xf32>
    %42 = arith.addf %41, %21 : vector<8x32xf32>
    %cst_27 = arith.constant 0.00999999977 : f32
    %43 = vector.broadcast %cst_27 : f32 to vector<8x32xf32>
    %44 = arith.mulf %43, %42 : vector<8x32xf32>
    %45 = arith.maximumf %42, %44 : vector<8x32xf32>
    %cst_28 = arith.constant dense<0.000000e+00> : vector<2x32xf32>
    %46 = tpu.matmul %13, %45, %cst_28 {dimension_numbers = #tpu.dot_dimension_numbers<[1], [0], [0], [1], [0, 0, 1, 1], [], []>} : vector<2x8xf32>, vector<8x32xf32>, vector<2x32xf32> -> vector<2x32xf32>
    %47 = tpu.concatenate %1, %46 in 1 : vector<2x32xf32>, vector<2x32xf32> -> vector<2x64xf32>
    %cst_29 = arith.constant dense<0.000000e+00> : vector<2x32xf32>
    %48 = tpu.matmul %47, %16, %cst_29 {dimension_numbers = #tpu.dot_dimension_numbers<[1], [0], [0], [1], [0, 0, 1, 1], [], []>} : vector<2x64xf32>, vector<64x32xf32>, vector<2x32xf32> -> vector<2x32xf32>
    %49 = arith.addf %48, %24 : vector<2x32xf32>
    %cst_30 = arith.constant 0.00999999977 : f32
    %50 = vector.broadcast %cst_30 : f32 to vector<2x32xf32>
    %51 = arith.mulf %50, %49 : vector<2x32xf32>
    %52 = arith.maximumf %49, %51 : vector<2x32xf32>
    %cst_31 = arith.constant dense<0.000000e+00> : vector<32x32xf32>
    %53 = tpu.matmul %4, %45, %cst_31 {dimension_numbers = #tpu.dot_dimension_numbers<[1], [0], [0], [1], [0, 0, 1, 1], [], []>} : vector<32x8xf32>, vector<8x32xf32>, vector<32x32xf32> -> vector<32x32xf32>
    %54 = vector.extract_strided_slice %53 {offsets = [0, 0], sizes = [16, 32], strides = [1, 1]} : vector<32x32xf32> to vector<16x32xf32>
    %55 = vector.extract_strided_slice %53 {offsets = [16, 0], sizes = [16, 32], strides = [1, 1]} : vector<32x32xf32> to vector<16x32xf32>
    %56 = tpu.concatenate %54, %55 in 1 : vector<16x32xf32>, vector<16x32xf32> -> vector<16x64xf32>
    %cst_32 = arith.constant dense<0.000000e+00> : vector<16x32xf32>
    %57 = tpu.matmul %56, %14, %cst_32 {dimension_numbers = #tpu.dot_dimension_numbers<[1], [0], [0], [1], [0, 0, 1, 1], [], []>} : vector<16x64xf32>, vector<64x32xf32>, vector<16x32xf32> -> vector<16x32xf32>
    %58 = arith.addf %57, %28 : vector<16x32xf32>
    %cst_33 = arith.constant 0.00999999977 : f32
    %59 = vector.broadcast %cst_33 : f32 to vector<16x32xf32>
    %60 = arith.mulf %59, %58 : vector<16x32xf32>
    %61 = arith.maximumf %58, %60 : vector<16x32xf32>
    %cst_34 = arith.constant dense<0.000000e+00> : vector<8x32xf32>
    %62 = tpu.matmul %6, %61, %cst_34 {dimension_numbers = #tpu.dot_dimension_numbers<[1], [0], [0], [1], [0, 0, 1, 1], [], []>} : vector<8x16xf32>, vector<16x32xf32>, vector<8x32xf32> -> vector<8x32xf32>
    %cst_35 = arith.constant dense<0.000000e+00> : vector<8x32xf32>
    %63 = tpu.matmul %8, %52, %cst_35 {dimension_numbers = #tpu.dot_dimension_numbers<[1], [0], [0], [1], [0, 0, 1, 1], [], []>} : vector<8x2xf32>, vector<2x32xf32>, vector<8x32xf32> -> vector<8x32xf32>
    %64 = tpu.concatenate %45, %62, %63 in 1 : vector<8x32xf32>, vector<8x32xf32>, vector<8x32xf32> -> vector<8x96xf32>
    %cst_36 = arith.constant dense<0.000000e+00> : vector<8x32xf32>
    %65 = tpu.matmul %64, %15, %cst_36 {dimension_numbers = #tpu.dot_dimension_numbers<[1], [0], [0], [1], [0, 0, 1, 1], [], []>} : vector<8x96xf32>, vector<96x32xf32>, vector<8x32xf32> -> vector<8x32xf32>
    %66 = arith.addf %65, %21 : vector<8x32xf32>
    %cst_37 = arith.constant 0.00999999977 : f32
    %67 = vector.broadcast %cst_37 : f32 to vector<8x32xf32>
    %68 = arith.mulf %67, %66 : vector<8x32xf32>
    %69 = arith.maximumf %66, %68 : vector<8x32xf32>
    %cst_38 = arith.constant dense<0.000000e+00> : vector<2x32xf32>
    %70 = tpu.matmul %13, %69, %cst_38 {dimension_numbers = #tpu.dot_dimension_numbers<[1], [0], [0], [1], [0, 0, 1, 1], [], []>} : vector<2x8xf32>, vector<8x32xf32>, vector<2x32xf32> -> vector<2x32xf32>
    %71 = tpu.concatenate %52, %70 in 1 : vector<2x32xf32>, vector<2x32xf32> -> vector<2x64xf32>
    %cst_39 = arith.constant dense<0.000000e+00> : vector<2x32xf32>
    %72 = tpu.matmul %71, %16, %cst_39 {dimension_numbers = #tpu.dot_dimension_numbers<[1], [0], [0], [1], [0, 0, 1, 1], [], []>} : vector<2x64xf32>, vector<64x32xf32>, vector<2x32xf32> -> vector<2x32xf32>
    %73 = arith.addf %72, %24 : vector<2x32xf32>
    %cst_40 = arith.constant 0.00999999977 : f32
    %74 = vector.broadcast %cst_40 : f32 to vector<2x32xf32>
    %75 = arith.mulf %74, %73 : vector<2x32xf32>
    %76 = arith.maximumf %73, %75 : vector<2x32xf32>
    %cst_41 = arith.constant dense<0.000000e+00> : vector<32x32xf32>
    %77 = tpu.matmul %4, %69, %cst_41 {dimension_numbers = #tpu.dot_dimension_numbers<[1], [0], [0], [1], [0, 0, 1, 1], [], []>} : vector<32x8xf32>, vector<8x32xf32>, vector<32x32xf32> -> vector<32x32xf32>
    %78 = vector.extract_strided_slice %77 {offsets = [0, 0], sizes = [16, 32], strides = [1, 1]} : vector<32x32xf32> to vector<16x32xf32>
    %79 = vector.extract_strided_slice %77 {offsets = [16, 0], sizes = [16, 32], strides = [1, 1]} : vector<32x32xf32> to vector<16x32xf32>
    %80 = tpu.concatenate %78, %79 in 1 : vector<16x32xf32>, vector<16x32xf32> -> vector<16x64xf32>
    %cst_42 = arith.constant dense<0.000000e+00> : vector<16x32xf32>
    %81 = tpu.matmul %80, %14, %cst_42 {dimension_numbers = #tpu.dot_dimension_numbers<[1], [0], [0], [1], [0, 0, 1, 1], [], []>} : vector<16x64xf32>, vector<64x32xf32>, vector<16x32xf32> -> vector<16x32xf32>
    %82 = arith.addf %81, %28 : vector<16x32xf32>
    %cst_43 = arith.constant 0.00999999977 : f32
    %83 = vector.broadcast %cst_43 : f32 to vector<16x32xf32>
    %84 = arith.mulf %83, %82 : vector<16x32xf32>
    %85 = arith.maximumf %82, %84 : vector<16x32xf32>
    %cst_44 = arith.constant dense<0.000000e+00> : vector<8x32xf32>
    %86 = tpu.matmul %6, %85, %cst_44 {dimension_numbers = #tpu.dot_dimension_numbers<[1], [0], [0], [1], [0, 0, 1, 1], [], []>} : vector<8x16xf32>, vector<16x32xf32>, vector<8x32xf32> -> vector<8x32xf32>
    %cst_45 = arith.constant dense<0.000000e+00> : vector<8x32xf32>
    %87 = tpu.matmul %8, %76, %cst_45 {dimension_numbers = #tpu.dot_dimension_numbers<[1], [0], [0], [1], [0, 0, 1, 1], [], []>} : vector<8x2xf32>, vector<2x32xf32>, vector<8x32xf32> -> vector<8x32xf32>
    %88 = tpu.concatenate %69, %86, %87 in 1 : vector<8x32xf32>, vector<8x32xf32>, vector<8x32xf32> -> vector<8x96xf32>
    %cst_46 = arith.constant dense<0.000000e+00> : vector<8x32xf32>
    %89 = tpu.matmul %88, %15, %cst_46 {dimension_numbers = #tpu.dot_dimension_numbers<[1], [0], [0], [1], [0, 0, 1, 1], [], []>} : vector<8x96xf32>, vector<96x32xf32>, vector<8x32xf32> -> vector<8x32xf32>
    %90 = arith.addf %89, %21 : vector<8x32xf32>
    %cst_47 = arith.constant 0.00999999977 : f32
    %91 = vector.broadcast %cst_47 : f32 to vector<8x32xf32>
    %92 = arith.mulf %91, %90 : vector<8x32xf32>
    %93 = arith.maximumf %90, %92 : vector<8x32xf32>
    %cst_48 = arith.constant dense<0.000000e+00> : vector<2x32xf32>
    %94 = tpu.matmul %13, %93, %cst_48 {dimension_numbers = #tpu.dot_dimension_numbers<[1], [0], [0], [1], [0, 0, 1, 1], [], []>} : vector<2x8xf32>, vector<8x32xf32>, vector<2x32xf32> -> vector<2x32xf32>
    %95 = tpu.concatenate %76, %94 in 1 : vector<2x32xf32>, vector<2x32xf32> -> vector<2x64xf32>
    %cst_49 = arith.constant dense<0.000000e+00> : vector<2x32xf32>
    %96 = tpu.matmul %95, %16, %cst_49 {dimension_numbers = #tpu.dot_dimension_numbers<[1], [0], [0], [1], [0, 0, 1, 1], [], []>} : vector<2x64xf32>, vector<64x32xf32>, vector<2x32xf32> -> vector<2x32xf32>
    %97 = arith.addf %96, %24 : vector<2x32xf32>
    %cst_50 = arith.constant 0.00999999977 : f32
    %98 = vector.broadcast %cst_50 : f32 to vector<2x32xf32>
    %99 = arith.mulf %98, %97 : vector<2x32xf32>
    %100 = arith.maximumf %97, %99 : vector<2x32xf32>
    %cst_51 = arith.constant dense<0.000000e+00> : vector<32x32xf32>
    %101 = tpu.matmul %4, %93, %cst_51 {dimension_numbers = #tpu.dot_dimension_numbers<[1], [0], [0], [1], [0, 0, 1, 1], [], []>} : vector<32x8xf32>, vector<8x32xf32>, vector<32x32xf32> -> vector<32x32xf32>
    %102 = vector.extract_strided_slice %101 {offsets = [0, 0], sizes = [16, 32], strides = [1, 1]} : vector<32x32xf32> to vector<16x32xf32>
    %103 = vector.extract_strided_slice %101 {offsets = [16, 0], sizes = [16, 32], strides = [1, 1]} : vector<32x32xf32> to vector<16x32xf32>
    %104 = tpu.concatenate %102, %103 in 1 : vector<16x32xf32>, vector<16x32xf32> -> vector<16x64xf32>
    %cst_52 = arith.constant dense<0.000000e+00> : vector<16x32xf32>
    %105 = tpu.matmul %104, %14, %cst_52 {dimension_numbers = #tpu.dot_dimension_numbers<[1], [0], [0], [1], [0, 0, 1, 1], [], []>} : vector<16x64xf32>, vector<64x32xf32>, vector<16x32xf32> -> vector<16x32xf32>
    %106 = arith.addf %105, %28 : vector<16x32xf32>
    %cst_53 = arith.constant 0.00999999977 : f32
    %107 = vector.broadcast %cst_53 : f32 to vector<16x32xf32>
    %108 = arith.mulf %107, %106 : vector<16x32xf32>
    %109 = arith.maximumf %106, %108 : vector<16x32xf32>
    %cst_54 = arith.constant dense<0.000000e+00> : vector<8x32xf32>
    %110 = tpu.matmul %6, %109, %cst_54 {dimension_numbers = #tpu.dot_dimension_numbers<[1], [0], [0], [1], [0, 0, 1, 1], [], []>} : vector<8x16xf32>, vector<16x32xf32>, vector<8x32xf32> -> vector<8x32xf32>
    %cst_55 = arith.constant dense<0.000000e+00> : vector<8x32xf32>
    %111 = tpu.matmul %8, %100, %cst_55 {dimension_numbers = #tpu.dot_dimension_numbers<[1], [0], [0], [1], [0, 0, 1, 1], [], []>} : vector<8x2xf32>, vector<2x32xf32>, vector<8x32xf32> -> vector<8x32xf32>
    %112 = tpu.concatenate %93, %110, %111 in 1 : vector<8x32xf32>, vector<8x32xf32>, vector<8x32xf32> -> vector<8x96xf32>
    %cst_56 = arith.constant dense<0.000000e+00> : vector<8x32xf32>
    %113 = tpu.matmul %112, %15, %cst_56 {dimension_numbers = #tpu.dot_dimension_numbers<[1], [0], [0], [1], [0, 0, 1, 1], [], []>} : vector<8x96xf32>, vector<96x32xf32>, vector<8x32xf32> -> vector<8x32xf32>
    %114 = arith.addf %113, %21 : vector<8x32xf32>
    %cst_57 = arith.constant 0.00999999977 : f32
    %115 = vector.broadcast %cst_57 : f32 to vector<8x32xf32>
    %116 = arith.mulf %115, %114 : vector<8x32xf32>
    %117 = arith.maximumf %114, %116 : vector<8x32xf32>
    %cst_58 = arith.constant dense<0.000000e+00> : vector<2x32xf32>
    %118 = tpu.matmul %13, %117, %cst_58 {dimension_numbers = #tpu.dot_dimension_numbers<[1], [0], [0], [1], [0, 0, 1, 1], [], []>} : vector<2x8xf32>, vector<8x32xf32>, vector<2x32xf32> -> vector<2x32xf32>
    %119 = tpu.concatenate %100, %118 in 1 : vector<2x32xf32>, vector<2x32xf32> -> vector<2x64xf32>
    %cst_59 = arith.constant dense<0.000000e+00> : vector<2x32xf32>
    %120 = tpu.matmul %119, %16, %cst_59 {dimension_numbers = #tpu.dot_dimension_numbers<[1], [0], [0], [1], [0, 0, 1, 1], [], []>} : vector<2x64xf32>, vector<64x32xf32>, vector<2x32xf32> -> vector<2x32xf32>
    %121 = arith.addf %120, %24 : vector<2x32xf32>
    %cst_60 = arith.constant 0.00999999977 : f32
    %122 = vector.broadcast %cst_60 : f32 to vector<2x32xf32>
    %123 = arith.mulf %122, %121 : vector<2x32xf32>
    %124 = arith.maximumf %121, %123 : vector<2x32xf32>
    %cst_61 = arith.constant dense<0.000000e+00> : vector<32x32xf32>
    %125 = tpu.matmul %4, %117, %cst_61 {dimension_numbers = #tpu.dot_dimension_numbers<[1], [0], [0], [1], [0, 0, 1, 1], [], []>} : vector<32x8xf32>, vector<8x32xf32>, vector<32x32xf32> -> vector<32x32xf32>
    %126 = vector.extract_strided_slice %125 {offsets = [0, 0], sizes = [16, 32], strides = [1, 1]} : vector<32x32xf32> to vector<16x32xf32>
    %127 = vector.extract_strided_slice %125 {offsets = [16, 0], sizes = [16, 32], strides = [1, 1]} : vector<32x32xf32> to vector<16x32xf32>
    %128 = tpu.concatenate %126, %127 in 1 : vector<16x32xf32>, vector<16x32xf32> -> vector<16x64xf32>
    %cst_62 = arith.constant dense<0.000000e+00> : vector<16x32xf32>
    %129 = tpu.matmul %128, %14, %cst_62 {dimension_numbers = #tpu.dot_dimension_numbers<[1], [0], [0], [1], [0, 0, 1, 1], [], []>} : vector<16x64xf32>, vector<64x32xf32>, vector<16x32xf32> -> vector<16x32xf32>
    %130 = arith.addf %129, %28 : vector<16x32xf32>
    %cst_63 = arith.constant 0.00999999977 : f32
    %131 = vector.broadcast %cst_63 : f32 to vector<16x32xf32>
    %132 = arith.mulf %131, %130 : vector<16x32xf32>
    %133 = arith.maximumf %130, %132 : vector<16x32xf32>
    %cst_64 = arith.constant dense<0.000000e+00> : vector<8x32xf32>
    %134 = tpu.matmul %6, %133, %cst_64 {dimension_numbers = #tpu.dot_dimension_numbers<[1], [0], [0], [1], [0, 0, 1, 1], [], []>} : vector<8x16xf32>, vector<16x32xf32>, vector<8x32xf32> -> vector<8x32xf32>
    %cst_65 = arith.constant dense<0.000000e+00> : vector<8x32xf32>
    %135 = tpu.matmul %8, %124, %cst_65 {dimension_numbers = #tpu.dot_dimension_numbers<[1], [0], [0], [1], [0, 0, 1, 1], [], []>} : vector<8x2xf32>, vector<2x32xf32>, vector<8x32xf32> -> vector<8x32xf32>
    %136 = tpu.concatenate %117, %134, %135 in 1 : vector<8x32xf32>, vector<8x32xf32>, vector<8x32xf32> -> vector<8x96xf32>
    %cst_66 = arith.constant dense<0.000000e+00> : vector<8x32xf32>
    %137 = tpu.matmul %136, %15, %cst_66 {dimension_numbers = #tpu.dot_dimension_numbers<[1], [0], [0], [1], [0, 0, 1, 1], [], []>} : vector<8x96xf32>, vector<96x32xf32>, vector<8x32xf32> -> vector<8x32xf32>
    %138 = arith.addf %137, %21 : vector<8x32xf32>
    %cst_67 = arith.constant 0.00999999977 : f32
    %139 = vector.broadcast %cst_67 : f32 to vector<8x32xf32>
    %140 = arith.mulf %139, %138 : vector<8x32xf32>
    %141 = arith.maximumf %138, %140 : vector<8x32xf32>
    %cst_68 = arith.constant dense<0.000000e+00> : vector<2x32xf32>
    %142 = tpu.matmul %13, %141, %cst_68 {dimension_numbers = #tpu.dot_dimension_numbers<[1], [0], [0], [1], [0, 0, 1, 1], [], []>} : vector<2x8xf32>, vector<8x32xf32>, vector<2x32xf32> -> vector<2x32xf32>
    %143 = tpu.concatenate %124, %142 in 1 : vector<2x32xf32>, vector<2x32xf32> -> vector<2x64xf32>
    %cst_69 = arith.constant dense<0.000000e+00> : vector<2x32xf32>
    %144 = tpu.matmul %143, %16, %cst_69 {dimension_numbers = #tpu.dot_dimension_numbers<[1], [0], [0], [1], [0, 0, 1, 1], [], []>} : vector<2x64xf32>, vector<64x32xf32>, vector<2x32xf32> -> vector<2x32xf32>
    %145 = arith.addf %144, %24 : vector<2x32xf32>
    %cst_70 = arith.constant 0.00999999977 : f32
    %146 = vector.broadcast %cst_70 : f32 to vector<2x32xf32>
    %147 = arith.mulf %146, %145 : vector<2x32xf32>
    %148 = arith.maximumf %145, %147 : vector<2x32xf32>
    %c0_71 = arith.constant 0 : index
    %c0_72 = arith.constant 0 : index
    %149 = vector.load %arg10[%c0_71, %c0_72] : memref<8x32xf32, #tpu.memory_space<vmem>>, vector<8x32xf32>
    tpu.vector_store %arg10[%c0_71, %c0_72], %141 {strides = array<i32>} : memref<8x32xf32, #tpu.memory_space<vmem>>, vector<8x32xf32>,
    %c0_73 = arith.constant 0 : index
    %c0_74 = arith.constant 0 : index
    %150 = vector.load %arg11[%c0_73, %c0_74] : memref<2x32xf32, #tpu.memory_space<vmem>>, vector<2x32xf32>
    tpu.vector_store %arg11[%c0_73, %c0_74], %148 {strides = array<i32>} : memref<2x32xf32, #tpu.memory_space<vmem>>, vector<2x32xf32>,
    return
  }
  func.func @transform_0(%arg0: i32) -> (i32, i32) {
    %c0_i32 = arith.constant 0 : i32
    %c0_i32_0 = arith.constant 0 : i32
    %c0_i32_1 = arith.constant 0 : i32
    return %c0_i32, %c0_i32_0 : i32, i32
  }
  func.func @transform_1(%arg0: i32) -> (i32, i32) {
    %c0_i32 = arith.constant 0 : i32
    %c0_i32_0 = arith.constant 0 : i32
    %c0_i32_1 = arith.constant 0 : i32
    return %c0_i32, %c0_i32_0 : i32, i32
  }
  func.func @transform_2(%arg0: i32) -> (i32, i32) {
    %c0_i32 = arith.constant 0 : i32
    %c0_i32_0 = arith.constant 0 : i32
    %c0_i32_1 = arith.constant 0 : i32
    return %c0_i32, %c0_i32_0 : i32, i32
  }
  func.func @transform_3(%arg0: i32) -> (i32, i32) {
    %c0_i32 = arith.constant 0 : i32
    %c0_i32_0 = arith.constant 0 : i32
    %c0_i32_1 = arith.constant 0 : i32
    return %c0_i32, %c0_i32_0 : i32, i32
  }
  func.func @transform_4(%arg0: i32) -> (i32, i32) {
    %c0_i32 = arith.constant 0 : i32
    %c0_i32_0 = arith.constant 0 : i32
    %c0_i32_1 = arith.constant 0 : i32
    return %c0_i32, %c0_i32_0 : i32, i32
  }
  func.func @transform_5(%arg0: i32) -> (i32, i32) {
    %c0_i32 = arith.constant 0 : i32
    %c0_i32_0 = arith.constant 0 : i32
    %c0_i32_1 = arith.constant 0 : i32
    return %c0_i32, %c0_i32_0 : i32, i32
  }
  func.func @transform_6(%arg0: i32) -> (i32, i32) {
    %c0_i32 = arith.constant 0 : i32
    %c0_i32_0 = arith.constant 0 : i32
    %c0_i32_1 = arith.constant 0 : i32
    return %c0_i32, %c0_i32_0 : i32, i32
  }
  func.func @transform_7(%arg0: i32) -> (i32, i32) {
    %c0_i32 = arith.constant 0 : i32
    %c0_i32_0 = arith.constant 0 : i32
    %c0_i32_1 = arith.constant 0 : i32
    return %c0_i32, %c0_i32_0 : i32, i32
  }
  func.func @transform_8(%arg0: i32) -> (i32, i32) {
    %c0_i32 = arith.constant 0 : i32
    %c0_i32_0 = arith.constant 0 : i32
    %c0_i32_1 = arith.constant 0 : i32
    return %c0_i32, %c0_i32_0 : i32, i32
  }
  func.func @transform_9(%arg0: i32) -> (i32, i32) {
    %c0_i32 = arith.constant 0 : i32
    %c0_i32_0 = arith.constant 0 : i32
    %c0_i32_1 = arith.constant 0 : i32
    return %c0_i32, %c0_i32_0 : i32, i32
  }
  func.func @transform_10(%arg0: i32) -> (i32, i32) {
    %c0_i32 = arith.constant 0 : i32
    %c0_i32_0 = arith.constant 0 : i32
    %c0_i32_1 = arith.constant 0 : i32
    return %c0_i32, %c0_i32_0 : i32, i32
  }
}

</mosaic_0001>

<llo_original>
// kernel: tpu_custom_call.1
$region0: #{tpu_custom_call.1}
  #allocation0 [shape = 'u32[]', space=smem, size = 0x4, offset = 0x4, fixed_abs, tag = 'smem constant byte address 0x4 - core index']
  #allocation1 [shape = 'u32[144,128]{1,0:T(1,128)}', space=vmem, size = 0x12000, scoped, tag = 'internal scratch']
  %s0 = inlined_call_operand.vmem [shape: f32[8,32], index: 0, kind: input, shape index: {}]
  %s1 = inlined_call_operand.vmem [shape: f32[2,32], index: 1, kind: input, shape index: {}]
  %s2 = inlined_call_operand.vmem [shape: f32[16,2], index: 2, kind: input, shape index: {}]
  %s3 = inlined_call_operand.vmem [shape: bf16[32,8], index: 3, kind: input, shape index: {}]
  %s4 = inlined_call_operand.vmem [shape: bf16[8,16], index: 4, kind: input, shape index: {}]
  %s5 = inlined_call_operand.vmem [shape: bf16[2,8], index: 5, kind: input, shape index: {}]
  %s6 = inlined_call_operand.vmem [shape: bf16[8,2], index: 6, kind: input, shape index: {}]
  %s7 = inlined_call_operand.vmem [shape: f32[2,1], index: 7, kind: input, shape index: {}]
  %s8 = inlined_call_operand.vmem [shape: f32[240,32], index: 8, kind: input, shape index: {}]
  %s9 = inlined_call_operand.hbm [shape: f32[8,32], index: 9, kind: output, shape index: {0}]
  %s10 = inlined_call_operand.hbm [shape: f32[2,32], index: 10, kind: output, shape index: {1}]
  %11 = xla_tuple %s9, %s10
  %s12 = sld [smem:[#allocation0]]
  $region54: #{tpu_custom_call.1} parent=0
    _
  %s14 = ssub.s32 1, %s12
  %s15 = scalar_select 0, %s14, %s12
  $region1: #{tpu_custom_call.1} parent=0
    #allocation2 [shape = 'u8[4096]{0}', space=vmem, size = 0x1000, scoped, tag = 'output window, operand 0, single buffered']
    #allocation3 [shape = 's32[1]{0}', space=sflag, size = 0x4, scoped, tag = 'scoped memory for tpu_custom_call.1']
    #allocation4 [shape = 'u8[1024]{0}', space=vmem, size = 0x400, scoped, tag = 'output window, operand 1, single buffered']
    #allocation5 [shape = 's32[1]{0}', space=sflag, size = 0x4, scoped, tag = 'scoped memory for tpu_custom_call.1']
    %16 = vsyncpa [#allocation3], 0
    %17 = vsyncpa [#allocation5], 0
    // Predicated region
    $region2: #{tpu_custom_call.1} parent=1 // pred_check
      _
    $region3: #{tpu_custom_call.1} parent=1 // pred_check_branch
      %19 = sbr.rel (0) target = $region5
    $region4: #{tpu_custom_call.1} parent=1 // pred_region
      _
    $region5: #{tpu_custom_call.1} parent=1 // pred_fallthru
      _
    // Predicated region
    $region6: #{tpu_custom_call.1} parent=1 // pred_check
      _
    $region7: #{tpu_custom_call.1} parent=1 // pred_check_branch
      %21 = sbr.rel (0) target = $region9
    $region8: #{tpu_custom_call.1} parent=1 // pred_region
      _
    $region9: #{tpu_custom_call.1} parent=1 // pred_fallthru
      _
    // Predicated region
    $region10: #{tpu_custom_call.1} parent=1 // pred_check
      _
    $region11: #{tpu_custom_call.1} parent=1 // pred_check_branch
      %23 = sbr.rel (0) target = $region13
    $region12: #{tpu_custom_call.1} parent=1 // pred_region
      _
    $region13: #{tpu_custom_call.1} parent=1 // pred_fallthru
      _
    // Predicated region
    $region14: #{tpu_custom_call.1} parent=1 // pred_check
      _
    $region15: #{tpu_custom_call.1} parent=1 // pred_check_branch
      %25 = sbr.rel (0) target = $region17
    $region16: #{tpu_custom_call.1} parent=1 // pred_region
      _
    $region17: #{tpu_custom_call.1} parent=1 // pred_fallthru
      _
    // Predicated region
    $region18: #{tpu_custom_call.1} parent=1 // pred_check
      _
    $region19: #{tpu_custom_call.1} parent=1 // pred_check_branch
      %27 = sbr.rel (0) target = $region21
    $region20: #{tpu_custom_call.1} parent=1 // pred_region
      _
    $region21: #{tpu_custom_call.1} parent=1 // pred_fallthru
      _
    // Predicated region
    $region22: #{tpu_custom_call.1} parent=1 // pred_check
      _
    $region23: #{tpu_custom_call.1} parent=1 // pred_check_branch
      %29 = sbr.rel (0) target = $region25
    $region24: #{tpu_custom_call.1} parent=1 // pred_region
      _
    $region25: #{tpu_custom_call.1} parent=1 // pred_fallthru
      _
    // Predicated region
    $region26: #{tpu_custom_call.1} parent=1 // pred_check
      _
    $region27: #{tpu_custom_call.1} parent=1 // pred_check_branch
      %31 = sbr.rel (0) target = $region29
    $region28: #{tpu_custom_call.1} parent=1 // pred_region
      _
    $region29: #{tpu_custom_call.1} parent=1 // pred_fallthru
      _
    // Predicated region
    $region30: #{tpu_custom_call.1} parent=1 // pred_check
      _
    $region31: #{tpu_custom_call.1} parent=1 // pred_check_branch
      %33 = sbr.rel (0) target = $region33
    $region32: #{tpu_custom_call.1} parent=1 // pred_region
      _
    $region33: #{tpu_custom_call.1} parent=1 // pred_fallthru
      _
    // Predicated region
    $region34: #{tpu_custom_call.1} parent=1 // pred_check
      _
    $region35: #{tpu_custom_call.1} parent=1 // pred_check_branch
      %35 = sbr.rel (0) target = $region37
    $region36: #{tpu_custom_call.1} parent=1 // pred_region
      _
    $region37: #{tpu_custom_call.1} parent=1 // pred_fallthru
      _
    %v36 = vld [vmem:[%s0] sm:$0xff]
    %v37 = vld [vmem:[%s1] sm:$0x3]
    %v38 = vld [vmem:[%s2] sm:$0xff]
    %v39 = vld [vmem:[%s2 + $0x8] sm:$0xff]
    %v40 = vld [vmem:[%s3] sm:$0xf]
    %v41 = vld [vmem:[%s3 + $0x4] sm:$0xf]
    %v42 = vld [vmem:[%s3 + $0x8] sm:$0xf]
    %v43 = vld [vmem:[%s3 + $0xc] sm:$0xf]
    %v44 = vunpack.c.l.bf16 %v40
    %v45 = vunpack.c.l.bf16 %v41
    %v46 = vunpack.c.l.bf16 %v42
    %v47 = vunpack.c.l.bf16 %v43
    %v48 = vld [vmem:[%s4] sm:$0xf]
    %v49 = vunpack.c.l.bf16 %v48
    %v50 = vld [vmem:[%s6] sm:$0xf]
    %v51 = vunpack.c.l.bf16 %v50
    %v52 = vld [vmem:[%s5] sm:$0x1]
    %v53 = vunpack.c.l.bf16 %v52
    %v54 = vld [vmem:[%s7] sm:$0x3]
    %56 = vset.pattern.permute.xlu0 0
    %57 = vperm.xlu0 %56, %v54
    %v58 = vpop.permute.xlu0 %57
    %v60 = vmul.f32 %v53, %v58
    %v61 = vld [vmem:[%s8] sm:$0xff]
    %v62 = vld [vmem:[%s8 + $0x8] sm:$0xff]
    %v63 = vld [vmem:[%s8 + $0x10] sm:$0xff]
    %v64 = vld [vmem:[%s8 + $0x18] sm:$0xff]
    %v65 = vld [vmem:[%s8 + $0x20] sm:$0xff]
    %v66 = vld [vmem:[%s8 + $0x28] sm:$0xff]
    %v67 = vld [vmem:[%s8 + $0x30] sm:$0xff]
    %v68 = vld [vmem:[%s8 + $0x38] sm:$0xff]
    %v69 = vld [vmem:[%s8 + $0x40] sm:$0xff]
    %v70 = vld [vmem:[%s8 + $0x48] sm:$0xff]
    %v71 = vld [vmem:[%s8 + $0x50] sm:$0xff]
    %v72 = vld [vmem:[%s8 + $0x58] sm:$0xff]
    %v73 = vld [vmem:[%s8 + $0x60] sm:$0xff]
    %v74 = vld [vmem:[%s8 + $0x68] sm:$0xff]
    %v75 = vld [vmem:[%s8 + $0x70] sm:$0xff]
    %v76 = vld [vmem:[%s8 + $0x78] sm:$0xff]
    %v77 = vld [vmem:[%s8 + $0x80] sm:$0xff]
    %v78 = vld [vmem:[%s8 + $0x88] sm:$0xff]
    %v79 = vld [vmem:[%s8 + $0x90] sm:$0xff]
    %v80 = vld [vmem:[%s8 + $0x98] sm:$0xff]
    %v81 = vld [vmem:[%s8 + $0xa0] sm:$0xff]
    %v82 = vld [vmem:[%s8 + $0xa8] sm:$0xff]
    %v83 = vld [vmem:[%s8 + $0xb0] sm:$0xff]
    %v84 = vld [vmem:[%s8 + $0xb8] sm:$0xff]
    %v85 = vld [vmem:[%s8 + $0xc0] sm:$0xff]
    %v86 = vld [vmem:[%s8 + $0xc8] sm:$0xff]
    %v87 = vld [vmem:[%s8 + $0xd0] sm:$0xff]
    %v88 = vld [vmem:[%s8 + $0xd8] sm:$0xff]
    %v89 = vld [vmem:[%s8 + $0xe0] sm:$0x3]
    %v90 = vld [vmem:[%s8 + $0xe8] sm:$0x7]
    %v91 = vlaneseq
    %v92 = vshrl.u32 %v91, 7
    %v93 = vsub.s32 1, %v92
    %v94 = vrot.slane %v90, %v93
    %v95 = vlaneseq
    %v96 = vshrl.u32 %v95, 7
    %v97 = vsub.s32 2, %v96
    %v98 = vrot.slane %v90, %v97
    %v99 = vlaneseq
    %v100 = vshrl.u32 %v99, 7
    %v101 = vsub.s32 0, %v100
    %v102 = vrot.slane %v90, %v101
    %vm103 = vcmask 15360
    %v105 = vsel %vm103, %v38, 0
    %v108 = vsel %vm103, %v39, 0
    %vm110 = vcmask 1041408
    %v112 = vsel %vm110, %v89, 0
    %114 = vmatprep.subr.mxu0 0.0
    %115 = vmatpush1.msra.mxu0 0.0
    %116 = vmatprep.subr.mxu0 0.0
    %117 = vmatpush1.msra.mxu0 0.0
    %118 = vmatprep.subr.mxu0 0.0
    %119 = vmatpush1.msra.mxu0 0.0
    %120 = vmatprep.subr.mxu0 0.0
    %121 = vmatpush1.msra.mxu0 0.0
    %122 = vmatprep.subr.mxu0 0.0
    %123 = vmatpush1.msra.mxu0 0.0
    %124 = vmatprep.subr.mxu0 0.0
    %125 = vmatpush1.msra.mxu0 0.0
    %126 = vmatprep.subr.mxu0 0.0
    %127 = vmatpush1.msra.mxu0 0.0
    %128 = vmatprep.subr.mxu0 0.0
    %129 = vmatpush1.msra.mxu0 0.0
    %130 = vmatprep.subr.mxu0 0.0
    %131 = vmatpush1.msra.mxu0 0.0
    %132 = vmatprep.subr.mxu0 0.0
    %133 = vmatpush1.msra.mxu0 0.0
    %134 = vmatprep.subr.mxu0 0.0
    %135 = vmatpush1.msra.mxu0 0.0
    %136 = vmatprep.subr.mxu0 0.0
    %137 = vmatpush1.msra.mxu0 0.0
    %138 = vmatprep.subr.mxu0 0.0
    %139 = vmatpush1.msra.mxu0 0.0
    %140 = vmatprep.subr.mxu0 0.0
    %141 = vmatpush1.msra.mxu0 0.0
    %142 = vmatprep.subr.mxu0 0.0
    %143 = vmatpush1.msra.mxu0 0.0
    %144 = vmatprep.subr.mxu0 0.0
    %145 = vmatpush1.msra.mxu0 %v112
    %146 = vmatprep.subr.mxu0 0.0
    %147 = vmatpush2.msra.mxu0 0.0
    %148 = vmatprep.subr.mxu0 0.0
    %149 = vmatpush2.msra.mxu0 0.0
    %150 = vmatprep.subr.mxu0 0.0
    %151 = vmatpush2.msra.mxu0 0.0
    %152 = vmatprep.subr.mxu0 0.0
    %153 = vmatpush2.msra.mxu0 0.0
    %154 = vmatprep.subr.mxu0 0.0
    %155 = vmatpush2.msra.mxu0 0.0
    %156 = vmatprep.subr.mxu0 0.0
    %157 = vmatpush2.msra.mxu0 0.0
    %158 = vmatprep.subr.mxu0 0.0
    %159 = vmatpush2.msra.mxu0 0.0
    %160 = vmatprep.subr.mxu0 0.0
    %161 = vmatpush2.msra.mxu0 0.0
    %162 = vmatprep.subr.mxu0 0.0
    %163 = vmatpush2.msra.mxu0 0.0
    %164 = vmatprep.subr.mxu0 0.0
    %165 = vmatpush2.msra.mxu0 0.0
    %166 = vmatprep.subr.mxu0 0.0
    %167 = vmatpush2.msra.mxu0 0.0
    %168 = vmatprep.subr.mxu0 0.0
    %169 = vmatpush2.msra.mxu0 0.0
    %170 = vmatprep.subr.mxu0 0.0
    %171 = vmatpush2.msra.mxu0 0.0
    %172 = vmatprep.subr.mxu0 0.0
    %173 = vmatpush2.msra.mxu0 0.0
    %174 = vmatprep.subr.mxu0 0.0
    %175 = vmatpush2.msra.mxu0 0.0
    %176 = vmatprep.subr.mxu0 0.0
    %177 = vmatpush2.msra.mxu0 0.0
    %178 = vmatprep.mubr.f32.mxu0 0.0
    %179 = vmatmul.mubr.f32.gmra.mxu0 %v105
    %v180 = vpop.f32.mrf.mxu0
    %v181 = vadd.f32 %v102, %v180
    %v182 = vpop.f32.mrf.mxu0
    %183 = vmatprep.mubr.f32.mxu0 0.0
    %184 = vmatmul.mubr.f32.gmra.mxu0 %v108
    %v185 = vpop.f32.mrf.mxu0
    %v186 = vadd.f32 %v102, %v185
    %v187 = vpop.f32.mrf.mxu0
    %188 = vdwg.mxu0
    %vm189 = vcmask 64512
    %v191 = vsel %vm189, %v44, 0
    %v194 = vsel %vm189, %v45, 0
    %v197 = vsel %vm189, %v46, 0
    %v200 = vsel %vm189, %v47, 0
    %202 = vmatprep.subr.mxu0 0.0
    %203 = vmatpush1.msra.mxu0 0.0
    %204 = vmatprep.subr.mxu0 0.0
    %205 = vmatpush1.msra.mxu0 0.0
    %206 = vmatprep.subr.mxu0 0.0
    %207 = vmatpush1.msra.mxu0 0.0
    %208 = vmatprep.subr.mxu0 0.0
    %209 = vmatpush1.msra.mxu0 0.0
    %210 = vmatprep.subr.mxu0 0.0
    %211 = vmatpush1.msra.mxu0 0.0
    %212 = vmatprep.subr.mxu0 0.0
    %213 = vmatpush1.msra.mxu0 0.0
    %214 = vmatprep.subr.mxu0 0.0
    %215 = vmatpush1.msra.mxu0 0.0
    %216 = vmatprep.subr.mxu0 0.0
    %217 = vmatpush1.msra.mxu0 0.0
    %218 = vmatprep.subr.mxu0 0.0
    %219 = vmatpush1.msra.mxu0 0.0
    %220 = vmatprep.subr.mxu0 0.0
    %221 = vmatpush1.msra.mxu0 0.0
    %222 = vmatprep.subr.mxu0 0.0
    %223 = vmatpush1.msra.mxu0 0.0
    %224 = vmatprep.subr.mxu0 0.0
    %225 = vmatpush1.msra.mxu0 0.0
    %226 = vmatprep.subr.mxu0 0.0
    %227 = vmatpush1.msra.mxu0 0.0
    %228 = vmatprep.subr.mxu0 0.0
    %229 = vmatpush1.msra.mxu0 0.0
    %230 = vmatprep.subr.mxu0 0.0
    %231 = vmatpush1.msra.mxu0 0.0
    %232 = vmatprep.subr.mxu0 0.0
    %233 = vmatpush1.msra.mxu0 %v36
    %234 = vmatprep.subr.mxu0 0.0
    %235 = vmatpush2.msra.mxu0 0.0
    %236 = vmatprep.subr.mxu0 0.0
    %237 = vmatpush2.msra.mxu0 0.0
    %238 = vmatprep.subr.mxu0 0.0
    %239 = vmatpush2.msra.mxu0 0.0
    %240 = vmatprep.subr.mxu0 0.0
    %241 = vmatpush2.msra.mxu0 0.0
    %242 = vmatprep.subr.mxu0 0.0
    %243 = vmatpush2.msra.mxu0 0.0
    %244 = vmatprep.subr.mxu0 0.0
    %245 = vmatpush2.msra.mxu0 0.0
    %246 = vmatprep.subr.mxu0 0.0
    %247 = vmatpush2.msra.mxu0 0.0
    %248 = vmatprep.subr.mxu0 0.0
    %249 = vmatpush2.msra.mxu0 0.0
    %250 = vmatprep.subr.mxu0 0.0
    %251 = vmatpush2.msra.mxu0 0.0
    %252 = vmatprep.subr.mxu0 0.0
    %253 = vmatpush2.msra.mxu0 0.0
    %254 = vmatprep.subr.mxu0 0.0
    %255 = vmatpush2.msra.mxu0 0.0
    %256 = vmatprep.subr.mxu0 0.0
    %257 = vmatpush2.msra.mxu0 0.0
    %258 = vmatprep.subr.mxu0 0.0
    %259 = vmatpush2.msra.mxu0 0.0
    %260 = vmatprep.subr.mxu0 0.0
    %261 = vmatpush2.msra.mxu0 0.0
    %262 = vmatprep.subr.mxu0 0.0
    %263 = vmatpush2.msra.mxu0 0.0
    %264 = vmatprep.subr.mxu0 0.0
    %265 = vmatpush2.msra.mxu0 0.0
    %266 = vmatprep.mubr.f32.mxu0 0.0
    %267 = vmatmul.mubr.f32.gmra.mxu0 %v191
    %v268 = vpop.f32.mrf.mxu0
    %v269 = vadd.f32 0.0, %v268
    %v270 = vpop.f32.mrf.mxu0
    %271 = vmatprep.mubr.f32.mxu0 0.0
    %272 = vmatmul.mubr.f32.gmra.mxu0 %v194
    %v273 = vpop.f32.mrf.mxu0
    %v274 = vadd.f32 0.0, %v273
    %v275 = vpop.f32.mrf.mxu0
    %276 = vmatprep.mubr.f32.mxu0 0.0
    %277 = vmatmul.mubr.f32.gmra.mxu0 %v197
    %v278 = vpop.f32.mrf.mxu0
    %v279 = vadd.f32 0.0, %v278
    %v280 = vpop.f32.mrf.mxu0
    %281 = vmatprep.mubr.f32.mxu0 0.0
    %282 = vmatmul.mubr.f32.gmra.mxu0 %v200
    %v283 = vpop.f32.mrf.mxu0
    %v284 = vadd.f32 0.0, %v283
    %v285 = vpop.f32.mrf.mxu0
    %286 = vdwg.mxu0
    %289 = vrot.lane.b32.xlu0 %v279, 32
    %v290 = vpop.permute.xlu0 %289
    %291 = vrot.lane.b32.xlu0 %v284, 32
    %v292 = vpop.permute.xlu0 %291
    %vm295 = vcmask 261120
    %v296 = vsel %vm295, %v269, %v290
    %v297 = vsel %vm295, %v274, %v292
    %vm298 = vcmask 523264
    %v300 = vsel %vm298, %v296, 0
    %v303 = vsel %vm298, %v297, 0
    %305 = vmatprep.subr.mxu0 0.0
    %306 = vmatpush1.msra.mxu0 0.0
    %307 = vmatprep.subr.mxu0 0.0
    %308 = vmatpush1.msra.mxu0 0.0
    %309 = vmatprep.subr.mxu0 0.0
    %310 = vmatpush1.msra.mxu0 0.0
    %311 = vmatprep.subr.mxu0 0.0
    %312 = vmatpush1.msra.mxu0 0.0
    %313 = vmatprep.subr.mxu0 0.0
    %314 = vmatpush1.msra.mxu0 0.0
    %315 = vmatprep.subr.mxu0 0.0
    %316 = vmatpush1.msra.mxu0 0.0
    %317 = vmatprep.subr.mxu0 0.0
    %318 = vmatpush1.msra.mxu0 0.0
    %319 = vmatprep.subr.mxu0 0.0
    %320 = vmatpush1.msra.mxu0 0.0
    %321 = vmatprep.subr.mxu0 0.0
    %322 = vmatpush1.msra.mxu0 %v68
    %323 = vmatprep.subr.mxu0 0.0
    %324 = vmatpush1.msra.mxu0 %v67
    %325 = vmatprep.subr.mxu0 0.0
    %326 = vmatpush1.msra.mxu0 %v66
    %327 = vmatprep.subr.mxu0 0.0
    %328 = vmatpush1.msra.mxu0 %v65
    %329 = vmatprep.subr.mxu0 0.0
    %330 = vmatpush1.msra.mxu0 %v64
    %331 = vmatprep.subr.mxu0 0.0
    %332 = vmatpush1.msra.mxu0 %v63
    %333 = vmatprep.subr.mxu0 0.0
    %334 = vmatpush1.msra.mxu0 %v62
    %335 = vmatprep.subr.mxu0 0.0
    %336 = vmatpush1.msra.mxu0 %v61
    %337 = vmatprep.subr.mxu0 0.0
    %338 = vmatpush2.msra.mxu0 0.0
    %339 = vmatprep.subr.mxu0 0.0
    %340 = vmatpush2.msra.mxu0 0.0
    %341 = vmatprep.subr.mxu0 0.0
    %342 = vmatpush2.msra.mxu0 0.0
    %343 = vmatprep.subr.mxu0 0.0
    %344 = vmatpush2.msra.mxu0 0.0
    %345 = vmatprep.subr.mxu0 0.0
    %346 = vmatpush2.msra.mxu0 0.0
    %347 = vmatprep.subr.mxu0 0.0
    %348 = vmatpush2.msra.mxu0 0.0
    %349 = vmatprep.subr.mxu0 0.0
    %350 = vmatpush2.msra.mxu0 0.0
    %351 = vmatprep.subr.mxu0 0.0
    %352 = vmatpush2.msra.mxu0 0.0
    %353 = vmatprep.subr.mxu0 0.0
    %354 = vmatpush2.msra.mxu0 0.0
    %355 = vmatprep.subr.mxu0 0.0
    %356 = vmatpush2.msra.mxu0 0.0
    %357 = vmatprep.subr.mxu0 0.0
    %358 = vmatpush2.msra.mxu0 0.0
    %359 = vmatprep.subr.mxu0 0.0
    %360 = vmatpush2.msra.mxu0 0.0
    %361 = vmatprep.subr.mxu0 0.0
    %362 = vmatpush2.msra.mxu0 0.0
    %363 = vmatprep.subr.mxu0 0.0
    %364 = vmatpush2.msra.mxu0 0.0
    %365 = vmatprep.subr.mxu0 0.0
    %366 = vmatpush2.msra.mxu0 0.0
    %367 = vmatprep.subr.mxu0 0.0
    %368 = vmatpush2.msra.mxu0 0.0
    %369 = vmatprep.mubr.f32.mxu0 0.0
    %370 = vmatmul.mubr.f32.gmra.mxu0 %v300
    %v371 = vpop.f32.mrf.mxu0
    %v372 = vadd.f32 %v181, %v371
    %v373 = vpop.f32.mrf.mxu0
    %374 = vmatprep.mubr.f32.mxu0 0.0
    %375 = vmatmul.mubr.f32.gmra.mxu0 %v303
    %v376 = vpop.f32.mrf.mxu0
    %v377 = vadd.f32 %v186, %v376
    %v378 = vpop.f32.mrf.mxu0
    %379 = vdwg.mxu0
    %v380 = vmul.f32 %v372, 0.01
    %v381 = vmul.f32 %v377, 0.01
    %v382 = vmax.f32 %v372, %v380
    %v383 = vmax.f32 %v377, %v381
    %vm384 = vcmask 130048
    %v386 = vsel %vm384, %v49, 0
    %388 = vmatprep.subr.mxu0 0.0
    %389 = vmatpush1.msra.mxu0 0.0
    %390 = vmatprep.subr.mxu0 0.0
    %391 = vmatpush1.msra.mxu0 0.0
    %392 = vmatprep.subr.mxu0 0.0
    %393 = vmatpush1.msra.mxu0 0.0
    %394 = vmatprep.subr.mxu0 0.0
    %395 = vmatpush1.msra.mxu0 0.0
    %396 = vmatprep.subr.mxu0 0.0
    %397 = vmatpush1.msra.mxu0 0.0
    %398 = vmatprep.subr.mxu0 0.0
    %399 = vmatpush1.msra.mxu0 0.0
    %400 = vmatprep.subr.mxu0 0.0
    %401 = vmatpush1.msra.mxu0 0.0
    %402 = vmatprep.subr.mxu0 0.0
    %403 = vmatpush1.msra.mxu0 0.0
    %404 = vmatprep.subr.mxu0 0.0
    %405 = vmatpush1.msra.mxu0 0.0
    %406 = vmatprep.subr.mxu0 0.0
    %407 = vmatpush1.msra.mxu0 0.0
    %408 = vmatprep.subr.mxu0 0.0
    %409 = vmatpush1.msra.mxu0 0.0
    %410 = vmatprep.subr.mxu0 0.0
    %411 = vmatpush1.msra.mxu0 0.0
    %412 = vmatprep.subr.mxu0 0.0
    %413 = vmatpush1.msra.mxu0 0.0
    %414 = vmatprep.subr.mxu0 0.0
    %415 = vmatpush1.msra.mxu0 0.0
    %416 = vmatprep.subr.mxu0 0.0
    %417 = vmatpush1.msra.mxu0 %v383
    %418 = vmatprep.subr.mxu0 0.0
    %419 = vmatpush1.msra.mxu0 %v382
    %420 = vmatprep.subr.mxu0 0.0
    %421 = vmatpush2.msra.mxu0 0.0
    %422 = vmatprep.subr.mxu0 0.0
    %423 = vmatpush2.msra.mxu0 0.0
    %424 = vmatprep.subr.mxu0 0.0
    %425 = vmatpush2.msra.mxu0 0.0
    %426 = vmatprep.subr.mxu0 0.0
    %427 = vmatpush2.msra.mxu0 0.0
    %428 = vmatprep.subr.mxu0 0.0
    %429 = vmatpush2.msra.mxu0 0.0
    %430 = vmatprep.subr.mxu0 0.0
    %431 = vmatpush2.msra.mxu0 0.0
    %432 = vmatprep.subr.mxu0 0.0
    %433 = vmatpush2.msra.mxu0 0.0
    %434 = vmatprep.subr.mxu0 0.0
    %435 = vmatpush2.msra.mxu0 0.0
    %436 = vmatprep.subr.mxu0 0.0
    %437 = vmatpush2.msra.mxu0 0.0
    %438 = vmatprep.subr.mxu0 0.0
    %439 = vmatpush2.msra.mxu0 0.0
    %440 = vmatprep.subr.mxu0 0.0
    %441 = vmatpush2.msra.mxu0 0.0
    %442 = vmatprep.subr.mxu0 0.0
    %443 = vmatpush2.msra.mxu0 0.0
    %444 = vmatprep.subr.mxu0 0.0
    %445 = vmatpush2.msra.mxu0 0.0
    %446 = vmatprep.subr.mxu0 0.0
    %447 = vmatpush2.msra.mxu0 0.0
    %448 = vmatprep.subr.mxu0 0.0
    %449 = vmatpush2.msra.mxu0 0.0
    %450 = vmatprep.subr.mxu0 0.0
    %451 = vmatpush2.msra.mxu0 0.0
    %452 = vmatprep.mubr.f32.mxu0 0.0
    %453 = vmatmul.mubr.f32.gmra.mxu0 %v386
    %v454 = vpop.f32.mrf.mxu0
    %v455 = vadd.f32 0.0, %v454
    %v456 = vpop.f32.mrf.mxu0
    %457 = vdwg.mxu0
    %v459 = vsel %vm103, %v51, 0
    %v462 = vsel %vm110, %v37, 0
    %464 = vmatprep.subr.mxu0 0.0
    %465 = vmatpush1.msra.mxu0 0.0
    %466 = vmatprep.subr.mxu0 0.0
    %467 = vmatpush1.msra.mxu0 0.0
    %468 = vmatprep.subr.mxu0 0.0
    %469 = vmatpush1.msra.mxu0 0.0
    %470 = vmatprep.subr.mxu0 0.0
    %471 = vmatpush1.msra.mxu0 0.0
    %472 = vmatprep.subr.mxu0 0.0
    %473 = vmatpush1.msra.mxu0 0.0
    %474 = vmatprep.subr.mxu0 0.0
    %475 = vmatpush1.msra.mxu0 0.0
    %476 = vmatprep.subr.mxu0 0.0
    %477 = vmatpush1.msra.mxu0 0.0
    %478 = vmatprep.subr.mxu0 0.0
    %479 = vmatpush1.msra.mxu0 0.0
    %480 = vmatprep.subr.mxu0 0.0
    %481 = vmatpush1.msra.mxu0 0.0
    %482 = vmatprep.subr.mxu0 0.0
    %483 = vmatpush1.msra.mxu0 0.0
    %484 = vmatprep.subr.mxu0 0.0
    %485 = vmatpush1.msra.mxu0 0.0
    %486 = vmatprep.subr.mxu0 0.0
    %487 = vmatpush1.msra.mxu0 0.0
    %488 = vmatprep.subr.mxu0 0.0
    %489 = vmatpush1.msra.mxu0 0.0
    %490 = vmatprep.subr.mxu0 0.0
    %491 = vmatpush1.msra.mxu0 0.0
    %492 = vmatprep.subr.mxu0 0.0
    %493 = vmatpush1.msra.mxu0 0.0
    %494 = vmatprep.subr.mxu0 0.0
    %495 = vmatpush1.msra.mxu0 %v462
    %496 = vmatprep.subr.mxu0 0.0
    %497 = vmatpush2.msra.mxu0 0.0
    %498 = vmatprep.subr.mxu0 0.0
    %499 = vmatpush2.msra.mxu0 0.0
    %500 = vmatprep.subr.mxu0 0.0
    %501 = vmatpush2.msra.mxu0 0.0
    %502 = vmatprep.subr.mxu0 0.0
    %503 = vmatpush2.msra.mxu0 0.0
    %504 = vmatprep.subr.mxu0 0.0
    %505 = vmatpush2.msra.mxu0 0.0
    %506 = vmatprep.subr.mxu0 0.0
    %507 = vmatpush2.msra.mxu0 0.0
    %508 = vmatprep.subr.mxu0 0.0
    %509 = vmatpush2.msra.mxu0 0.0
    %510 = vmatprep.subr.mxu0 0.0
    %511 = vmatpush2.msra.mxu0 0.0
    %512 = vmatprep.subr.mxu0 0.0
    %513 = vmatpush2.msra.mxu0 0.0
    %514 = vmatprep.subr.mxu0 0.0
    %515 = vmatpush2.msra.mxu0 0.0
    %516 = vmatprep.subr.mxu0 0.0
    %517 = vmatpush2.msra.mxu0 0.0
    %518 = vmatprep.subr.mxu0 0.0
    %519 = vmatpush2.msra.mxu0 0.0
    %520 = vmatprep.subr.mxu0 0.0
    %521 = vmatpush2.msra.mxu0 0.0
    %522 = vmatprep.subr.mxu0 0.0
    %523 = vmatpush2.msra.mxu0 0.0
    %524 = vmatprep.subr.mxu0 0.0
    %525 = vmatpush2.msra.mxu0 0.0
    %526 = vmatprep.subr.mxu0 0.0
    %527 = vmatpush2.msra.mxu0 0.0
    %528 = vmatprep.mubr.f32.mxu0 0.0
    %529 = vmatmul.mubr.f32.gmra.mxu0 %v459
    %v530 = vpop.f32.mrf.mxu0
    %v531 = vadd.f32 0.0, %v530
    %v532 = vpop.f32.mrf.mxu0
    %533 = vdwg.mxu0
    %535 = vrot.lane.b32.xlu0 %v455, 32
    %v536 = vpop.permute.xlu0 %535
    %539 = vrot.lane.b32.xlu0 %v531, 64
    %v540 = vpop.permute.xlu0 %539
    %v542 = vsel %vm295, %v36, %v536
    %v543 = vsel %vm298, %v542, %v540
    %vm544 = vcmask 785408
    %v546 = vsel %vm544, %v543, 0
    %548 = vmatprep.subr.mxu0 0.0
    %549 = vmatpush1.msra.mxu0 0.0
    %550 = vmatprep.subr.mxu0 0.0
    %551 = vmatpush1.msra.mxu0 0.0
    %552 = vmatprep.subr.mxu0 0.0
    %553 = vmatpush1.msra.mxu0 0.0
    %554 = vmatprep.subr.mxu0 0.0
    %555 = vmatpush1.msra.mxu0 0.0
    %556 = vmatprep.subr.mxu0 0.0
    %557 = vmatpush1.msra.mxu0 %v80
    %558 = vmatprep.subr.mxu0 0.0
    %559 = vmatpush1.msra.mxu0 %v79
    %560 = vmatprep.subr.mxu0 0.0
    %561 = vmatpush1.msra.mxu0 %v78
    %562 = vmatprep.subr.mxu0 0.0
    %563 = vmatpush1.msra.mxu0 %v77
    %564 = vmatprep.subr.mxu0 0.0
    %565 = vmatpush1.msra.mxu0 %v76
    %566 = vmatprep.subr.mxu0 0.0
    %567 = vmatpush1.msra.mxu0 %v75
    %568 = vmatprep.subr.mxu0 0.0
    %569 = vmatpush1.msra.mxu0 %v74
    %570 = vmatprep.subr.mxu0 0.0
    %571 = vmatpush1.msra.mxu0 %v73
    %572 = vmatprep.subr.mxu0 0.0
    %573 = vmatpush1.msra.mxu0 %v72
    %574 = vmatprep.subr.mxu0 0.0
    %575 = vmatpush1.msra.mxu0 %v71
    %576 = vmatprep.subr.mxu0 0.0
    %577 = vmatpush1.msra.mxu0 %v70
    %578 = vmatprep.subr.mxu0 0.0
    %579 = vmatpush1.msra.mxu0 %v69
    %580 = vmatprep.subr.mxu0 0.0
    %581 = vmatpush2.msra.mxu0 0.0
    %582 = vmatprep.subr.mxu0 0.0
    %583 = vmatpush2.msra.mxu0 0.0
    %584 = vmatprep.subr.mxu0 0.0
    %585 = vmatpush2.msra.mxu0 0.0
    %586 = vmatprep.subr.mxu0 0.0
    %587 = vmatpush2.msra.mxu0 0.0
    %588 = vmatprep.subr.mxu0 0.0
    %589 = vmatpush2.msra.mxu0 0.0
    %590 = vmatprep.subr.mxu0 0.0
    %591 = vmatpush2.msra.mxu0 0.0
    %592 = vmatprep.subr.mxu0 0.0
    %593 = vmatpush2.msra.mxu0 0.0
    %594 = vmatprep.subr.mxu0 0.0
    %595 = vmatpush2.msra.mxu0 0.0
    %596 = vmatprep.subr.mxu0 0.0
    %597 = vmatpush2.msra.mxu0 0.0
    %598 = vmatprep.subr.mxu0 0.0
    %599 = vmatpush2.msra.mxu0 0.0
    %600 = vmatprep.subr.mxu0 0.0
    %601 = vmatpush2.msra.mxu0 0.0
    %602 = vmatprep.subr.mxu0 0.0
    %603 = vmatpush2.msra.mxu0 0.0
    %604 = vmatprep.subr.mxu0 0.0
    %605 = vmatpush2.msra.mxu0 0.0
    %606 = vmatprep.subr.mxu0 0.0
    %607 = vmatpush2.msra.mxu0 0.0
    %608 = vmatprep.subr.mxu0 0.0
    %609 = vmatpush2.msra.mxu0 0.0
    %610 = vmatprep.subr.mxu0 0.0
    %611 = vmatpush2.msra.mxu0 0.0
    %612 = vmatprep.mubr.f32.mxu0 0.0
    %613 = vmatmul.mubr.f32.gmra.mxu0 %v546
    %v614 = vpop.f32.mrf.mxu0
    %v615 = vadd.f32 %v94, %v614
    %v616 = vpop.f32.mrf.mxu0
    %617 = vdwg.mxu0
    %v618 = vmul.f32 %v615, 0.01
    %v619 = vmax.f32 %v615, %v618
    %v621 = vsel %vm189, %v60, 0
    %623 = vmatprep.subr.mxu0 0.0
    %624 = vmatpush1.msra.mxu0 0.0
    %625 = vmatprep.subr.mxu0 0.0
    %626 = vmatpush1.msra.mxu0 0.0
    %627 = vmatprep.subr.mxu0 0.0
    %628 = vmatpush1.msra.mxu0 0.0
    %629 = vmatprep.subr.mxu0 0.0
    %630 = vmatpush1.msra.mxu0 0.0
    %631 = vmatprep.subr.mxu0 0.0
    %632 = vmatpush1.msra.mxu0 0.0
    %633 = vmatprep.subr.mxu0 0.0
    %634 = vmatpush1.msra.mxu0 0.0
    %635 = vmatprep.subr.mxu0 0.0
    %636 = vmatpush1.msra.mxu0 0.0
    %637 = vmatprep.subr.mxu0 0.0
    %638 = vmatpush1.msra.mxu0 0.0
    %639 = vmatprep.subr.mxu0 0.0
    %640 = vmatpush1.msra.mxu0 0.0
    %641 = vmatprep.subr.mxu0 0.0
    %642 = vmatpush1.msra.mxu0 0.0
    %643 = vmatprep.subr.mxu0 0.0
    %644 = vmatpush1.msra.mxu0 0.0
    %645 = vmatprep.subr.mxu0 0.0
    %646 = vmatpush1.msra.mxu0 0.0
    %647 = vmatprep.subr.mxu0 0.0
    %648 = vmatpush1.msra.mxu0 0.0
    %649 = vmatprep.subr.mxu0 0.0
    %650 = vmatpush1.msra.mxu0 0.0
    %651 = vmatprep.subr.mxu0 0.0
    %652 = vmatpush1.msra.mxu0 0.0
    %653 = vmatprep.subr.mxu0 0.0
    %654 = vmatpush1.msra.mxu0 %v619
    %655 = vmatprep.subr.mxu0 0.0
    %656 = vmatpush2.msra.mxu0 0.0
    %657 = vmatprep.subr.mxu0 0.0
    %658 = vmatpush2.msra.mxu0 0.0
    %659 = vmatprep.subr.mxu0 0.0
    %660 = vmatpush2.msra.mxu0 0.0
    %661 = vmatprep.subr.mxu0 0.0
    %662 = vmatpush2.msra.mxu0 0.0
    %663 = vmatprep.subr.mxu0 0.0
    %664 = vmatpush2.msra.mxu0 0.0
    %665 = vmatprep.subr.mxu0 0.0
    %666 = vmatpush2.msra.mxu0 0.0
    %667 = vmatprep.subr.mxu0 0.0
    %668 = vmatpush2.msra.mxu0 0.0
    %669 = vmatprep.subr.mxu0 0.0
    %670 = vmatpush2.msra.mxu0 0.0
    %671 = vmatprep.subr.mxu0 0.0
    %672 = vmatpush2.msra.mxu0 0.0
    %673 = vmatprep.subr.mxu0 0.0
    %674 = vmatpush2.msra.mxu0 0.0
    %675 = vmatprep.subr.mxu0 0.0
    %676 = vmatpush2.msra.mxu0 0.0
    %677 = vmatprep.subr.mxu0 0.0
    %678 = vmatpush2.msra.mxu0 0.0
    %679 = vmatprep.subr.mxu0 0.0
    %680 = vmatpush2.msra.mxu0 0.0
    %681 = vmatprep.subr.mxu0 0.0
    %682 = vmatpush2.msra.mxu0 0.0
    %683 = vmatprep.subr.mxu0 0.0
    %684 = vmatpush2.msra.mxu0 0.0
    %685 = vmatprep.subr.mxu0 0.0
    %686 = vmatpush2.msra.mxu0 0.0
    %687 = vmatprep.mubr.f32.mxu0 0.0
    %688 = vmatmul.mubr.f32.gmra.mxu0 %v621
    %v689 = vpop.f32.mrf.mxu0
    %v690 = vadd.f32 0.0, %v689
    %v691 = vpop.f32.mrf.mxu0
    %692 = vdwg.mxu0
    %694 = vrot.lane.b32.xlu0 %v690, 32
    %v695 = vpop.permute.xlu0 %694
    %v697 = vsel %vm295, %v37, %v695
    %v699 = vsel %vm298, %v697, 0
    %701 = vmatprep.subr.mxu0 0.0
    %702 = vmatpush1.msra.mxu0 0.0
    %703 = vmatprep.subr.mxu0 0.0
    %704 = vmatpush1.msra.mxu0 0.0
    %705 = vmatprep.subr.mxu0 0.0
    %706 = vmatpush1.msra.mxu0 0.0
    %707 = vmatprep.subr.mxu0 0.0
    %708 = vmatpush1.msra.mxu0 0.0
    %709 = vmatprep.subr.mxu0 0.0
    %710 = vmatpush1.msra.mxu0 0.0
    %711 = vmatprep.subr.mxu0 0.0
    %712 = vmatpush1.msra.mxu0 0.0
    %713 = vmatprep.subr.mxu0 0.0
    %714 = vmatpush1.msra.mxu0 0.0
    %715 = vmatprep.subr.mxu0 0.0
    %716 = vmatpush1.msra.mxu0 0.0
    %717 = vmatprep.subr.mxu0 0.0
    %718 = vmatpush1.msra.mxu0 %v88
    %719 = vmatprep.subr.mxu0 0.0
    %720 = vmatpush1.msra.mxu0 %v87
    %721 = vmatprep.subr.mxu0 0.0
    %722 = vmatpush1.msra.mxu0 %v86
    %723 = vmatprep.subr.mxu0 0.0
    %724 = vmatpush1.msra.mxu0 %v85
    %725 = vmatprep.subr.mxu0 0.0
    %726 = vmatpush1.msra.mxu0 %v84
    %727 = vmatprep.subr.mxu0 0.0
    %728 = vmatpush1.msra.mxu0 %v83
    %729 = vmatprep.subr.mxu0 0.0
    %730 = vmatpush1.msra.mxu0 %v82
    %731 = vmatprep.subr.mxu0 0.0
    %732 = vmatpush1.msra.mxu0 %v81
    %733 = vmatprep.subr.mxu0 0.0
    %734 = vmatpush2.msra.mxu0 0.0
    %735 = vmatprep.subr.mxu0 0.0
    %736 = vmatpush2.msra.mxu0 0.0
    %737 = vmatprep.subr.mxu0 0.0
    %738 = vmatpush2.msra.mxu0 0.0
    %739 = vmatprep.subr.mxu0 0.0
    %740 = vmatpush2.msra.mxu0 0.0
    %741 = vmatprep.subr.mxu0 0.0
    %742 = vmatpush2.msra.mxu0 0.0
    %743 = vmatprep.subr.mxu0 0.0
    %744 = vmatpush2.msra.mxu0 0.0
    %745 = vmatprep.subr.mxu0 0.0
    %746 = vmatpush2.msra.mxu0 0.0
    %747 = vmatprep.subr.mxu0 0.0
    %748 = vmatpush2.msra.mxu0 0.0
    %749 = vmatprep.subr.mxu0 0.0
    %750 = vmatpush2.msra.mxu0 0.0
    %751 = vmatprep.subr.mxu0 0.0
    %752 = vmatpush2.msra.mxu0 0.0
    %753 = vmatprep.subr.mxu0 0.0
    %754 = vmatpush2.msra.mxu0 0.0
    %755 = vmatprep.subr.mxu0 0.0
    %756 = vmatpush2.msra.mxu0 0.0
    %757 = vmatprep.subr.mxu0 0.0
    %758 = vmatpush2.msra.mxu0 0.0
    %759 = vmatprep.subr.mxu0 0.0
    %760 = vmatpush2.msra.mxu0 0.0
    %761 = vmatprep.subr.mxu0 0.0
    %762 = vmatpush2.msra.mxu0 0.0
    %763 = vmatprep.subr.mxu0 0.0
    %764 = vmatpush2.msra.mxu0 0.0
    %765 = vmatprep.mubr.f32.mxu0 0.0
    %766 = vmatmul.mubr.f32.gmra.mxu0 %v699
    %v767 = vpop.f32.mrf.mxu0
    %v768 = vadd.f32 %v98, %v767
    %v769 = vpop.f32.mrf.mxu0
    %770 = vdwg.mxu0
    %v771 = vmul.f32 %v768, 0.01
    %v772 = vmax.f32 %v768, %v771
    %773 = vmatprep.subr.mxu0 0.0
    %774 = vmatpush1.msra.mxu0 0.0
    %775 = vmatprep.subr.mxu0 0.0
    %776 = vmatpush1.msra.mxu0 0.0
    %777 = vmatprep.subr.mxu0 0.0
    %778 = vmatpush1.msra.mxu0 0.0
    %779 = vmatprep.subr.mxu0 0.0
    %780 = vmatpush1.msra.mxu0 0.0
    %781 = vmatprep.subr.mxu0 0.0
    %782 = vmatpush1.msra.mxu0 0.0
    %783 = vmatprep.subr.mxu0 0.0
    %784 = vmatpush1.msra.mxu0 0.0
    %785 = vmatprep.subr.mxu0 0.0
    %786 = vmatpush1.msra.mxu0 0.0
    %787 = vmatprep.subr.mxu0 0.0
    %788 = vmatpush1.msra.mxu0 0.0
    %789 = vmatprep.subr.mxu0 0.0
    %790 = vmatpush1.msra.mxu0 0.0
    %791 = vmatprep.subr.mxu0 0.0
    %792 = vmatpush1.msra.mxu0 0.0
    %793 = vmatprep.subr.mxu0 0.0
    %794 = vmatpush1.msra.mxu0 0.0
    %795 = vmatprep.subr.mxu0 0.0
    %796 = vmatpush1.msra.mxu0 0.0
    %797 = vmatprep.subr.mxu0 0.0
    %798 = vmatpush1.msra.mxu0 0.0
    %799 = vmatprep.subr.mxu0 0.0
    %800 = vmatpush1.msra.mxu0 0.0
    %801 = vmatprep.subr.mxu0 0.0
    %802 = vmatpush1.msra.mxu0 0.0
    %803 = vmatprep.subr.mxu0 0.0
    %804 = vmatpush1.msra.mxu0 %v619
    %805 = vmatprep.subr.mxu0 0.0
    %806 = vmatpush2.msra.mxu0 0.0
    %807 = vmatprep.subr.mxu0 0.0
    %808 = vmatpush2.msra.mxu0 0.0
    %809 = vmatprep.subr.mxu0 0.0
    %810 = vmatpush2.msra.mxu0 0.0
    %811 = vmatprep.subr.mxu0 0.0
    %812 = vmatpush2.msra.mxu0 0.0
    %813 = vmatprep.subr.mxu0 0.0
    %814 = vmatpush2.msra.mxu0 0.0
    %815 = vmatprep.subr.mxu0 0.0
    %816 = vmatpush2.msra.mxu0 0.0
    %817 = vmatprep.subr.mxu0 0.0
    %818 = vmatpush2.msra.mxu0 0.0
    %819 = vmatprep.subr.mxu0 0.0
    %820 = vmatpush2.msra.mxu0 0.0
    %821 = vmatprep.subr.mxu0 0.0
    %822 = vmatpush2.msra.mxu0 0.0
    %823 = vmatprep.subr.mxu0 0.0
    %824 = vmatpush2.msra.mxu0 0.0
    %825 = vmatprep.subr.mxu0 0.0
    %826 = vmatpush2.msra.mxu0 0.0
    %827 = vmatprep.subr.mxu0 0.0
    %828 = vmatpush2.msra.mxu0 0.0
    %829 = vmatprep.subr.mxu0 0.0
    %830 = vmatpush2.msra.mxu0 0.0
    %831 = vmatprep.subr.mxu0 0.0
    %832 = vmatpush2.msra.mxu0 0.0
    %833 = vmatprep.subr.mxu0 0.0
    %834 = vmatpush2.msra.mxu0 0.0
    %835 = vmatprep.subr.mxu0 0.0
    %836 = vmatpush2.msra.mxu0 0.0
    %837 = vmatprep.mubr.f32.mxu0 0.0
    %838 = vmatmul.mubr.f32.gmra.mxu0 %v191
    %v839 = vpop.f32.mrf.mxu0
    %v840 = vadd.f32 0.0, %v839
    %v841 = vpop.f32.mrf.mxu0
    %842 = vmatprep.mubr.f32.mxu0 0.0
    %843 = vmatmul.mubr.f32.gmra.mxu0 %v194
    %v844 = vpop.f32.mrf.mxu0
    %v845 = vadd.f32 0.0, %v844
    %v846 = vpop.f32.mrf.mxu0
    %847 = vmatprep.mubr.f32.mxu0 0.0
    %848 = vmatmul.mubr.f32.gmra.mxu0 %v197
    %v849 = vpop.f32.mrf.mxu0
    %v850 = vadd.f32 0.0, %v849
    %v851 = vpop.f32.mrf.mxu0
    %852 = vmatprep.mubr.f32.mxu0 0.0
    %853 = vmatmul.mubr.f32.gmra.mxu0 %v200
    %v854 = vpop.f32.mrf.mxu0
    %v855 = vadd.f32 0.0, %v854
    %v856 = vpop.f32.mrf.mxu0
    %857 = vdwg.mxu0
    %860 = vrot.lane.b32.xlu0 %v850, 32
    %v861 = vpop.permute.xlu0 %860
    %862 = vrot.lane.b32.xlu0 %v855, 32
    %v863 = vpop.permute.xlu0 %862
    %v866 = vsel %vm295, %v840, %v861
    %v867 = vsel %vm295, %v845, %v863
    %v869 = vsel %vm298, %v866, 0
    %v872 = vsel %vm298, %v867, 0
    %874 = vmatprep.subr.mxu0 0.0
    %875 = vmatpush1.msra.mxu0 0.0
    %876 = vmatprep.subr.mxu0 0.0
    %877 = vmatpush1.msra.mxu0 0.0
    %878 = vmatprep.subr.mxu0 0.0
    %879 = vmatpush1.msra.mxu0 0.0
    %880 = vmatprep.subr.mxu0 0.0
    %881 = vmatpush1.msra.mxu0 0.0
    %882 = vmatprep.subr.mxu0 0.0
    %883 = vmatpush1.msra.mxu0 0.0
    %884 = vmatprep.subr.mxu0 0.0
    %885 = vmatpush1.msra.mxu0 0.0
    %886 = vmatprep.subr.mxu0 0.0
    %887 = vmatpush1.msra.mxu0 0.0
    %888 = vmatprep.subr.mxu0 0.0
    %889 = vmatpush1.msra.mxu0 0.0
    %890 = vmatprep.subr.mxu0 0.0
    %891 = vmatpush1.msra.mxu0 %v68
    %892 = vmatprep.subr.mxu0 0.0
    %893 = vmatpush1.msra.mxu0 %v67
    %894 = vmatprep.subr.mxu0 0.0
    %895 = vmatpush1.msra.mxu0 %v66
    %896 = vmatprep.subr.mxu0 0.0
    %897 = vmatpush1.msra.mxu0 %v65
    %898 = vmatprep.subr.mxu0 0.0
    %899 = vmatpush1.msra.mxu0 %v64
    %900 = vmatprep.subr.mxu0 0.0
    %901 = vmatpush1.msra.mxu0 %v63
    %902 = vmatprep.subr.mxu0 0.0
    %903 = vmatpush1.msra.mxu0 %v62
    %904 = vmatprep.subr.mxu0 0.0
    %905 = vmatpush1.msra.mxu0 %v61
    %906 = vmatprep.subr.mxu0 0.0
    %907 = vmatpush2.msra.mxu0 0.0
    %908 = vmatprep.subr.mxu0 0.0
    %909 = vmatpush2.msra.mxu0 0.0
    %910 = vmatprep.subr.mxu0 0.0
    %911 = vmatpush2.msra.mxu0 0.0
    %912 = vmatprep.subr.mxu0 0.0
    %913 = vmatpush2.msra.mxu0 0.0
    %914 = vmatprep.subr.mxu0 0.0
    %915 = vmatpush2.msra.mxu0 0.0
    %916 = vmatprep.subr.mxu0 0.0
    %917 = vmatpush2.msra.mxu0 0.0
    %918 = vmatprep.subr.mxu0 0.0
    %919 = vmatpush2.msra.mxu0 0.0
    %920 = vmatprep.subr.mxu0 0.0
    %921 = vmatpush2.msra.mxu0 0.0
    %922 = vmatprep.subr.mxu0 0.0
    %923 = vmatpush2.msra.mxu0 0.0
    %924 = vmatprep.subr.mxu0 0.0
    %925 = vmatpush2.msra.mxu0 0.0
    %926 = vmatprep.subr.mxu0 0.0
    %927 = vmatpush2.msra.mxu0 0.0
    %928 = vmatprep.subr.mxu0 0.0
    %929 = vmatpush2.msra.mxu0 0.0
    %930 = vmatprep.subr.mxu0 0.0
    %931 = vmatpush2.msra.mxu0 0.0
    %932 = vmatprep.subr.mxu0 0.0
    %933 = vmatpush2.msra.mxu0 0.0
    %934 = vmatprep.subr.mxu0 0.0
    %935 = vmatpush2.msra.mxu0 0.0
    %936 = vmatprep.subr.mxu0 0.0
    %937 = vmatpush2.msra.mxu0 0.0
    %938 = vmatprep.mubr.f32.mxu0 0.0
    %939 = vmatmul.mubr.f32.gmra.mxu0 %v869
    %v940 = vpop.f32.mrf.mxu0
    %v941 = vadd.f32 %v181, %v940
    %v942 = vpop.f32.mrf.mxu0
    %943 = vmatprep.mubr.f32.mxu0 0.0
    %944 = vmatmul.mubr.f32.gmra.mxu0 %v872
    %v945 = vpop.f32.mrf.mxu0
    %v946 = vadd.f32 %v186, %v945
    %v947 = vpop.f32.mrf.mxu0
    %948 = vdwg.mxu0
    %v949 = vmul.f32 %v941, 0.01
    %v950 = vmul.f32 %v946, 0.01
    %v951 = vmax.f32 %v941, %v949
    %v952 = vmax.f32 %v946, %v950
    %953 = vmatprep.subr.mxu0 0.0
    %954 = vmatpush1.msra.mxu0 0.0
    %955 = vmatprep.subr.mxu0 0.0
    %956 = vmatpush1.msra.mxu0 0.0
    %957 = vmatprep.subr.mxu0 0.0
    %958 = vmatpush1.msra.mxu0 0.0
    %959 = vmatprep.subr.mxu0 0.0
    %960 = vmatpush1.msra.mxu0 0.0
    %961 = vmatprep.subr.mxu0 0.0
    %962 = vmatpush1.msra.mxu0 0.0
    %963 = vmatprep.subr.mxu0 0.0
    %964 = vmatpush1.msra.mxu0 0.0
    %965 = vmatprep.subr.mxu0 0.0
    %966 = vmatpush1.msra.mxu0 0.0
    %967 = vmatprep.subr.mxu0 0.0
    %968 = vmatpush1.msra.mxu0 0.0
    %969 = vmatprep.subr.mxu0 0.0
    %970 = vmatpush1.msra.mxu0 0.0
    %971 = vmatprep.subr.mxu0 0.0
    %972 = vmatpush1.msra.mxu0 0.0
    %973 = vmatprep.subr.mxu0 0.0
    %974 = vmatpush1.msra.mxu0 0.0
    %975 = vmatprep.subr.mxu0 0.0
    %976 = vmatpush1.msra.mxu0 0.0
    %977 = vmatprep.subr.mxu0 0.0
    %978 = vmatpush1.msra.mxu0 0.0
    %979 = vmatprep.subr.mxu0 0.0
    %980 = vmatpush1.msra.mxu0 0.0
    %981 = vmatprep.subr.mxu0 0.0
    %982 = vmatpush1.msra.mxu0 %v952
    %983 = vmatprep.subr.mxu0 0.0
    %984 = vmatpush1.msra.mxu0 %v951
    %985 = vmatprep.subr.mxu0 0.0
    %986 = vmatpush2.msra.mxu0 0.0
    %987 = vmatprep.subr.mxu0 0.0
    %988 = vmatpush2.msra.mxu0 0.0
    %989 = vmatprep.subr.mxu0 0.0
    %990 = vmatpush2.msra.mxu0 0.0
    %991 = vmatprep.subr.mxu0 0.0
    %992 = vmatpush2.msra.mxu0 0.0
    %993 = vmatprep.subr.mxu0 0.0
    %994 = vmatpush2.msra.mxu0 0.0
    %995 = vmatprep.subr.mxu0 0.0
    %996 = vmatpush2.msra.mxu0 0.0
    %997 = vmatprep.subr.mxu0 0.0
    %998 = vmatpush2.msra.mxu0 0.0
    %999 = vmatprep.subr.mxu0 0.0
    %1000 = vmatpush2.msra.mxu0 0.0
    %1001 = vmatprep.subr.mxu0 0.0
    %1002 = vmatpush2.msra.mxu0 0.0
    %1003 = vmatprep.subr.mxu0 0.0
    %1004 = vmatpush2.msra.mxu0 0.0
    %1005 = vmatprep.subr.mxu0 0.0
    %1006 = vmatpush2.msra.mxu0 0.0
    %1007 = vmatprep.subr.mxu0 0.0
    %1008 = vmatpush2.msra.mxu0 0.0
    %1009 = vmatprep.subr.mxu0 0.0
    %1010 = vmatpush2.msra.mxu0 0.0
    %1011 = vmatprep.subr.mxu0 0.0
    %1012 = vmatpush2.msra.mxu0 0.0
    %1013 = vmatprep.subr.mxu0 0.0
    %1014 = vmatpush2.msra.mxu0 0.0
    %1015 = vmatprep.subr.mxu0 0.0
    %1016 = vmatpush2.msra.mxu0 0.0
    %1017 = vmatprep.mubr.f32.mxu0 0.0
    %1018 = vmatmul.mubr.f32.gmra.mxu0 %v386
    %v1019 = vpop.f32.mrf.mxu0
    %v1020 = vadd.f32 0.0, %v1019
    %v1021 = vpop.f32.mrf.mxu0
    %1022 = vdwg.mxu0
    %v1024 = vsel %vm110, %v772, 0
    %1026 = vmatprep.subr.mxu0 0.0
    %1027 = vmatpush1.msra.mxu0 0.0
    %1028 = vmatprep.subr.mxu0 0.0
    %1029 = vmatpush1.msra.mxu0 0.0
    %1030 = vmatprep.subr.mxu0 0.0
    %1031 = vmatpush1.msra.mxu0 0.0
    %1032 = vmatprep.subr.mxu0 0.0
    %1033 = vmatpush1.msra.mxu0 0.0
    %1034 = vmatprep.subr.mxu0 0.0
    %1035 = vmatpush1.msra.mxu0 0.0
    %1036 = vmatprep.subr.mxu0 0.0
    %1037 = vmatpush1.msra.mxu0 0.0
    %1038 = vmatprep.subr.mxu0 0.0
    %1039 = vmatpush1.msra.mxu0 0.0
    %1040 = vmatprep.subr.mxu0 0.0
    %1041 = vmatpush1.msra.mxu0 0.0
    %1042 = vmatprep.subr.mxu0 0.0
    %1043 = vmatpush1.msra.mxu0 0.0
    %1044 = vmatprep.subr.mxu0 0.0
    %1045 = vmatpush1.msra.mxu0 0.0
    %1046 = vmatprep.subr.mxu0 0.0
    %1047 = vmatpush1.msra.mxu0 0.0
    %1048 = vmatprep.subr.mxu0 0.0
    %1049 = vmatpush1.msra.mxu0 0.0
    %1050 = vmatprep.subr.mxu0 0.0
    %1051 = vmatpush1.msra.mxu0 0.0
    %1052 = vmatprep.subr.mxu0 0.0
    %1053 = vmatpush1.msra.mxu0 0.0
    %1054 = vmatprep.subr.mxu0 0.0
    %1055 = vmatpush1.msra.mxu0 0.0
    %1056 = vmatprep.subr.mxu0 0.0
    %1057 = vmatpush1.msra.mxu0 %v1024
    %1058 = vmatprep.subr.mxu0 0.0
    %1059 = vmatpush2.msra.mxu0 0.0
    %1060 = vmatprep.subr.mxu0 0.0
    %1061 = vmatpush2.msra.mxu0 0.0
    %1062 = vmatprep.subr.mxu0 0.0
    %1063 = vmatpush2.msra.mxu0 0.0
    %1064 = vmatprep.subr.mxu0 0.0
    %1065 = vmatpush2.msra.mxu0 0.0
    %1066 = vmatprep.subr.mxu0 0.0
    %1067 = vmatpush2.msra.mxu0 0.0
    %1068 = vmatprep.subr.mxu0 0.0
    %1069 = vmatpush2.msra.mxu0 0.0
    %1070 = vmatprep.subr.mxu0 0.0
    %1071 = vmatpush2.msra.mxu0 0.0
    %1072 = vmatprep.subr.mxu0 0.0
    %1073 = vmatpush2.msra.mxu0 0.0
    %1074 = vmatprep.subr.mxu0 0.0
    %1075 = vmatpush2.msra.mxu0 0.0
    %1076 = vmatprep.subr.mxu0 0.0
    %1077 = vmatpush2.msra.mxu0 0.0
    %1078 = vmatprep.subr.mxu0 0.0
    %1079 = vmatpush2.msra.mxu0 0.0
    %1080 = vmatprep.subr.mxu0 0.0
    %1081 = vmatpush2.msra.mxu0 0.0
    %1082 = vmatprep.subr.mxu0 0.0
    %1083 = vmatpush2.msra.mxu0 0.0
    %1084 = vmatprep.subr.mxu0 0.0
    %1085 = vmatpush2.msra.mxu0 0.0
    %1086 = vmatprep.subr.mxu0 0.0
    %1087 = vmatpush2.msra.mxu0 0.0
    %1088 = vmatprep.subr.mxu0 0.0
    %1089 = vmatpush2.msra.mxu0 0.0
    %1090 = vmatprep.mubr.f32.mxu0 0.0
    %1091 = vmatmul.mubr.f32.gmra.mxu0 %v459
    %v1092 = vpop.f32.mrf.mxu0
    %v1093 = vadd.f32 0.0, %v1092
    %v1094 = vpop.f32.mrf.mxu0
    %1095 = vdwg.mxu0
    %1097 = vrot.lane.b32.xlu0 %v1020, 32
    %v1098 = vpop.permute.xlu0 %1097
    %1101 = vrot.lane.b32.xlu0 %v1093, 64
    %v1102 = vpop.permute.xlu0 %1101
    %v1104 = vsel %vm295, %v619, %v1098
    %v1105 = vsel %vm298, %v1104, %v1102
    %v1107 = vsel %vm544, %v1105, 0
    %1109 = vmatprep.subr.mxu0 0.0
    %1110 = vmatpush1.msra.mxu0 0.0
    %1111 = vmatprep.subr.mxu0 0.0
    %1112 = vmatpush1.msra.mxu0 0.0
    %1113 = vmatprep.subr.mxu0 0.0
    %1114 = vmatpush1.msra.mxu0 0.0
    %1115 = vmatprep.subr.mxu0 0.0
    %1116 = vmatpush1.msra.mxu0 0.0
    %1117 = vmatprep.subr.mxu0 0.0
    %1118 = vmatpush1.msra.mxu0 %v80
    %1119 = vmatprep.subr.mxu0 0.0
    %1120 = vmatpush1.msra.mxu0 %v79
    %1121 = vmatprep.subr.mxu0 0.0
    %1122 = vmatpush1.msra.mxu0 %v78
    %1123 = vmatprep.subr.mxu0 0.0
    %1124 = vmatpush1.msra.mxu0 %v77
    %1125 = vmatprep.subr.mxu0 0.0
    %1126 = vmatpush1.msra.mxu0 %v76
    %1127 = vmatprep.subr.mxu0 0.0
    %1128 = vmatpush1.msra.mxu0 %v75
    %1129 = vmatprep.subr.mxu0 0.0
    %1130 = vmatpush1.msra.mxu0 %v74
    %1131 = vmatprep.subr.mxu0 0.0
    %1132 = vmatpush1.msra.mxu0 %v73
    %1133 = vmatprep.subr.mxu0 0.0
    %1134 = vmatpush1.msra.mxu0 %v72
    %1135 = vmatprep.subr.mxu0 0.0
    %1136 = vmatpush1.msra.mxu0 %v71
    %1137 = vmatprep.subr.mxu0 0.0
    %1138 = vmatpush1.msra.mxu0 %v70
    %1139 = vmatprep.subr.mxu0 0.0
    %1140 = vmatpush1.msra.mxu0 %v69
    %1141 = vmatprep.subr.mxu0 0.0
    %1142 = vmatpush2.msra.mxu0 0.0
    %1143 = vmatprep.subr.mxu0 0.0
    %1144 = vmatpush2.msra.mxu0 0.0
    %1145 = vmatprep.subr.mxu0 0.0
    %1146 = vmatpush2.msra.mxu0 0.0
    %1147 = vmatprep.subr.mxu0 0.0
    %1148 = vmatpush2.msra.mxu0 0.0
    %1149 = vmatprep.subr.mxu0 0.0
    %1150 = vmatpush2.msra.mxu0 0.0
    %1151 = vmatprep.subr.mxu0 0.0
    %1152 = vmatpush2.msra.mxu0 0.0
    %1153 = vmatprep.subr.mxu0 0.0
    %1154 = vmatpush2.msra.mxu0 0.0
    %1155 = vmatprep.subr.mxu0 0.0
    %1156 = vmatpush2.msra.mxu0 0.0
    %1157 = vmatprep.subr.mxu0 0.0
    %1158 = vmatpush2.msra.mxu0 0.0
    %1159 = vmatprep.subr.mxu0 0.0
    %1160 = vmatpush2.msra.mxu0 0.0
    %1161 = vmatprep.subr.mxu0 0.0
    %1162 = vmatpush2.msra.mxu0 0.0
    %1163 = vmatprep.subr.mxu0 0.0
    %1164 = vmatpush2.msra.mxu0 0.0
    %1165 = vmatprep.subr.mxu0 0.0
    %1166 = vmatpush2.msra.mxu0 0.0
    %1167 = vmatprep.subr.mxu0 0.0
    %1168 = vmatpush2.msra.mxu0 0.0
    %1169 = vmatprep.subr.mxu0 0.0
    %1170 = vmatpush2.msra.mxu0 0.0
    %1171 = vmatprep.subr.mxu0 0.0
    %1172 = vmatpush2.msra.mxu0 0.0
    %1173 = vmatprep.mubr.f32.mxu0 0.0
    %1174 = vmatmul.mubr.f32.gmra.mxu0 %v1107
    %v1175 = vpop.f32.mrf.mxu0
    %v1176 = vadd.f32 %v94, %v1175
    %v1177 = vpop.f32.mrf.mxu0
    %1178 = vdwg.mxu0
    %v1179 = vmul.f32 %v1176, 0.01
    %v1180 = vmax.f32 %v1176, %v1179
    %1181 = vmatprep.subr.mxu0 0.0
    %1182 = vmatpush1.msra.mxu0 0.0
    %1183 = vmatprep.subr.mxu0 0.0
    %1184 = vmatpush1.msra.mxu0 0.0
    %1185 = vmatprep.subr.mxu0 0.0
    %1186 = vmatpush1.msra.mxu0 0.0
    %1187 = vmatprep.subr.mxu0 0.0
    %1188 = vmatpush1.msra.mxu0 0.0
    %1189 = vmatprep.subr.mxu0 0.0
    %1190 = vmatpush1.msra.mxu0 0.0
    %1191 = vmatprep.subr.mxu0 0.0
    %1192 = vmatpush1.msra.mxu0 0.0
    %1193 = vmatprep.subr.mxu0 0.0
    %1194 = vmatpush1.msra.mxu0 0.0
    %1195 = vmatprep.subr.mxu0 0.0
    %1196 = vmatpush1.msra.mxu0 0.0
    %1197 = vmatprep.subr.mxu0 0.0
    %1198 = vmatpush1.msra.mxu0 0.0
    %1199 = vmatprep.subr.mxu0 0.0
    %1200 = vmatpush1.msra.mxu0 0.0
    %1201 = vmatprep.subr.mxu0 0.0
    %1202 = vmatpush1.msra.mxu0 0.0
    %1203 = vmatprep.subr.mxu0 0.0
    %1204 = vmatpush1.msra.mxu0 0.0
    %1205 = vmatprep.subr.mxu0 0.0
    %1206 = vmatpush1.msra.mxu0 0.0
    %1207 = vmatprep.subr.mxu0 0.0
    %1208 = vmatpush1.msra.mxu0 0.0
    %1209 = vmatprep.subr.mxu0 0.0
    %1210 = vmatpush1.msra.mxu0 0.0
    %1211 = vmatprep.subr.mxu0 0.0
    %1212 = vmatpush1.msra.mxu0 %v1180
    %1213 = vmatprep.subr.mxu0 0.0
    %1214 = vmatpush2.msra.mxu0 0.0
    %1215 = vmatprep.subr.mxu0 0.0
    %1216 = vmatpush2.msra.mxu0 0.0
    %1217 = vmatprep.subr.mxu0 0.0
    %1218 = vmatpush2.msra.mxu0 0.0
    %1219 = vmatprep.subr.mxu0 0.0
    %1220 = vmatpush2.msra.mxu0 0.0
    %1221 = vmatprep.subr.mxu0 0.0
    %1222 = vmatpush2.msra.mxu0 0.0
    %1223 = vmatprep.subr.mxu0 0.0
    %1224 = vmatpush2.msra.mxu0 0.0
    %1225 = vmatprep.subr.mxu0 0.0
    %1226 = vmatpush2.msra.mxu0 0.0
    %1227 = vmatprep.subr.mxu0 0.0
    %1228 = vmatpush2.msra.mxu0 0.0
    %1229 = vmatprep.subr.mxu0 0.0
    %1230 = vmatpush2.msra.mxu0 0.0
    %1231 = vmatprep.subr.mxu0 0.0
    %1232 = vmatpush2.msra.mxu0 0.0
    %1233 = vmatprep.subr.mxu0 0.0
    %1234 = vmatpush2.msra.mxu0 0.0
    %1235 = vmatprep.subr.mxu0 0.0
    %1236 = vmatpush2.msra.mxu0 0.0
    %1237 = vmatprep.subr.mxu0 0.0
    %1238 = vmatpush2.msra.mxu0 0.0
    %1239 = vmatprep.subr.mxu0 0.0
    %1240 = vmatpush2.msra.mxu0 0.0
    %1241 = vmatprep.subr.mxu0 0.0
    %1242 = vmatpush2.msra.mxu0 0.0
    %1243 = vmatprep.subr.mxu0 0.0
    %1244 = vmatpush2.msra.mxu0 0.0
    %1245 = vmatprep.mubr.f32.mxu0 0.0
    %1246 = vmatmul.mubr.f32.gmra.mxu0 %v621
    %v1247 = vpop.f32.mrf.mxu0
    %v1248 = vadd.f32 0.0, %v1247
    %v1249 = vpop.f32.mrf.mxu0
    %1250 = vdwg.mxu0
    %1252 = vrot.lane.b32.xlu0 %v1248, 32
    %v1253 = vpop.permute.xlu0 %1252
    %v1255 = vsel %vm295, %v772, %v1253
    %v1257 = vsel %vm298, %v1255, 0
    %1259 = vmatprep.subr.mxu0 0.0
    %1260 = vmatpush1.msra.mxu0 0.0
    %1261 = vmatprep.subr.mxu0 0.0
    %1262 = vmatpush1.msra.mxu0 0.0
    %1263 = vmatprep.subr.mxu0 0.0
    %1264 = vmatpush1.msra.mxu0 0.0
    %1265 = vmatprep.subr.mxu0 0.0
    %1266 = vmatpush1.msra.mxu0 0.0
    %1267 = vmatprep.subr.mxu0 0.0
    %1268 = vmatpush1.msra.mxu0 0.0
    %1269 = vmatprep.subr.mxu0 0.0
    %1270 = vmatpush1.msra.mxu0 0.0
    %1271 = vmatprep.subr.mxu0 0.0
    %1272 = vmatpush1.msra.mxu0 0.0
    %1273 = vmatprep.subr.mxu0 0.0
    %1274 = vmatpush1.msra.mxu0 0.0
    %1275 = vmatprep.subr.mxu0 0.0
    %1276 = vmatpush1.msra.mxu0 %v88
    %1277 = vmatprep.subr.mxu0 0.0
    %1278 = vmatpush1.msra.mxu0 %v87
    %1279 = vmatprep.subr.mxu0 0.0
    %1280 = vmatpush1.msra.mxu0 %v86
    %1281 = vmatprep.subr.mxu0 0.0
    %1282 = vmatpush1.msra.mxu0 %v85
    %1283 = vmatprep.subr.mxu0 0.0
    %1284 = vmatpush1.msra.mxu0 %v84
    %1285 = vmatprep.subr.mxu0 0.0
    %1286 = vmatpush1.msra.mxu0 %v83
    %1287 = vmatprep.subr.mxu0 0.0
    %1288 = vmatpush1.msra.mxu0 %v82
    %1289 = vmatprep.subr.mxu0 0.0
    %1290 = vmatpush1.msra.mxu0 %v81
    %1291 = vmatprep.subr.mxu0 0.0
    %1292 = vmatpush2.msra.mxu0 0.0
    %1293 = vmatprep.subr.mxu0 0.0
    %1294 = vmatpush2.msra.mxu0 0.0
    %1295 = vmatprep.subr.mxu0 0.0
    %1296 = vmatpush2.msra.mxu0 0.0
    %1297 = vmatprep.subr.mxu0 0.0
    %1298 = vmatpush2.msra.mxu0 0.0
    %1299 = vmatprep.subr.mxu0 0.0
    %1300 = vmatpush2.msra.mxu0 0.0
    %1301 = vmatprep.subr.mxu0 0.0
    %1302 = vmatpush2.msra.mxu0 0.0
    %1303 = vmatprep.subr.mxu0 0.0
    %1304 = vmatpush2.msra.mxu0 0.0
    %1305 = vmatprep.subr.mxu0 0.0
    %1306 = vmatpush2.msra.mxu0 0.0
    %1307 = vmatprep.subr.mxu0 0.0
    %1308 = vmatpush2.msra.mxu0 0.0
    %1309 = vmatprep.subr.mxu0 0.0
    %1310 = vmatpush2.msra.mxu0 0.0
    %1311 = vmatprep.subr.mxu0 0.0
    %1312 = vmatpush2.msra.mxu0 0.0
    %1313 = vmatprep.subr.mxu0 0.0
    %1314 = vmatpush2.msra.mxu0 0.0
    %1315 = vmatprep.subr.mxu0 0.0
    %1316 = vmatpush2.msra.mxu0 0.0
    %1317 = vmatprep.subr.mxu0 0.0
    %1318 = vmatpush2.msra.mxu0 0.0
    %1319 = vmatprep.subr.mxu0 0.0
    %1320 = vmatpush2.msra.mxu0 0.0
    %1321 = vmatprep.subr.mxu0 0.0
    %1322 = vmatpush2.msra.mxu0 0.0
    %1323 = vmatprep.mubr.f32.mxu0 0.0
    %1324 = vmatmul.mubr.f32.gmra.mxu0 %v1257
    %v1325 = vpop.f32.mrf.mxu0
    %v1326 = vadd.f32 %v98, %v1325
    %v1327 = vpop.f32.mrf.mxu0
    %1328 = vdwg.mxu0
    %v1329 = vmul.f32 %v1326, 0.01
    %v1330 = vmax.f32 %v1326, %v1329
    %1331 = vmatprep.subr.mxu0 0.0
    %1332 = vmatpush1.msra.mxu0 0.0
    %1333 = vmatprep.subr.mxu0 0.0
    %1334 = vmatpush1.msra.mxu0 0.0
    %1335 = vmatprep.subr.mxu0 0.0
    %1336 = vmatpush1.msra.mxu0 0.0
    %1337 = vmatprep.subr.mxu0 0.0
    %1338 = vmatpush1.msra.mxu0 0.0
    %1339 = vmatprep.subr.mxu0 0.0
    %1340 = vmatpush1.msra.mxu0 0.0
    %1341 = vmatprep.subr.mxu0 0.0
    %1342 = vmatpush1.msra.mxu0 0.0
    %1343 = vmatprep.subr.mxu0 0.0
    %1344 = vmatpush1.msra.mxu0 0.0
    %1345 = vmatprep.subr.mxu0 0.0
    %1346 = vmatpush1.msra.mxu0 0.0
    %1347 = vmatprep.subr.mxu0 0.0
    %1348 = vmatpush1.msra.mxu0 0.0
    %1349 = vmatprep.subr.mxu0 0.0
    %1350 = vmatpush1.msra.mxu0 0.0
    %1351 = vmatprep.subr.mxu0 0.0
    %1352 = vmatpush1.msra.mxu0 0.0
    %1353 = vmatprep.subr.mxu0 0.0
    %1354 = vmatpush1.msra.mxu0 0.0
    %1355 = vmatprep.subr.mxu0 0.0
    %1356 = vmatpush1.msra.mxu0 0.0
    %1357 = vmatprep.subr.mxu0 0.0
    %1358 = vmatpush1.msra.mxu0 0.0
    %1359 = vmatprep.subr.mxu0 0.0
    %1360 = vmatpush1.msra.mxu0 0.0
    %1361 = vmatprep.subr.mxu0 0.0
    %1362 = vmatpush1.msra.mxu0 %v1180
    %1363 = vmatprep.subr.mxu0 0.0
    %1364 = vmatpush2.msra.mxu0 0.0
    %1365 = vmatprep.subr.mxu0 0.0
    %1366 = vmatpush2.msra.mxu0 0.0
    %1367 = vmatprep.subr.mxu0 0.0
    %1368 = vmatpush2.msra.mxu0 0.0
    %1369 = vmatprep.subr.mxu0 0.0
    %1370 = vmatpush2.msra.mxu0 0.0
    %1371 = vmatprep.subr.mxu0 0.0
    %1372 = vmatpush2.msra.mxu0 0.0
    %1373 = vmatprep.subr.mxu0 0.0
    %1374 = vmatpush2.msra.mxu0 0.0
    %1375 = vmatprep.subr.mxu0 0.0
    %1376 = vmatpush2.msra.mxu0 0.0
    %1377 = vmatprep.subr.mxu0 0.0
    %1378 = vmatpush2.msra.mxu0 0.0
    %1379 = vmatprep.subr.mxu0 0.0
    %1380 = vmatpush2.msra.mxu0 0.0
    %1381 = vmatprep.subr.mxu0 0.0
    %1382 = vmatpush2.msra.mxu0 0.0
    %1383 = vmatprep.subr.mxu0 0.0
    %1384 = vmatpush2.msra.mxu0 0.0
    %1385 = vmatprep.subr.mxu0 0.0
    %1386 = vmatpush2.msra.mxu0 0.0
    %1387 = vmatprep.subr.mxu0 0.0
    %1388 = vmatpush2.msra.mxu0 0.0
    %1389 = vmatprep.subr.mxu0 0.0
    %1390 = vmatpush2.msra.mxu0 0.0
    %1391 = vmatprep.subr.mxu0 0.0
    %1392 = vmatpush2.msra.mxu0 0.0
    %1393 = vmatprep.subr.mxu0 0.0
    %1394 = vmatpush2.msra.mxu0 0.0
    %1395 = vmatprep.mubr.f32.mxu0 0.0
    %1396 = vmatmul.mubr.f32.gmra.mxu0 %v191
    %v1397 = vpop.f32.mrf.mxu0
    %v1398 = vadd.f32 0.0, %v1397
    %v1399 = vpop.f32.mrf.mxu0
    %1400 = vmatprep.mubr.f32.mxu0 0.0
    %1401 = vmatmul.mubr.f32.gmra.mxu0 %v194
    %v1402 = vpop.f32.mrf.mxu0
    %v1403 = vadd.f32 0.0, %v1402
    %v1404 = vpop.f32.mrf.mxu0
    %1405 = vmatprep.mubr.f32.mxu0 0.0
    %1406 = vmatmul.mubr.f32.gmra.mxu0 %v197
    %v1407 = vpop.f32.mrf.mxu0
    %v1408 = vadd.f32 0.0, %v1407
    %v1409 = vpop.f32.mrf.mxu0
    %1410 = vmatprep.mubr.f32.mxu0 0.0
    %1411 = vmatmul.mubr.f32.gmra.mxu0 %v200
    %v1412 = vpop.f32.mrf.mxu0
    %v1413 = vadd.f32 0.0, %v1412
    %v1414 = vpop.f32.mrf.mxu0
    %1415 = vdwg.mxu0
    %1418 = vrot.lane.b32.xlu0 %v1408, 32
    %v1419 = vpop.permute.xlu0 %1418
    %1420 = vrot.lane.b32.xlu0 %v1413, 32
    %v1421 = vpop.permute.xlu0 %1420
    %v1424 = vsel %vm295, %v1398, %v1419
    %v1425 = vsel %vm295, %v1403, %v1421
    %v1427 = vsel %vm298, %v1424, 0
    %v1430 = vsel %vm298, %v1425, 0
    %1432 = vmatprep.subr.mxu0 0.0
    %1433 = vmatpush1.msra.mxu0 0.0
    %1434 = vmatprep.subr.mxu0 0.0
    %1435 = vmatpush1.msra.mxu0 0.0
    %1436 = vmatprep.subr.mxu0 0.0
    %1437 = vmatpush1.msra.mxu0 0.0
    %1438 = vmatprep.subr.mxu0 0.0
    %1439 = vmatpush1.msra.mxu0 0.0
    %1440 = vmatprep.subr.mxu0 0.0
    %1441 = vmatpush1.msra.mxu0 0.0
    %1442 = vmatprep.subr.mxu0 0.0
    %1443 = vmatpush1.msra.mxu0 0.0
    %1444 = vmatprep.subr.mxu0 0.0
    %1445 = vmatpush1.msra.mxu0 0.0
    %1446 = vmatprep.subr.mxu0 0.0
    %1447 = vmatpush1.msra.mxu0 0.0
    %1448 = vmatprep.subr.mxu0 0.0
    %1449 = vmatpush1.msra.mxu0 %v68
    %1450 = vmatprep.subr.mxu0 0.0
    %1451 = vmatpush1.msra.mxu0 %v67
    %1452 = vmatprep.subr.mxu0 0.0
    %1453 = vmatpush1.msra.mxu0 %v66
    %1454 = vmatprep.subr.mxu0 0.0
    %1455 = vmatpush1.msra.mxu0 %v65
    %1456 = vmatprep.subr.mxu0 0.0
    %1457 = vmatpush1.msra.mxu0 %v64
    %1458 = vmatprep.subr.mxu0 0.0
    %1459 = vmatpush1.msra.mxu0 %v63
    %1460 = vmatprep.subr.mxu0 0.0
    %1461 = vmatpush1.msra.mxu0 %v62
    %1462 = vmatprep.subr.mxu0 0.0
    %1463 = vmatpush1.msra.mxu0 %v61
    %1464 = vmatprep.subr.mxu0 0.0
    %1465 = vmatpush2.msra.mxu0 0.0
    %1466 = vmatprep.subr.mxu0 0.0
    %1467 = vmatpush2.msra.mxu0 0.0
    %1468 = vmatprep.subr.mxu0 0.0
    %1469 = vmatpush2.msra.mxu0 0.0
    %1470 = vmatprep.subr.mxu0 0.0
    %1471 = vmatpush2.msra.mxu0 0.0
    %1472 = vmatprep.subr.mxu0 0.0
    %1473 = vmatpush2.msra.mxu0 0.0
    %1474 = vmatprep.subr.mxu0 0.0
    %1475 = vmatpush2.msra.mxu0 0.0
    %1476 = vmatprep.subr.mxu0 0.0
    %1477 = vmatpush2.msra.mxu0 0.0
    %1478 = vmatprep.subr.mxu0 0.0
    %1479 = vmatpush2.msra.mxu0 0.0
    %1480 = vmatprep.subr.mxu0 0.0
    %1481 = vmatpush2.msra.mxu0 0.0
    %1482 = vmatprep.subr.mxu0 0.0
    %1483 = vmatpush2.msra.mxu0 0.0
    %1484 = vmatprep.subr.mxu0 0.0
    %1485 = vmatpush2.msra.mxu0 0.0
    %1486 = vmatprep.subr.mxu0 0.0
    %1487 = vmatpush2.msra.mxu0 0.0
    %1488 = vmatprep.subr.mxu0 0.0
    %1489 = vmatpush2.msra.mxu0 0.0
    %1490 = vmatprep.subr.mxu0 0.0
    %1491 = vmatpush2.msra.mxu0 0.0
    %1492 = vmatprep.subr.mxu0 0.0
    %1493 = vmatpush2.msra.mxu0 0.0
    %1494 = vmatprep.subr.mxu0 0.0
    %1495 = vmatpush2.msra.mxu0 0.0
    %1496 = vmatprep.mubr.f32.mxu0 0.0
    %1497 = vmatmul.mubr.f32.gmra.mxu0 %v1427
    %v1498 = vpop.f32.mrf.mxu0
    %v1499 = vadd.f32 %v181, %v1498
    %v1500 = vpop.f32.mrf.mxu0
    %1501 = vmatprep.mubr.f32.mxu0 0.0
    %1502 = vmatmul.mubr.f32.gmra.mxu0 %v1430
    %v1503 = vpop.f32.mrf.mxu0
    %v1504 = vadd.f32 %v186, %v1503
    %v1505 = vpop.f32.mrf.mxu0
    %1506 = vdwg.mxu0
    %v1507 = vmul.f32 %v1499, 0.01
    %v1508 = vmul.f32 %v1504, 0.01
    %v1509 = vmax.f32 %v1499, %v1507
    %v1510 = vmax.f32 %v1504, %v1508
    %1511 = vmatprep.subr.mxu0 0.0
    %1512 = vmatpush1.msra.mxu0 0.0
    %1513 = vmatprep.subr.mxu0 0.0
    %1514 = vmatpush1.msra.mxu0 0.0
    %1515 = vmatprep.subr.mxu0 0.0
    %1516 = vmatpush1.msra.mxu0 0.0
    %1517 = vmatprep.subr.mxu0 0.0
    %1518 = vmatpush1.msra.mxu0 0.0
    %1519 = vmatprep.subr.mxu0 0.0
    %1520 = vmatpush1.msra.mxu0 0.0
    %1521 = vmatprep.subr.mxu0 0.0
    %1522 = vmatpush1.msra.mxu0 0.0
    %1523 = vmatprep.subr.mxu0 0.0
    %1524 = vmatpush1.msra.mxu0 0.0
    %1525 = vmatprep.subr.mxu0 0.0
    %1526 = vmatpush1.msra.mxu0 0.0
    %1527 = vmatprep.subr.mxu0 0.0
    %1528 = vmatpush1.msra.mxu0 0.0
    %1529 = vmatprep.subr.mxu0 0.0
    %1530 = vmatpush1.msra.mxu0 0.0
    %1531 = vmatprep.subr.mxu0 0.0
    %1532 = vmatpush1.msra.mxu0 0.0
    %1533 = vmatprep.subr.mxu0 0.0
    %1534 = vmatpush1.msra.mxu0 0.0
    %1535 = vmatprep.subr.mxu0 0.0
    %1536 = vmatpush1.msra.mxu0 0.0
    %1537 = vmatprep.subr.mxu0 0.0
    %1538 = vmatpush1.msra.mxu0 0.0
    %1539 = vmatprep.subr.mxu0 0.0
    %1540 = vmatpush1.msra.mxu0 %v1510
    %1541 = vmatprep.subr.mxu0 0.0
    %1542 = vmatpush1.msra.mxu0 %v1509
    %1543 = vmatprep.subr.mxu0 0.0
    %1544 = vmatpush2.msra.mxu0 0.0
    %1545 = vmatprep.subr.mxu0 0.0
    %1546 = vmatpush2.msra.mxu0 0.0
    %1547 = vmatprep.subr.mxu0 0.0
    %1548 = vmatpush2.msra.mxu0 0.0
    %1549 = vmatprep.subr.mxu0 0.0
    %1550 = vmatpush2.msra.mxu0 0.0
    %1551 = vmatprep.subr.mxu0 0.0
    %1552 = vmatpush2.msra.mxu0 0.0
    %1553 = vmatprep.subr.mxu0 0.0
    %1554 = vmatpush2.msra.mxu0 0.0
    %1555 = vmatprep.subr.mxu0 0.0
    %1556 = vmatpush2.msra.mxu0 0.0
    %1557 = vmatprep.subr.mxu0 0.0
    %1558 = vmatpush2.msra.mxu0 0.0
    %1559 = vmatprep.subr.mxu0 0.0
    %1560 = vmatpush2.msra.mxu0 0.0
    %1561 = vmatprep.subr.mxu0 0.0
    %1562 = vmatpush2.msra.mxu0 0.0
    %1563 = vmatprep.subr.mxu0 0.0
    %1564 = vmatpush2.msra.mxu0 0.0
    %1565 = vmatprep.subr.mxu0 0.0
    %1566 = vmatpush2.msra.mxu0 0.0
    %1567 = vmatprep.subr.mxu0 0.0
    %1568 = vmatpush2.msra.mxu0 0.0
    %1569 = vmatprep.subr.mxu0 0.0
    %1570 = vmatpush2.msra.mxu0 0.0
    %1571 = vmatprep.subr.mxu0 0.0
    %1572 = vmatpush2.msra.mxu0 0.0
    %1573 = vmatprep.subr.mxu0 0.0
    %1574 = vmatpush2.msra.mxu0 0.0
    %1575 = vmatprep.mubr.f32.mxu0 0.0
    %1576 = vmatmul.mubr.f32.gmra.mxu0 %v386
    %v1577 = vpop.f32.mrf.mxu0
    %v1578 = vadd.f32 0.0, %v1577
    %v1579 = vpop.f32.mrf.mxu0
    %1580 = vdwg.mxu0
    %v1582 = vsel %vm110, %v1330, 0
    %1584 = vmatprep.subr.mxu0 0.0
    %1585 = vmatpush1.msra.mxu0 0.0
    %1586 = vmatprep.subr.mxu0 0.0
    %1587 = vmatpush1.msra.mxu0 0.0
    %1588 = vmatprep.subr.mxu0 0.0
    %1589 = vmatpush1.msra.mxu0 0.0
    %1590 = vmatprep.subr.mxu0 0.0
    %1591 = vmatpush1.msra.mxu0 0.0
    %1592 = vmatprep.subr.mxu0 0.0
    %1593 = vmatpush1.msra.mxu0 0.0
    %1594 = vmatprep.subr.mxu0 0.0
    %1595 = vmatpush1.msra.mxu0 0.0
    %1596 = vmatprep.subr.mxu0 0.0
    %1597 = vmatpush1.msra.mxu0 0.0
    %1598 = vmatprep.subr.mxu0 0.0
    %1599 = vmatpush1.msra.mxu0 0.0
    %1600 = vmatprep.subr.mxu0 0.0
    %1601 = vmatpush1.msra.mxu0 0.0
    %1602 = vmatprep.subr.mxu0 0.0
    %1603 = vmatpush1.msra.mxu0 0.0
    %1604 = vmatprep.subr.mxu0 0.0
    %1605 = vmatpush1.msra.mxu0 0.0
    %1606 = vmatprep.subr.mxu0 0.0
    %1607 = vmatpush1.msra.mxu0 0.0
    %1608 = vmatprep.subr.mxu0 0.0
    %1609 = vmatpush1.msra.mxu0 0.0
    %1610 = vmatprep.subr.mxu0 0.0
    %1611 = vmatpush1.msra.mxu0 0.0
    %1612 = vmatprep.subr.mxu0 0.0
    %1613 = vmatpush1.msra.mxu0 0.0
    %1614 = vmatprep.subr.mxu0 0.0
    %1615 = vmatpush1.msra.mxu0 %v1582
    %1616 = vmatprep.subr.mxu0 0.0
    %1617 = vmatpush2.msra.mxu0 0.0
    %1618 = vmatprep.subr.mxu0 0.0
    %1619 = vmatpush2.msra.mxu0 0.0
    %1620 = vmatprep.subr.mxu0 0.0
    %1621 = vmatpush2.msra.mxu0 0.0
    %1622 = vmatprep.subr.mxu0 0.0
    %1623 = vmatpush2.msra.mxu0 0.0
    %1624 = vmatprep.subr.mxu0 0.0
    %1625 = vmatpush2.msra.mxu0 0.0
    %1626 = vmatprep.subr.mxu0 0.0
    %1627 = vmatpush2.msra.mxu0 0.0
    %1628 = vmatprep.subr.mxu0 0.0
    %1629 = vmatpush2.msra.mxu0 0.0
    %1630 = vmatprep.subr.mxu0 0.0
    %1631 = vmatpush2.msra.mxu0 0.0
    %1632 = vmatprep.subr.mxu0 0.0
    %1633 = vmatpush2.msra.mxu0 0.0
    %1634 = vmatprep.subr.mxu0 0.0
    %1635 = vmatpush2.msra.mxu0 0.0
    %1636 = vmatprep.subr.mxu0 0.0
    %1637 = vmatpush2.msra.mxu0 0.0
    %1638 = vmatprep.subr.mxu0 0.0
    %1639 = vmatpush2.msra.mxu0 0.0
    %1640 = vmatprep.subr.mxu0 0.0
    %1641 = vmatpush2.msra.mxu0 0.0
    %1642 = vmatprep.subr.mxu0 0.0
    %1643 = vmatpush2.msra.mxu0 0.0
    %1644 = vmatprep.subr.mxu0 0.0
    %1645 = vmatpush2.msra.mxu0 0.0
    %1646 = vmatprep.subr.mxu0 0.0
    %1647 = vmatpush2.msra.mxu0 0.0
    %1648 = vmatprep.mubr.f32.mxu0 0.0
    %1649 = vmatmul.mubr.f32.gmra.mxu0 %v459
    %v1650 = vpop.f32.mrf.mxu0
    %v1651 = vadd.f32 0.0, %v1650
    %v1652 = vpop.f32.mrf.mxu0
    %1653 = vdwg.mxu0
    %1655 = vrot.lane.b32.xlu0 %v1578, 32
    %v1656 = vpop.permute.xlu0 %1655
    %1659 = vrot.lane.b32.xlu0 %v1651, 64
    %v1660 = vpop.permute.xlu0 %1659
    %v1662 = vsel %vm295, %v1180, %v1656
    %v1663 = vsel %vm298, %v1662, %v1660
    %v1665 = vsel %vm544, %v1663, 0
    %1667 = vmatprep.subr.mxu0 0.0
    %1668 = vmatpush1.msra.mxu0 0.0
    %1669 = vmatprep.subr.mxu0 0.0
    %1670 = vmatpush1.msra.mxu0 0.0
    %1671 = vmatprep.subr.mxu0 0.0
    %1672 = vmatpush1.msra.mxu0 0.0
    %1673 = vmatprep.subr.mxu0 0.0
    %1674 = vmatpush1.msra.mxu0 0.0
    %1675 = vmatprep.subr.mxu0 0.0
    %1676 = vmatpush1.msra.mxu0 %v80
    %1677 = vmatprep.subr.mxu0 0.0
    %1678 = vmatpush1.msra.mxu0 %v79
    %1679 = vmatprep.subr.mxu0 0.0
    %1680 = vmatpush1.msra.mxu0 %v78
    %1681 = vmatprep.subr.mxu0 0.0
    %1682 = vmatpush1.msra.mxu0 %v77
    %1683 = vmatprep.subr.mxu0 0.0
    %1684 = vmatpush1.msra.mxu0 %v76
    %1685 = vmatprep.subr.mxu0 0.0
    %1686 = vmatpush1.msra.mxu0 %v75
    %1687 = vmatprep.subr.mxu0 0.0
    %1688 = vmatpush1.msra.mxu0 %v74
    %1689 = vmatprep.subr.mxu0 0.0
    %1690 = vmatpush1.msra.mxu0 %v73
    %1691 = vmatprep.subr.mxu0 0.0
    %1692 = vmatpush1.msra.mxu0 %v72
    %1693 = vmatprep.subr.mxu0 0.0
    %1694 = vmatpush1.msra.mxu0 %v71
    %1695 = vmatprep.subr.mxu0 0.0
    %1696 = vmatpush1.msra.mxu0 %v70
    %1697 = vmatprep.subr.mxu0 0.0
    %1698 = vmatpush1.msra.mxu0 %v69
    %1699 = vmatprep.subr.mxu0 0.0
    %1700 = vmatpush2.msra.mxu0 0.0
    %1701 = vmatprep.subr.mxu0 0.0
    %1702 = vmatpush2.msra.mxu0 0.0
    %1703 = vmatprep.subr.mxu0 0.0
    %1704 = vmatpush2.msra.mxu0 0.0
    %1705 = vmatprep.subr.mxu0 0.0
    %1706 = vmatpush2.msra.mxu0 0.0
    %1707 = vmatprep.subr.mxu0 0.0
    %1708 = vmatpush2.msra.mxu0 0.0
    %1709 = vmatprep.subr.mxu0 0.0
    %1710 = vmatpush2.msra.mxu0 0.0
    %1711 = vmatprep.subr.mxu0 0.0
    %1712 = vmatpush2.msra.mxu0 0.0
    %1713 = vmatprep.subr.mxu0 0.0
    %1714 = vmatpush2.msra.mxu0 0.0
    %1715 = vmatprep.subr.mxu0 0.0
    %1716 = vmatpush2.msra.mxu0 0.0
    %1717 = vmatprep.subr.mxu0 0.0
    %1718 = vmatpush2.msra.mxu0 0.0
    %1719 = vmatprep.subr.mxu0 0.0
    %1720 = vmatpush2.msra.mxu0 0.0
    %1721 = vmatprep.subr.mxu0 0.0
    %1722 = vmatpush2.msra.mxu0 0.0
    %1723 = vmatprep.subr.mxu0 0.0
    %1724 = vmatpush2.msra.mxu0 0.0
    %1725 = vmatprep.subr.mxu0 0.0
    %1726 = vmatpush2.msra.mxu0 0.0
    %1727 = vmatprep.subr.mxu0 0.0
    %1728 = vmatpush2.msra.mxu0 0.0
    %1729 = vmatprep.subr.mxu0 0.0
    %1730 = vmatpush2.msra.mxu0 0.0
    %1731 = vmatprep.mubr.f32.mxu0 0.0
    %1732 = vmatmul.mubr.f32.gmra.mxu0 %v1665
    %v1733 = vpop.f32.mrf.mxu0
    %v1734 = vadd.f32 %v94, %v1733
    %v1735 = vpop.f32.mrf.mxu0
    %1736 = vdwg.mxu0
    %v1737 = vmul.f32 %v1734, 0.01
    %v1738 = vmax.f32 %v1734, %v1737
    %1739 = vmatprep.subr.mxu0 0.0
    %1740 = vmatpush1.msra.mxu0 0.0
    %1741 = vmatprep.subr.mxu0 0.0
    %1742 = vmatpush1.msra.mxu0 0.0
    %1743 = vmatprep.subr.mxu0 0.0
    %1744 = vmatpush1.msra.mxu0 0.0
    %1745 = vmatprep.subr.mxu0 0.0
    %1746 = vmatpush1.msra.mxu0 0.0
    %1747 = vmatprep.subr.mxu0 0.0
    %1748 = vmatpush1.msra.mxu0 0.0
    %1749 = vmatprep.subr.mxu0 0.0
    %1750 = vmatpush1.msra.mxu0 0.0
    %1751 = vmatprep.subr.mxu0 0.0
    %1752 = vmatpush1.msra.mxu0 0.0
    %1753 = vmatprep.subr.mxu0 0.0
    %1754 = vmatpush1.msra.mxu0 0.0
    %1755 = vmatprep.subr.mxu0 0.0
    %1756 = vmatpush1.msra.mxu0 0.0
    %1757 = vmatprep.subr.mxu0 0.0
    %1758 = vmatpush1.msra.mxu0 0.0
    %1759 = vmatprep.subr.mxu0 0.0
    %1760 = vmatpush1.msra.mxu0 0.0
    %1761 = vmatprep.subr.mxu0 0.0
    %1762 = vmatpush1.msra.mxu0 0.0
    %1763 = vmatprep.subr.mxu0 0.0
    %1764 = vmatpush1.msra.mxu0 0.0
    %1765 = vmatprep.subr.mxu0 0.0
    %1766 = vmatpush1.msra.mxu0 0.0
    %1767 = vmatprep.subr.mxu0 0.0
    %1768 = vmatpush1.msra.mxu0 0.0
    %1769 = vmatprep.subr.mxu0 0.0
    %1770 = vmatpush1.msra.mxu0 %v1738
    %1771 = vmatprep.subr.mxu0 0.0
    %1772 = vmatpush2.msra.mxu0 0.0
    %1773 = vmatprep.subr.mxu0 0.0
    %1774 = vmatpush2.msra.mxu0 0.0
    %1775 = vmatprep.subr.mxu0 0.0
    %1776 = vmatpush2.msra.mxu0 0.0
    %1777 = vmatprep.subr.mxu0 0.0
    %1778 = vmatpush2.msra.mxu0 0.0
    %1779 = vmatprep.subr.mxu0 0.0
    %1780 = vmatpush2.msra.mxu0 0.0
    %1781 = vmatprep.subr.mxu0 0.0
    %1782 = vmatpush2.msra.mxu0 0.0
    %1783 = vmatprep.subr.mxu0 0.0
    %1784 = vmatpush2.msra.mxu0 0.0
    %1785 = vmatprep.subr.mxu0 0.0
    %1786 = vmatpush2.msra.mxu0 0.0
    %1787 = vmatprep.subr.mxu0 0.0
    %1788 = vmatpush2.msra.mxu0 0.0
    %1789 = vmatprep.subr.mxu0 0.0
    %1790 = vmatpush2.msra.mxu0 0.0
    %1791 = vmatprep.subr.mxu0 0.0
    %1792 = vmatpush2.msra.mxu0 0.0
    %1793 = vmatprep.subr.mxu0 0.0
    %1794 = vmatpush2.msra.mxu0 0.0
    %1795 = vmatprep.subr.mxu0 0.0
    %1796 = vmatpush2.msra.mxu0 0.0
    %1797 = vmatprep.subr.mxu0 0.0
    %1798 = vmatpush2.msra.mxu0 0.0
    %1799 = vmatprep.subr.mxu0 0.0
    %1800 = vmatpush2.msra.mxu0 0.0
    %1801 = vmatprep.subr.mxu0 0.0
    %1802 = vmatpush2.msra.mxu0 0.0
    %1803 = vmatprep.mubr.f32.mxu0 0.0
    %1804 = vmatmul.mubr.f32.gmra.mxu0 %v621
    %v1805 = vpop.f32.mrf.mxu0
    %v1806 = vadd.f32 0.0, %v1805
    %v1807 = vpop.f32.mrf.mxu0
    %1808 = vdwg.mxu0
    %1810 = vrot.lane.b32.xlu0 %v1806, 32
    %v1811 = vpop.permute.xlu0 %1810
    %v1813 = vsel %vm295, %v1330, %v1811
    %v1815 = vsel %vm298, %v1813, 0
    %1817 = vmatprep.subr.mxu0 0.0
    %1818 = vmatpush1.msra.mxu0 0.0
    %1819 = vmatprep.subr.mxu0 0.0
    %1820 = vmatpush1.msra.mxu0 0.0
    %1821 = vmatprep.subr.mxu0 0.0
    %1822 = vmatpush1.msra.mxu0 0.0
    %1823 = vmatprep.subr.mxu0 0.0
    %1824 = vmatpush1.msra.mxu0 0.0
    %1825 = vmatprep.subr.mxu0 0.0
    %1826 = vmatpush1.msra.mxu0 0.0
    %1827 = vmatprep.subr.mxu0 0.0
    %1828 = vmatpush1.msra.mxu0 0.0
    %1829 = vmatprep.subr.mxu0 0.0
    %1830 = vmatpush1.msra.mxu0 0.0
    %1831 = vmatprep.subr.mxu0 0.0
    %1832 = vmatpush1.msra.mxu0 0.0
    %1833 = vmatprep.subr.mxu0 0.0
    %1834 = vmatpush1.msra.mxu0 %v88
    %1835 = vmatprep.subr.mxu0 0.0
    %1836 = vmatpush1.msra.mxu0 %v87
    %1837 = vmatprep.subr.mxu0 0.0
    %1838 = vmatpush1.msra.mxu0 %v86
    %1839 = vmatprep.subr.mxu0 0.0
    %1840 = vmatpush1.msra.mxu0 %v85
    %1841 = vmatprep.subr.mxu0 0.0
    %1842 = vmatpush1.msra.mxu0 %v84
    %1843 = vmatprep.subr.mxu0 0.0
    %1844 = vmatpush1.msra.mxu0 %v83
    %1845 = vmatprep.subr.mxu0 0.0
    %1846 = vmatpush1.msra.mxu0 %v82
    %1847 = vmatprep.subr.mxu0 0.0
    %1848 = vmatpush1.msra.mxu0 %v81
    %1849 = vmatprep.subr.mxu0 0.0
    %1850 = vmatpush2.msra.mxu0 0.0
    %1851 = vmatprep.subr.mxu0 0.0
    %1852 = vmatpush2.msra.mxu0 0.0
    %1853 = vmatprep.subr.mxu0 0.0
    %1854 = vmatpush2.msra.mxu0 0.0
    %1855 = vmatprep.subr.mxu0 0.0
    %1856 = vmatpush2.msra.mxu0 0.0
    %1857 = vmatprep.subr.mxu0 0.0
    %1858 = vmatpush2.msra.mxu0 0.0
    %1859 = vmatprep.subr.mxu0 0.0
    %1860 = vmatpush2.msra.mxu0 0.0
    %1861 = vmatprep.subr.mxu0 0.0
    %1862 = vmatpush2.msra.mxu0 0.0
    %1863 = vmatprep.subr.mxu0 0.0
    %1864 = vmatpush2.msra.mxu0 0.0
    %1865 = vmatprep.subr.mxu0 0.0
    %1866 = vmatpush2.msra.mxu0 0.0
    %1867 = vmatprep.subr.mxu0 0.0
    %1868 = vmatpush2.msra.mxu0 0.0
    %1869 = vmatprep.subr.mxu0 0.0
    %1870 = vmatpush2.msra.mxu0 0.0
    %1871 = vmatprep.subr.mxu0 0.0
    %1872 = vmatpush2.msra.mxu0 0.0
    %1873 = vmatprep.subr.mxu0 0.0
    %1874 = vmatpush2.msra.mxu0 0.0
    %1875 = vmatprep.subr.mxu0 0.0
    %1876 = vmatpush2.msra.mxu0 0.0
    %1877 = vmatprep.subr.mxu0 0.0
    %1878 = vmatpush2.msra.mxu0 0.0
    %1879 = vmatprep.subr.mxu0 0.0
    %1880 = vmatpush2.msra.mxu0 0.0
    %1881 = vmatprep.mubr.f32.mxu0 0.0
    %1882 = vmatmul.mubr.f32.gmra.mxu0 %v1815
    %v1883 = vpop.f32.mrf.mxu0
    %v1884 = vadd.f32 %v98, %v1883
    %v1885 = vpop.f32.mrf.mxu0
    %1886 = vdwg.mxu0
    %v1887 = vmul.f32 %v1884, 0.01
    %v1888 = vmax.f32 %v1884, %v1887
    %1889 = vmatprep.subr.mxu0 0.0
    %1890 = vmatpush1.msra.mxu0 0.0
    %1891 = vmatprep.subr.mxu0 0.0
    %1892 = vmatpush1.msra.mxu0 0.0
    %1893 = vmatprep.subr.mxu0 0.0
    %1894 = vmatpush1.msra.mxu0 0.0
    %1895 = vmatprep.subr.mxu0 0.0
    %1896 = vmatpush1.msra.mxu0 0.0
    %1897 = vmatprep.subr.mxu0 0.0
    %1898 = vmatpush1.msra.mxu0 0.0
    %1899 = vmatprep.subr.mxu0 0.0
    %1900 = vmatpush1.msra.mxu0 0.0
    %1901 = vmatprep.subr.mxu0 0.0
    %1902 = vmatpush1.msra.mxu0 0.0
    %1903 = vmatprep.subr.mxu0 0.0
    %1904 = vmatpush1.msra.mxu0 0.0
    %1905 = vmatprep.subr.mxu0 0.0
    %1906 = vmatpush1.msra.mxu0 0.0
    %1907 = vmatprep.subr.mxu0 0.0
    %1908 = vmatpush1.msra.mxu0 0.0
    %1909 = vmatprep.subr.mxu0 0.0
    %1910 = vmatpush1.msra.mxu0 0.0
    %1911 = vmatprep.subr.mxu0 0.0
    %1912 = vmatpush1.msra.mxu0 0.0
    %1913 = vmatprep.subr.mxu0 0.0
    %1914 = vmatpush1.msra.mxu0 0.0
    %1915 = vmatprep.subr.mxu0 0.0
    %1916 = vmatpush1.msra.mxu0 0.0
    %1917 = vmatprep.subr.mxu0 0.0
    %1918 = vmatpush1.msra.mxu0 0.0
    %1919 = vmatprep.subr.mxu0 0.0
    %1920 = vmatpush1.msra.mxu0 %v1738
    %1921 = vmatprep.subr.mxu0 0.0
    %1922 = vmatpush2.msra.mxu0 0.0
    %1923 = vmatprep.subr.mxu0 0.0
    %1924 = vmatpush2.msra.mxu0 0.0
    %1925 = vmatprep.subr.mxu0 0.0
    %1926 = vmatpush2.msra.mxu0 0.0
    %1927 = vmatprep.subr.mxu0 0.0
    %1928 = vmatpush2.msra.mxu0 0.0
    %1929 = vmatprep.subr.mxu0 0.0
    %1930 = vmatpush2.msra.mxu0 0.0
    %1931 = vmatprep.subr.mxu0 0.0
    %1932 = vmatpush2.msra.mxu0 0.0
    %1933 = vmatprep.subr.mxu0 0.0
    %1934 = vmatpush2.msra.mxu0 0.0
    %1935 = vmatprep.subr.mxu0 0.0
    %1936 = vmatpush2.msra.mxu0 0.0
    %1937 = vmatprep.subr.mxu0 0.0
    %1938 = vmatpush2.msra.mxu0 0.0
    %1939 = vmatprep.subr.mxu0 0.0
    %1940 = vmatpush2.msra.mxu0 0.0
    %1941 = vmatprep.subr.mxu0 0.0
    %1942 = vmatpush2.msra.mxu0 0.0
    %1943 = vmatprep.subr.mxu0 0.0
    %1944 = vmatpush2.msra.mxu0 0.0
    %1945 = vmatprep.subr.mxu0 0.0
    %1946 = vmatpush2.msra.mxu0 0.0
    %1947 = vmatprep.subr.mxu0 0.0
    %1948 = vmatpush2.msra.mxu0 0.0
    %1949 = vmatprep.subr.mxu0 0.0
    %1950 = vmatpush2.msra.mxu0 0.0
    %1951 = vmatprep.subr.mxu0 0.0
    %1952 = vmatpush2.msra.mxu0 0.0
    %1953 = vmatprep.mubr.f32.mxu0 0.0
    %1954 = vmatmul.mubr.f32.gmra.mxu0 %v191
    %v1955 = vpop.f32.mrf.mxu0
    %v1956 = vadd.f32 0.0, %v1955
    %v1957 = vpop.f32.mrf.mxu0
    %1958 = vmatprep.mubr.f32.mxu0 0.0
    %1959 = vmatmul.mubr.f32.gmra.mxu0 %v194
    %v1960 = vpop.f32.mrf.mxu0
    %v1961 = vadd.f32 0.0, %v1960
    %v1962 = vpop.f32.mrf.mxu0
    %1963 = vmatprep.mubr.f32.mxu0 0.0
    %1964 = vmatmul.mubr.f32.gmra.mxu0 %v197
    %v1965 = vpop.f32.mrf.mxu0
    %v1966 = vadd.f32 0.0, %v1965
    %v1967 = vpop.f32.mrf.mxu0
    %1968 = vmatprep.mubr.f32.mxu0 0.0
    %1969 = vmatmul.mubr.f32.gmra.mxu0 %v200
    %v1970 = vpop.f32.mrf.mxu0
    %v1971 = vadd.f32 0.0, %v1970
    %v1972 = vpop.f32.mrf.mxu0
    %1973 = vdwg.mxu0
    %1976 = vrot.lane.b32.xlu0 %v1966, 32
    %v1977 = vpop.permute.xlu0 %1976
    %1978 = vrot.lane.b32.xlu0 %v1971, 32
    %v1979 = vpop.permute.xlu0 %1978
    %v1982 = vsel %vm295, %v1956, %v1977
    %v1983 = vsel %vm295, %v1961, %v1979
    %v1985 = vsel %vm298, %v1982, 0
    %v1988 = vsel %vm298, %v1983, 0
    %1990 = vmatprep.subr.mxu0 0.0
    %1991 = vmatpush1.msra.mxu0 0.0
    %1992 = vmatprep.subr.mxu0 0.0
    %1993 = vmatpush1.msra.mxu0 0.0
    %1994 = vmatprep.subr.mxu0 0.0
    %1995 = vmatpush1.msra.mxu0 0.0
    %1996 = vmatprep.subr.mxu0 0.0
    %1997 = vmatpush1.msra.mxu0 0.0
    %1998 = vmatprep.subr.mxu0 0.0
    %1999 = vmatpush1.msra.mxu0 0.0
    %2000 = vmatprep.subr.mxu0 0.0
    %2001 = vmatpush1.msra.mxu0 0.0
    %2002 = vmatprep.subr.mxu0 0.0
    %2003 = vmatpush1.msra.mxu0 0.0
    %2004 = vmatprep.subr.mxu0 0.0
    %2005 = vmatpush1.msra.mxu0 0.0
    %2006 = vmatprep.subr.mxu0 0.0
    %2007 = vmatpush1.msra.mxu0 %v68
    %2008 = vmatprep.subr.mxu0 0.0
    %2009 = vmatpush1.msra.mxu0 %v67
    %2010 = vmatprep.subr.mxu0 0.0
    %2011 = vmatpush1.msra.mxu0 %v66
    %2012 = vmatprep.subr.mxu0 0.0
    %2013 = vmatpush1.msra.mxu0 %v65
    %2014 = vmatprep.subr.mxu0 0.0
    %2015 = vmatpush1.msra.mxu0 %v64
    %2016 = vmatprep.subr.mxu0 0.0
    %2017 = vmatpush1.msra.mxu0 %v63
    %2018 = vmatprep.subr.mxu0 0.0
    %2019 = vmatpush1.msra.mxu0 %v62
    %2020 = vmatprep.subr.mxu0 0.0
    %2021 = vmatpush1.msra.mxu0 %v61
    %2022 = vmatprep.subr.mxu0 0.0
    %2023 = vmatpush2.msra.mxu0 0.0
    %2024 = vmatprep.subr.mxu0 0.0
    %2025 = vmatpush2.msra.mxu0 0.0
    %2026 = vmatprep.subr.mxu0 0.0
    %2027 = vmatpush2.msra.mxu0 0.0
    %2028 = vmatprep.subr.mxu0 0.0
    %2029 = vmatpush2.msra.mxu0 0.0
    %2030 = vmatprep.subr.mxu0 0.0
    %2031 = vmatpush2.msra.mxu0 0.0
    %2032 = vmatprep.subr.mxu0 0.0
    %2033 = vmatpush2.msra.mxu0 0.0
    %2034 = vmatprep.subr.mxu0 0.0
    %2035 = vmatpush2.msra.mxu0 0.0
    %2036 = vmatprep.subr.mxu0 0.0
    %2037 = vmatpush2.msra.mxu0 0.0
    %2038 = vmatprep.subr.mxu0 0.0
    %2039 = vmatpush2.msra.mxu0 0.0
    %2040 = vmatprep.subr.mxu0 0.0
    %2041 = vmatpush2.msra.mxu0 0.0
    %2042 = vmatprep.subr.mxu0 0.0
    %2043 = vmatpush2.msra.mxu0 0.0
    %2044 = vmatprep.subr.mxu0 0.0
    %2045 = vmatpush2.msra.mxu0 0.0
    %2046 = vmatprep.subr.mxu0 0.0
    %2047 = vmatpush2.msra.mxu0 0.0
    %2048 = vmatprep.subr.mxu0 0.0
    %2049 = vmatpush2.msra.mxu0 0.0
    %2050 = vmatprep.subr.mxu0 0.0
    %2051 = vmatpush2.msra.mxu0 0.0
    %2052 = vmatprep.subr.mxu0 0.0
    %2053 = vmatpush2.msra.mxu0 0.0
    %2054 = vmatprep.mubr.f32.mxu0 0.0
    %2055 = vmatmul.mubr.f32.gmra.mxu0 %v1985
    %v2056 = vpop.f32.mrf.mxu0
    %v2057 = vadd.f32 %v181, %v2056
    %v2058 = vpop.f32.mrf.mxu0
    %2059 = vmatprep.mubr.f32.mxu0 0.0
    %2060 = vmatmul.mubr.f32.gmra.mxu0 %v1988
    %v2061 = vpop.f32.mrf.mxu0
    %v2062 = vadd.f32 %v186, %v2061
    %v2063 = vpop.f32.mrf.mxu0
    %2064 = vdwg.mxu0
    %v2065 = vmul.f32 %v2057, 0.01
    %v2066 = vmul.f32 %v2062, 0.01
    %v2067 = vmax.f32 %v2057, %v2065
    %v2068 = vmax.f32 %v2062, %v2066
    %2069 = vmatprep.subr.mxu0 0.0
    %2070 = vmatpush1.msra.mxu0 0.0
    %2071 = vmatprep.subr.mxu0 0.0
    %2072 = vmatpush1.msra.mxu0 0.0
    %2073 = vmatprep.subr.mxu0 0.0
    %2074 = vmatpush1.msra.mxu0 0.0
    %2075 = vmatprep.subr.mxu0 0.0
    %2076 = vmatpush1.msra.mxu0 0.0
    %2077 = vmatprep.subr.mxu0 0.0
    %2078 = vmatpush1.msra.mxu0 0.0
    %2079 = vmatprep.subr.mxu0 0.0
    %2080 = vmatpush1.msra.mxu0 0.0
    %2081 = vmatprep.subr.mxu0 0.0
    %2082 = vmatpush1.msra.mxu0 0.0
    %2083 = vmatprep.subr.mxu0 0.0
    %2084 = vmatpush1.msra.mxu0 0.0
    %2085 = vmatprep.subr.mxu0 0.0
    %2086 = vmatpush1.msra.mxu0 0.0
    %2087 = vmatprep.subr.mxu0 0.0
    %2088 = vmatpush1.msra.mxu0 0.0
    %2089 = vmatprep.subr.mxu0 0.0
    %2090 = vmatpush1.msra.mxu0 0.0
    %2091 = vmatprep.subr.mxu0 0.0
    %2092 = vmatpush1.msra.mxu0 0.0
    %2093 = vmatprep.subr.mxu0 0.0
    %2094 = vmatpush1.msra.mxu0 0.0
    %2095 = vmatprep.subr.mxu0 0.0
    %2096 = vmatpush1.msra.mxu0 0.0
    %2097 = vmatprep.subr.mxu0 0.0
    %2098 = vmatpush1.msra.mxu0 %v2068
    %2099 = vmatprep.subr.mxu0 0.0
    %2100 = vmatpush1.msra.mxu0 %v2067
    %2101 = vmatprep.subr.mxu0 0.0
    %2102 = vmatpush2.msra.mxu0 0.0
    %2103 = vmatprep.subr.mxu0 0.0
    %2104 = vmatpush2.msra.mxu0 0.0
    %2105 = vmatprep.subr.mxu0 0.0
    %2106 = vmatpush2.msra.mxu0 0.0
    %2107 = vmatprep.subr.mxu0 0.0
    %2108 = vmatpush2.msra.mxu0 0.0
    %2109 = vmatprep.subr.mxu0 0.0
    %2110 = vmatpush2.msra.mxu0 0.0
    %2111 = vmatprep.subr.mxu0 0.0
    %2112 = vmatpush2.msra.mxu0 0.0
    %2113 = vmatprep.subr.mxu0 0.0
    %2114 = vmatpush2.msra.mxu0 0.0
    %2115 = vmatprep.subr.mxu0 0.0
    %2116 = vmatpush2.msra.mxu0 0.0
    %2117 = vmatprep.subr.mxu0 0.0
    %2118 = vmatpush2.msra.mxu0 0.0
    %2119 = vmatprep.subr.mxu0 0.0
    %2120 = vmatpush2.msra.mxu0 0.0
    %2121 = vmatprep.subr.mxu0 0.0
    %2122 = vmatpush2.msra.mxu0 0.0
    %2123 = vmatprep.subr.mxu0 0.0
    %2124 = vmatpush2.msra.mxu0 0.0
    %2125 = vmatprep.subr.mxu0 0.0
    %2126 = vmatpush2.msra.mxu0 0.0
    %2127 = vmatprep.subr.mxu0 0.0
    %2128 = vmatpush2.msra.mxu0 0.0
    %2129 = vmatprep.subr.mxu0 0.0
    %2130 = vmatpush2.msra.mxu0 0.0
    %2131 = vmatprep.subr.mxu0 0.0
    %2132 = vmatpush2.msra.mxu0 0.0
    %2133 = vmatprep.mubr.f32.mxu0 0.0
    %2134 = vmatmul.mubr.f32.gmra.mxu0 %v386
    %v2135 = vpop.f32.mrf.mxu0
    %v2136 = vadd.f32 0.0, %v2135
    %v2137 = vpop.f32.mrf.mxu0
    %2138 = vdwg.mxu0
    %v2140 = vsel %vm110, %v1888, 0
    %2142 = vmatprep.subr.mxu0 0.0
    %2143 = vmatpush1.msra.mxu0 0.0
    %2144 = vmatprep.subr.mxu0 0.0
    %2145 = vmatpush1.msra.mxu0 0.0
    %2146 = vmatprep.subr.mxu0 0.0
    %2147 = vmatpush1.msra.mxu0 0.0
    %2148 = vmatprep.subr.mxu0 0.0
    %2149 = vmatpush1.msra.mxu0 0.0
    %2150 = vmatprep.subr.mxu0 0.0
    %2151 = vmatpush1.msra.mxu0 0.0
    %2152 = vmatprep.subr.mxu0 0.0
    %2153 = vmatpush1.msra.mxu0 0.0
    %2154 = vmatprep.subr.mxu0 0.0
    %2155 = vmatpush1.msra.mxu0 0.0
    %2156 = vmatprep.subr.mxu0 0.0
    %2157 = vmatpush1.msra.mxu0 0.0
    %2158 = vmatprep.subr.mxu0 0.0
    %2159 = vmatpush1.msra.mxu0 0.0
    %2160 = vmatprep.subr.mxu0 0.0
    %2161 = vmatpush1.msra.mxu0 0.0
    %2162 = vmatprep.subr.mxu0 0.0
    %2163 = vmatpush1.msra.mxu0 0.0
    %2164 = vmatprep.subr.mxu0 0.0
    %2165 = vmatpush1.msra.mxu0 0.0
    %2166 = vmatprep.subr.mxu0 0.0
    %2167 = vmatpush1.msra.mxu0 0.0
    %2168 = vmatprep.subr.mxu0 0.0
    %2169 = vmatpush1.msra.mxu0 0.0
    %2170 = vmatprep.subr.mxu0 0.0
    %2171 = vmatpush1.msra.mxu0 0.0
    %2172 = vmatprep.subr.mxu0 0.0
    %2173 = vmatpush1.msra.mxu0 %v2140
    %2174 = vmatprep.subr.mxu0 0.0
    %2175 = vmatpush2.msra.mxu0 0.0
    %2176 = vmatprep.subr.mxu0 0.0
    %2177 = vmatpush2.msra.mxu0 0.0
    %2178 = vmatprep.subr.mxu0 0.0
    %2179 = vmatpush2.msra.mxu0 0.0
    %2180 = vmatprep.subr.mxu0 0.0
    %2181 = vmatpush2.msra.mxu0 0.0
    %2182 = vmatprep.subr.mxu0 0.0
    %2183 = vmatpush2.msra.mxu0 0.0
    %2184 = vmatprep.subr.mxu0 0.0
    %2185 = vmatpush2.msra.mxu0 0.0
    %2186 = vmatprep.subr.mxu0 0.0
    %2187 = vmatpush2.msra.mxu0 0.0
    %2188 = vmatprep.subr.mxu0 0.0
    %2189 = vmatpush2.msra.mxu0 0.0
    %2190 = vmatprep.subr.mxu0 0.0
    %2191 = vmatpush2.msra.mxu0 0.0
    %2192 = vmatprep.subr.mxu0 0.0
    %2193 = vmatpush2.msra.mxu0 0.0
    %2194 = vmatprep.subr.mxu0 0.0
    %2195 = vmatpush2.msra.mxu0 0.0
    %2196 = vmatprep.subr.mxu0 0.0
    %2197 = vmatpush2.msra.mxu0 0.0
    %2198 = vmatprep.subr.mxu0 0.0
    %2199 = vmatpush2.msra.mxu0 0.0
    %2200 = vmatprep.subr.mxu0 0.0
    %2201 = vmatpush2.msra.mxu0 0.0
    %2202 = vmatprep.subr.mxu0 0.0
    %2203 = vmatpush2.msra.mxu0 0.0
    %2204 = vmatprep.subr.mxu0 0.0
    %2205 = vmatpush2.msra.mxu0 0.0
    %2206 = vmatprep.mubr.f32.mxu0 0.0
    %2207 = vmatmul.mubr.f32.gmra.mxu0 %v459
    %v2208 = vpop.f32.mrf.mxu0
    %v2209 = vadd.f32 0.0, %v2208
    %v2210 = vpop.f32.mrf.mxu0
    %2211 = vdwg.mxu0
    %2213 = vrot.lane.b32.xlu0 %v2136, 32
    %v2214 = vpop.permute.xlu0 %2213
    %2217 = vrot.lane.b32.xlu0 %v2209, 64
    %v2218 = vpop.permute.xlu0 %2217
    %v2220 = vsel %vm295, %v1738, %v2214
    %v2221 = vsel %vm298, %v2220, %v2218
    %v2223 = vsel %vm544, %v2221, 0
    %2225 = vmatprep.subr.mxu0 0.0
    %2226 = vmatpush1.msra.mxu0 0.0
    %2227 = vmatprep.subr.mxu0 0.0
    %2228 = vmatpush1.msra.mxu0 0.0
    %2229 = vmatprep.subr.mxu0 0.0
    %2230 = vmatpush1.msra.mxu0 0.0
    %2231 = vmatprep.subr.mxu0 0.0
    %2232 = vmatpush1.msra.mxu0 0.0
    %2233 = vmatprep.subr.mxu0 0.0
    %2234 = vmatpush1.msra.mxu0 %v80
    %2235 = vmatprep.subr.mxu0 0.0
    %2236 = vmatpush1.msra.mxu0 %v79
    %2237 = vmatprep.subr.mxu0 0.0
    %2238 = vmatpush1.msra.mxu0 %v78
    %2239 = vmatprep.subr.mxu0 0.0
    %2240 = vmatpush1.msra.mxu0 %v77
    %2241 = vmatprep.subr.mxu0 0.0
    %2242 = vmatpush1.msra.mxu0 %v76
    %2243 = vmatprep.subr.mxu0 0.0
    %2244 = vmatpush1.msra.mxu0 %v75
    %2245 = vmatprep.subr.mxu0 0.0
    %2246 = vmatpush1.msra.mxu0 %v74
    %2247 = vmatprep.subr.mxu0 0.0
    %2248 = vmatpush1.msra.mxu0 %v73
    %2249 = vmatprep.subr.mxu0 0.0
    %2250 = vmatpush1.msra.mxu0 %v72
    %2251 = vmatprep.subr.mxu0 0.0
    %2252 = vmatpush1.msra.mxu0 %v71
    %2253 = vmatprep.subr.mxu0 0.0
    %2254 = vmatpush1.msra.mxu0 %v70
    %2255 = vmatprep.subr.mxu0 0.0
    %2256 = vmatpush1.msra.mxu0 %v69
    %2257 = vmatprep.subr.mxu0 0.0
    %2258 = vmatpush2.msra.mxu0 0.0
    %2259 = vmatprep.subr.mxu0 0.0
    %2260 = vmatpush2.msra.mxu0 0.0
    %2261 = vmatprep.subr.mxu0 0.0
    %2262 = vmatpush2.msra.mxu0 0.0
    %2263 = vmatprep.subr.mxu0 0.0
    %2264 = vmatpush2.msra.mxu0 0.0
    %2265 = vmatprep.subr.mxu0 0.0
    %2266 = vmatpush2.msra.mxu0 0.0
    %2267 = vmatprep.subr.mxu0 0.0
    %2268 = vmatpush2.msra.mxu0 0.0
    %2269 = vmatprep.subr.mxu0 0.0
    %2270 = vmatpush2.msra.mxu0 0.0
    %2271 = vmatprep.subr.mxu0 0.0
    %2272 = vmatpush2.msra.mxu0 0.0
    %2273 = vmatprep.subr.mxu0 0.0
    %2274 = vmatpush2.msra.mxu0 0.0
    %2275 = vmatprep.subr.mxu0 0.0
    %2276 = vmatpush2.msra.mxu0 0.0
    %2277 = vmatprep.subr.mxu0 0.0
    %2278 = vmatpush2.msra.mxu0 0.0
    %2279 = vmatprep.subr.mxu0 0.0
    %2280 = vmatpush2.msra.mxu0 0.0
    %2281 = vmatprep.subr.mxu0 0.0
    %2282 = vmatpush2.msra.mxu0 0.0
    %2283 = vmatprep.subr.mxu0 0.0
    %2284 = vmatpush2.msra.mxu0 0.0
    %2285 = vmatprep.subr.mxu0 0.0
    %2286 = vmatpush2.msra.mxu0 0.0
    %2287 = vmatprep.subr.mxu0 0.0
    %2288 = vmatpush2.msra.mxu0 0.0
    %2289 = vmatprep.mubr.f32.mxu0 0.0
    %2290 = vmatmul.mubr.f32.gmra.mxu0 %v2223
    %v2291 = vpop.f32.mrf.mxu0
    %v2292 = vadd.f32 %v94, %v2291
    %v2293 = vpop.f32.mrf.mxu0
    %2294 = vdwg.mxu0
    %v2295 = vmul.f32 %v2292, 0.01
    %v2296 = vmax.f32 %v2292, %v2295
    %2297 = vmatprep.subr.mxu0 0.0
    %2298 = vmatpush1.msra.mxu0 0.0
    %2299 = vmatprep.subr.mxu0 0.0
    %2300 = vmatpush1.msra.mxu0 0.0
    %2301 = vmatprep.subr.mxu0 0.0
    %2302 = vmatpush1.msra.mxu0 0.0
    %2303 = vmatprep.subr.mxu0 0.0
    %2304 = vmatpush1.msra.mxu0 0.0
    %2305 = vmatprep.subr.mxu0 0.0
    %2306 = vmatpush1.msra.mxu0 0.0
    %2307 = vmatprep.subr.mxu0 0.0
    %2308 = vmatpush1.msra.mxu0 0.0
    %2309 = vmatprep.subr.mxu0 0.0
    %2310 = vmatpush1.msra.mxu0 0.0
    %2311 = vmatprep.subr.mxu0 0.0
    %2312 = vmatpush1.msra.mxu0 0.0
    %2313 = vmatprep.subr.mxu0 0.0
    %2314 = vmatpush1.msra.mxu0 0.0
    %2315 = vmatprep.subr.mxu0 0.0
    %2316 = vmatpush1.msra.mxu0 0.0
    %2317 = vmatprep.subr.mxu0 0.0
    %2318 = vmatpush1.msra.mxu0 0.0
    %2319 = vmatprep.subr.mxu0 0.0
    %2320 = vmatpush1.msra.mxu0 0.0
    %2321 = vmatprep.subr.mxu0 0.0
    %2322 = vmatpush1.msra.mxu0 0.0
    %2323 = vmatprep.subr.mxu0 0.0
    %2324 = vmatpush1.msra.mxu0 0.0
    %2325 = vmatprep.subr.mxu0 0.0
    %2326 = vmatpush1.msra.mxu0 0.0
    %2327 = vmatprep.subr.mxu0 0.0
    %2328 = vmatpush1.msra.mxu0 %v2296
    %2329 = vmatprep.subr.mxu0 0.0
    %2330 = vmatpush2.msra.mxu0 0.0
    %2331 = vmatprep.subr.mxu0 0.0
    %2332 = vmatpush2.msra.mxu0 0.0
    %2333 = vmatprep.subr.mxu0 0.0
    %2334 = vmatpush2.msra.mxu0 0.0
    %2335 = vmatprep.subr.mxu0 0.0
    %2336 = vmatpush2.msra.mxu0 0.0
    %2337 = vmatprep.subr.mxu0 0.0
    %2338 = vmatpush2.msra.mxu0 0.0
    %2339 = vmatprep.subr.mxu0 0.0
    %2340 = vmatpush2.msra.mxu0 0.0
    %2341 = vmatprep.subr.mxu0 0.0
    %2342 = vmatpush2.msra.mxu0 0.0
    %2343 = vmatprep.subr.mxu0 0.0
    %2344 = vmatpush2.msra.mxu0 0.0
    %2345 = vmatprep.subr.mxu0 0.0
    %2346 = vmatpush2.msra.mxu0 0.0
    %2347 = vmatprep.subr.mxu0 0.0
    %2348 = vmatpush2.msra.mxu0 0.0
    %2349 = vmatprep.subr.mxu0 0.0
    %2350 = vmatpush2.msra.mxu0 0.0
    %2351 = vmatprep.subr.mxu0 0.0
    %2352 = vmatpush2.msra.mxu0 0.0
    %2353 = vmatprep.subr.mxu0 0.0
    %2354 = vmatpush2.msra.mxu0 0.0
    %2355 = vmatprep.subr.mxu0 0.0
    %2356 = vmatpush2.msra.mxu0 0.0
    %2357 = vmatprep.subr.mxu0 0.0
    %2358 = vmatpush2.msra.mxu0 0.0
    %2359 = vmatprep.subr.mxu0 0.0
    %2360 = vmatpush2.msra.mxu0 0.0
    %2361 = vmatprep.mubr.f32.mxu0 0.0
    %2362 = vmatmul.mubr.f32.gmra.mxu0 %v621
    %v2363 = vpop.f32.mrf.mxu0
    %v2364 = vadd.f32 0.0, %v2363
    %v2365 = vpop.f32.mrf.mxu0
    %2366 = vdwg.mxu0
    %2368 = vrot.lane.b32.xlu0 %v2364, 32
    %v2369 = vpop.permute.xlu0 %2368
    %v2371 = vsel %vm295, %v1888, %v2369
    %v2373 = vsel %vm298, %v2371, 0
    %2375 = vmatprep.subr.mxu0 0.0
    %2376 = vmatpush1.msra.mxu0 0.0
    %2377 = vmatprep.subr.mxu0 0.0
    %2378 = vmatpush1.msra.mxu0 0.0
    %2379 = vmatprep.subr.mxu0 0.0
    %2380 = vmatpush1.msra.mxu0 0.0
    %2381 = vmatprep.subr.mxu0 0.0
    %2382 = vmatpush1.msra.mxu0 0.0
    %2383 = vmatprep.subr.mxu0 0.0
    %2384 = vmatpush1.msra.mxu0 0.0
    %2385 = vmatprep.subr.mxu0 0.0
    %2386 = vmatpush1.msra.mxu0 0.0
    %2387 = vmatprep.subr.mxu0 0.0
    %2388 = vmatpush1.msra.mxu0 0.0
    %2389 = vmatprep.subr.mxu0 0.0
    %2390 = vmatpush1.msra.mxu0 0.0
    %2391 = vmatprep.subr.mxu0 0.0
    %2392 = vmatpush1.msra.mxu0 %v88
    %2393 = vmatprep.subr.mxu0 0.0
    %2394 = vmatpush1.msra.mxu0 %v87
    %2395 = vmatprep.subr.mxu0 0.0
    %2396 = vmatpush1.msra.mxu0 %v86
    %2397 = vmatprep.subr.mxu0 0.0
    %2398 = vmatpush1.msra.mxu0 %v85
    %2399 = vmatprep.subr.mxu0 0.0
    %2400 = vmatpush1.msra.mxu0 %v84
    %2401 = vmatprep.subr.mxu0 0.0
    %2402 = vmatpush1.msra.mxu0 %v83
    %2403 = vmatprep.subr.mxu0 0.0
    %2404 = vmatpush1.msra.mxu0 %v82
    %2405 = vmatprep.subr.mxu0 0.0
    %2406 = vmatpush1.msra.mxu0 %v81
    %2407 = vmatprep.subr.mxu0 0.0
    %2408 = vmatpush2.msra.mxu0 0.0
    %2409 = vmatprep.subr.mxu0 0.0
    %2410 = vmatpush2.msra.mxu0 0.0
    %2411 = vmatprep.subr.mxu0 0.0
    %2412 = vmatpush2.msra.mxu0 0.0
    %2413 = vmatprep.subr.mxu0 0.0
    %2414 = vmatpush2.msra.mxu0 0.0
    %2415 = vmatprep.subr.mxu0 0.0
    %2416 = vmatpush2.msra.mxu0 0.0
    %2417 = vmatprep.subr.mxu0 0.0
    %2418 = vmatpush2.msra.mxu0 0.0
    %2419 = vmatprep.subr.mxu0 0.0
    %2420 = vmatpush2.msra.mxu0 0.0
    %2421 = vmatprep.subr.mxu0 0.0
    %2422 = vmatpush2.msra.mxu0 0.0
    %2423 = vmatprep.subr.mxu0 0.0
    %2424 = vmatpush2.msra.mxu0 0.0
    %2425 = vmatprep.subr.mxu0 0.0
    %2426 = vmatpush2.msra.mxu0 0.0
    %2427 = vmatprep.subr.mxu0 0.0
    %2428 = vmatpush2.msra.mxu0 0.0
    %2429 = vmatprep.subr.mxu0 0.0
    %2430 = vmatpush2.msra.mxu0 0.0
    %2431 = vmatprep.subr.mxu0 0.0
    %2432 = vmatpush2.msra.mxu0 0.0
    %2433 = vmatprep.subr.mxu0 0.0
    %2434 = vmatpush2.msra.mxu0 0.0
    %2435 = vmatprep.subr.mxu0 0.0
    %2436 = vmatpush2.msra.mxu0 0.0
    %2437 = vmatprep.subr.mxu0 0.0
    %2438 = vmatpush2.msra.mxu0 0.0
    %2439 = vmatprep.mubr.f32.mxu0 0.0
    %2440 = vmatmul.mubr.f32.gmra.mxu0 %v2373
    %v2441 = vpop.f32.mrf.mxu0
    %v2442 = vadd.f32 %v98, %v2441
    %v2443 = vpop.f32.mrf.mxu0
    %2444 = vdwg.mxu0
    %v2445 = vmul.f32 %v2442, 0.01
    %v2446 = vmax.f32 %v2442, %v2445
    %2447 = vmatprep.subr.mxu0 0.0
    %2448 = vmatpush1.msra.mxu0 0.0
    %2449 = vmatprep.subr.mxu0 0.0
    %2450 = vmatpush1.msra.mxu0 0.0
    %2451 = vmatprep.subr.mxu0 0.0
    %2452 = vmatpush1.msra.mxu0 0.0
    %2453 = vmatprep.subr.mxu0 0.0
    %2454 = vmatpush1.msra.mxu0 0.0
    %2455 = vmatprep.subr.mxu0 0.0
    %2456 = vmatpush1.msra.mxu0 0.0
    %2457 = vmatprep.subr.mxu0 0.0
    %2458 = vmatpush1.msra.mxu0 0.0
    %2459 = vmatprep.subr.mxu0 0.0
    %2460 = vmatpush1.msra.mxu0 0.0
    %2461 = vmatprep.subr.mxu0 0.0
    %2462 = vmatpush1.msra.mxu0 0.0
    %2463 = vmatprep.subr.mxu0 0.0
    %2464 = vmatpush1.msra.mxu0 0.0
    %2465 = vmatprep.subr.mxu0 0.0
    %2466 = vmatpush1.msra.mxu0 0.0
    %2467 = vmatprep.subr.mxu0 0.0
    %2468 = vmatpush1.msra.mxu0 0.0
    %2469 = vmatprep.subr.mxu0 0.0
    %2470 = vmatpush1.msra.mxu0 0.0
    %2471 = vmatprep.subr.mxu0 0.0
    %2472 = vmatpush1.msra.mxu0 0.0
    %2473 = vmatprep.subr.mxu0 0.0
    %2474 = vmatpush1.msra.mxu0 0.0
    %2475 = vmatprep.subr.mxu0 0.0
    %2476 = vmatpush1.msra.mxu0 0.0
    %2477 = vmatprep.subr.mxu0 0.0
    %2478 = vmatpush1.msra.mxu0 %v2296
    %2479 = vmatprep.subr.mxu0 0.0
    %2480 = vmatpush2.msra.mxu0 0.0
    %2481 = vmatprep.subr.mxu0 0.0
    %2482 = vmatpush2.msra.mxu0 0.0
    %2483 = vmatprep.subr.mxu0 0.0
    %2484 = vmatpush2.msra.mxu0 0.0
    %2485 = vmatprep.subr.mxu0 0.0
    %2486 = vmatpush2.msra.mxu0 0.0
    %2487 = vmatprep.subr.mxu0 0.0
    %2488 = vmatpush2.msra.mxu0 0.0
    %2489 = vmatprep.subr.mxu0 0.0
    %2490 = vmatpush2.msra.mxu0 0.0
    %2491 = vmatprep.subr.mxu0 0.0
    %2492 = vmatpush2.msra.mxu0 0.0
    %2493 = vmatprep.subr.mxu0 0.0
    %2494 = vmatpush2.msra.mxu0 0.0
    %2495 = vmatprep.subr.mxu0 0.0
    %2496 = vmatpush2.msra.mxu0 0.0
    %2497 = vmatprep.subr.mxu0 0.0
    %2498 = vmatpush2.msra.mxu0 0.0
    %2499 = vmatprep.subr.mxu0 0.0
    %2500 = vmatpush2.msra.mxu0 0.0
    %2501 = vmatprep.subr.mxu0 0.0
    %2502 = vmatpush2.msra.mxu0 0.0
    %2503 = vmatprep.subr.mxu0 0.0
    %2504 = vmatpush2.msra.mxu0 0.0
    %2505 = vmatprep.subr.mxu0 0.0
    %2506 = vmatpush2.msra.mxu0 0.0
    %2507 = vmatprep.subr.mxu0 0.0
    %2508 = vmatpush2.msra.mxu0 0.0
    %2509 = vmatprep.subr.mxu0 0.0
    %2510 = vmatpush2.msra.mxu0 0.0
    %2511 = vmatprep.mubr.f32.mxu0 0.0
    %2512 = vmatmul.mubr.f32.gmra.mxu0 %v191
    %v2513 = vpop.f32.mrf.mxu0
    %v2514 = vadd.f32 0.0, %v2513
    %v2515 = vpop.f32.mrf.mxu0
    %2516 = vmatprep.mubr.f32.mxu0 0.0
    %2517 = vmatmul.mubr.f32.gmra.mxu0 %v194
    %v2518 = vpop.f32.mrf.mxu0
    %v2519 = vadd.f32 0.0, %v2518
    %v2520 = vpop.f32.mrf.mxu0
    %2521 = vmatprep.mubr.f32.mxu0 0.0
    %2522 = vmatmul.mubr.f32.gmra.mxu0 %v197
    %v2523 = vpop.f32.mrf.mxu0
    %v2524 = vadd.f32 0.0, %v2523
    %v2525 = vpop.f32.mrf.mxu0
    %2526 = vmatprep.mubr.f32.mxu0 0.0
    %2527 = vmatmul.mubr.f32.gmra.mxu0 %v200
    %v2528 = vpop.f32.mrf.mxu0
    %v2529 = vadd.f32 0.0, %v2528
    %v2530 = vpop.f32.mrf.mxu0
    %2531 = vdwg.mxu0
    %2534 = vrot.lane.b32.xlu0 %v2524, 32
    %v2535 = vpop.permute.xlu0 %2534
    %2536 = vrot.lane.b32.xlu0 %v2529, 32
    %v2537 = vpop.permute.xlu0 %2536
    %v2540 = vsel %vm295, %v2514, %v2535
    %v2541 = vsel %vm295, %v2519, %v2537
    %v2543 = vsel %vm298, %v2540, 0
    %v2546 = vsel %vm298, %v2541, 0
    %2548 = vmatprep.subr.mxu0 0.0
    %2549 = vmatpush1.msra.mxu0 0.0
    %2550 = vmatprep.subr.mxu0 0.0
    %2551 = vmatpush1.msra.mxu0 0.0
    %2552 = vmatprep.subr.mxu0 0.0
    %2553 = vmatpush1.msra.mxu0 0.0
    %2554 = vmatprep.subr.mxu0 0.0
    %2555 = vmatpush1.msra.mxu0 0.0
    %2556 = vmatprep.subr.mxu0 0.0
    %2557 = vmatpush1.msra.mxu0 0.0
    %2558 = vmatprep.subr.mxu0 0.0
    %2559 = vmatpush1.msra.mxu0 0.0
    %2560 = vmatprep.subr.mxu0 0.0
    %2561 = vmatpush1.msra.mxu0 0.0
    %2562 = vmatprep.subr.mxu0 0.0
    %2563 = vmatpush1.msra.mxu0 0.0
    %2564 = vmatprep.subr.mxu0 0.0
    %2565 = vmatpush1.msra.mxu0 %v68
    %2566 = vmatprep.subr.mxu0 0.0
    %2567 = vmatpush1.msra.mxu0 %v67
    %2568 = vmatprep.subr.mxu0 0.0
    %2569 = vmatpush1.msra.mxu0 %v66
    %2570 = vmatprep.subr.mxu0 0.0
    %2571 = vmatpush1.msra.mxu0 %v65
    %2572 = vmatprep.subr.mxu0 0.0
    %2573 = vmatpush1.msra.mxu0 %v64
    %2574 = vmatprep.subr.mxu0 0.0
    %2575 = vmatpush1.msra.mxu0 %v63
    %2576 = vmatprep.subr.mxu0 0.0
    %2577 = vmatpush1.msra.mxu0 %v62
    %2578 = vmatprep.subr.mxu0 0.0
    %2579 = vmatpush1.msra.mxu0 %v61
    %2580 = vmatprep.subr.mxu0 0.0
    %2581 = vmatpush2.msra.mxu0 0.0
    %2582 = vmatprep.subr.mxu0 0.0
    %2583 = vmatpush2.msra.mxu0 0.0
    %2584 = vmatprep.subr.mxu0 0.0
    %2585 = vmatpush2.msra.mxu0 0.0
    %2586 = vmatprep.subr.mxu0 0.0
    %2587 = vmatpush2.msra.mxu0 0.0
    %2588 = vmatprep.subr.mxu0 0.0
    %2589 = vmatpush2.msra.mxu0 0.0
    %2590 = vmatprep.subr.mxu0 0.0
    %2591 = vmatpush2.msra.mxu0 0.0
    %2592 = vmatprep.subr.mxu0 0.0
    %2593 = vmatpush2.msra.mxu0 0.0
    %2594 = vmatprep.subr.mxu0 0.0
    %2595 = vmatpush2.msra.mxu0 0.0
    %2596 = vmatprep.subr.mxu0 0.0
    %2597 = vmatpush2.msra.mxu0 0.0
    %2598 = vmatprep.subr.mxu0 0.0
    %2599 = vmatpush2.msra.mxu0 0.0
    %2600 = vmatprep.subr.mxu0 0.0
    %2601 = vmatpush2.msra.mxu0 0.0
    %2602 = vmatprep.subr.mxu0 0.0
    %2603 = vmatpush2.msra.mxu0 0.0
    %2604 = vmatprep.subr.mxu0 0.0
    %2605 = vmatpush2.msra.mxu0 0.0
    %2606 = vmatprep.subr.mxu0 0.0
    %2607 = vmatpush2.msra.mxu0 0.0
    %2608 = vmatprep.subr.mxu0 0.0
    %2609 = vmatpush2.msra.mxu0 0.0
    %2610 = vmatprep.subr.mxu0 0.0
    %2611 = vmatpush2.msra.mxu0 0.0
    %2612 = vmatprep.mubr.f32.mxu0 0.0
    %2613 = vmatmul.mubr.f32.gmra.mxu0 %v2543
    %v2614 = vpop.f32.mrf.mxu0
    %v2615 = vadd.f32 %v181, %v2614
    %v2616 = vpop.f32.mrf.mxu0
    %2617 = vmatprep.mubr.f32.mxu0 0.0
    %2618 = vmatmul.mubr.f32.gmra.mxu0 %v2546
    %v2619 = vpop.f32.mrf.mxu0
    %v2620 = vadd.f32 %v186, %v2619
    %v2621 = vpop.f32.mrf.mxu0
    %2622 = vdwg.mxu0
    %v2623 = vmul.f32 %v2615, 0.01
    %v2624 = vmul.f32 %v2620, 0.01
    %v2625 = vmax.f32 %v2615, %v2623
    %v2626 = vmax.f32 %v2620, %v2624
    %2627 = vmatprep.subr.mxu0 0.0
    %2628 = vmatpush1.msra.mxu0 0.0
    %2629 = vmatprep.subr.mxu0 0.0
    %2630 = vmatpush1.msra.mxu0 0.0
    %2631 = vmatprep.subr.mxu0 0.0
    %2632 = vmatpush1.msra.mxu0 0.0
    %2633 = vmatprep.subr.mxu0 0.0
    %2634 = vmatpush1.msra.mxu0 0.0
    %2635 = vmatprep.subr.mxu0 0.0
    %2636 = vmatpush1.msra.mxu0 0.0
    %2637 = vmatprep.subr.mxu0 0.0
    %2638 = vmatpush1.msra.mxu0 0.0
    %2639 = vmatprep.subr.mxu0 0.0
    %2640 = vmatpush1.msra.mxu0 0.0
    %2641 = vmatprep.subr.mxu0 0.0
    %2642 = vmatpush1.msra.mxu0 0.0
    %2643 = vmatprep.subr.mxu0 0.0
    %2644 = vmatpush1.msra.mxu0 0.0
    %2645 = vmatprep.subr.mxu0 0.0
    %2646 = vmatpush1.msra.mxu0 0.0
    %2647 = vmatprep.subr.mxu0 0.0
    %2648 = vmatpush1.msra.mxu0 0.0
    %2649 = vmatprep.subr.mxu0 0.0
    %2650 = vmatpush1.msra.mxu0 0.0
    %2651 = vmatprep.subr.mxu0 0.0
    %2652 = vmatpush1.msra.mxu0 0.0
    %2653 = vmatprep.subr.mxu0 0.0
    %2654 = vmatpush1.msra.mxu0 0.0
    %2655 = vmatprep.subr.mxu0 0.0
    %2656 = vmatpush1.msra.mxu0 %v2626
    %2657 = vmatprep.subr.mxu0 0.0
    %2658 = vmatpush1.msra.mxu0 %v2625
    %2659 = vmatprep.subr.mxu0 0.0
    %2660 = vmatpush2.msra.mxu0 0.0
    %2661 = vmatprep.subr.mxu0 0.0
    %2662 = vmatpush2.msra.mxu0 0.0
    %2663 = vmatprep.subr.mxu0 0.0
    %2664 = vmatpush2.msra.mxu0 0.0
    %2665 = vmatprep.subr.mxu0 0.0
    %2666 = vmatpush2.msra.mxu0 0.0
    %2667 = vmatprep.subr.mxu0 0.0
    %2668 = vmatpush2.msra.mxu0 0.0
    %2669 = vmatprep.subr.mxu0 0.0
    %2670 = vmatpush2.msra.mxu0 0.0
    %2671 = vmatprep.subr.mxu0 0.0
    %2672 = vmatpush2.msra.mxu0 0.0
    %2673 = vmatprep.subr.mxu0 0.0
    %2674 = vmatpush2.msra.mxu0 0.0
    %2675 = vmatprep.subr.mxu0 0.0
    %2676 = vmatpush2.msra.mxu0 0.0
    %2677 = vmatprep.subr.mxu0 0.0
    %2678 = vmatpush2.msra.mxu0 0.0
    %2679 = vmatprep.subr.mxu0 0.0
    %2680 = vmatpush2.msra.mxu0 0.0
    %2681 = vmatprep.subr.mxu0 0.0
    %2682 = vmatpush2.msra.mxu0 0.0
    %2683 = vmatprep.subr.mxu0 0.0
    %2684 = vmatpush2.msra.mxu0 0.0
    %2685 = vmatprep.subr.mxu0 0.0
    %2686 = vmatpush2.msra.mxu0 0.0
    %2687 = vmatprep.subr.mxu0 0.0
    %2688 = vmatpush2.msra.mxu0 0.0
    %2689 = vmatprep.subr.mxu0 0.0
    %2690 = vmatpush2.msra.mxu0 0.0
    %2691 = vmatprep.mubr.f32.mxu0 0.0
    %2692 = vmatmul.mubr.f32.gmra.mxu0 %v386
    %v2693 = vpop.f32.mrf.mxu0
    %v2694 = vadd.f32 0.0, %v2693
    %v2695 = vpop.f32.mrf.mxu0
    %2696 = vdwg.mxu0
    %v2698 = vsel %vm110, %v2446, 0
    %2700 = vmatprep.subr.mxu0 0.0
    %2701 = vmatpush1.msra.mxu0 0.0
    %2702 = vmatprep.subr.mxu0 0.0
    %2703 = vmatpush1.msra.mxu0 0.0
    %2704 = vmatprep.subr.mxu0 0.0
    %2705 = vmatpush1.msra.mxu0 0.0
    %2706 = vmatprep.subr.mxu0 0.0
    %2707 = vmatpush1.msra.mxu0 0.0
    %2708 = vmatprep.subr.mxu0 0.0
    %2709 = vmatpush1.msra.mxu0 0.0
    %2710 = vmatprep.subr.mxu0 0.0
    %2711 = vmatpush1.msra.mxu0 0.0
    %2712 = vmatprep.subr.mxu0 0.0
    %2713 = vmatpush1.msra.mxu0 0.0
    %2714 = vmatprep.subr.mxu0 0.0
    %2715 = vmatpush1.msra.mxu0 0.0
    %2716 = vmatprep.subr.mxu0 0.0
    %2717 = vmatpush1.msra.mxu0 0.0
    %2718 = vmatprep.subr.mxu0 0.0
    %2719 = vmatpush1.msra.mxu0 0.0
    %2720 = vmatprep.subr.mxu0 0.0
    %2721 = vmatpush1.msra.mxu0 0.0
    %2722 = vmatprep.subr.mxu0 0.0
    %2723 = vmatpush1.msra.mxu0 0.0
    %2724 = vmatprep.subr.mxu0 0.0
    %2725 = vmatpush1.msra.mxu0 0.0
    %2726 = vmatprep.subr.mxu0 0.0
    %2727 = vmatpush1.msra.mxu0 0.0
    %2728 = vmatprep.subr.mxu0 0.0
    %2729 = vmatpush1.msra.mxu0 0.0
    %2730 = vmatprep.subr.mxu0 0.0
    %2731 = vmatpush1.msra.mxu0 %v2698
    %2732 = vmatprep.subr.mxu0 0.0
    %2733 = vmatpush2.msra.mxu0 0.0
    %2734 = vmatprep.subr.mxu0 0.0
    %2735 = vmatpush2.msra.mxu0 0.0
    %2736 = vmatprep.subr.mxu0 0.0
    %2737 = vmatpush2.msra.mxu0 0.0
    %2738 = vmatprep.subr.mxu0 0.0
    %2739 = vmatpush2.msra.mxu0 0.0
    %2740 = vmatprep.subr.mxu0 0.0
    %2741 = vmatpush2.msra.mxu0 0.0
    %2742 = vmatprep.subr.mxu0 0.0
    %2743 = vmatpush2.msra.mxu0 0.0
    %2744 = vmatprep.subr.mxu0 0.0
    %2745 = vmatpush2.msra.mxu0 0.0
    %2746 = vmatprep.subr.mxu0 0.0
    %2747 = vmatpush2.msra.mxu0 0.0
    %2748 = vmatprep.subr.mxu0 0.0
    %2749 = vmatpush2.msra.mxu0 0.0
    %2750 = vmatprep.subr.mxu0 0.0
    %2751 = vmatpush2.msra.mxu0 0.0
    %2752 = vmatprep.subr.mxu0 0.0
    %2753 = vmatpush2.msra.mxu0 0.0
    %2754 = vmatprep.subr.mxu0 0.0
    %2755 = vmatpush2.msra.mxu0 0.0
    %2756 = vmatprep.subr.mxu0 0.0
    %2757 = vmatpush2.msra.mxu0 0.0
    %2758 = vmatprep.subr.mxu0 0.0
    %2759 = vmatpush2.msra.mxu0 0.0
    %2760 = vmatprep.subr.mxu0 0.0
    %2761 = vmatpush2.msra.mxu0 0.0
    %2762 = vmatprep.subr.mxu0 0.0
    %2763 = vmatpush2.msra.mxu0 0.0
    %2764 = vmatprep.mubr.f32.mxu0 0.0
    %2765 = vmatmul.mubr.f32.gmra.mxu0 %v459
    %v2766 = vpop.f32.mrf.mxu0
    %v2767 = vadd.f32 0.0, %v2766
    %v2768 = vpop.f32.mrf.mxu0
    %2769 = vdwg.mxu0
    %2771 = vrot.lane.b32.xlu0 %v2694, 32
    %v2772 = vpop.permute.xlu0 %2771
    %2775 = vrot.lane.b32.xlu0 %v2767, 64
    %v2776 = vpop.permute.xlu0 %2775
    %v2778 = vsel %vm295, %v2296, %v2772
    %v2779 = vsel %vm298, %v2778, %v2776
    %v2781 = vsel %vm544, %v2779, 0
    %2783 = vmatprep.subr.mxu0 0.0
    %2784 = vmatpush1.msra.mxu0 0.0
    %2785 = vmatprep.subr.mxu0 0.0
    %2786 = vmatpush1.msra.mxu0 0.0
    %2787 = vmatprep.subr.mxu0 0.0
    %2788 = vmatpush1.msra.mxu0 0.0
    %2789 = vmatprep.subr.mxu0 0.0
    %2790 = vmatpush1.msra.mxu0 0.0
    %2791 = vmatprep.subr.mxu0 0.0
    %2792 = vmatpush1.msra.mxu0 %v80
    %2793 = vmatprep.subr.mxu0 0.0
    %2794 = vmatpush1.msra.mxu0 %v79
    %2795 = vmatprep.subr.mxu0 0.0
    %2796 = vmatpush1.msra.mxu0 %v78
    %2797 = vmatprep.subr.mxu0 0.0
    %2798 = vmatpush1.msra.mxu0 %v77
    %2799 = vmatprep.subr.mxu0 0.0
    %2800 = vmatpush1.msra.mxu0 %v76
    %2801 = vmatprep.subr.mxu0 0.0
    %2802 = vmatpush1.msra.mxu0 %v75
    %2803 = vmatprep.subr.mxu0 0.0
    %2804 = vmatpush1.msra.mxu0 %v74
    %2805 = vmatprep.subr.mxu0 0.0
    %2806 = vmatpush1.msra.mxu0 %v73
    %2807 = vmatprep.subr.mxu0 0.0
    %2808 = vmatpush1.msra.mxu0 %v72
    %2809 = vmatprep.subr.mxu0 0.0
    %2810 = vmatpush1.msra.mxu0 %v71
    %2811 = vmatprep.subr.mxu0 0.0
    %2812 = vmatpush1.msra.mxu0 %v70
    %2813 = vmatprep.subr.mxu0 0.0
    %2814 = vmatpush1.msra.mxu0 %v69
    %2815 = vmatprep.subr.mxu0 0.0
    %2816 = vmatpush2.msra.mxu0 0.0
    %2817 = vmatprep.subr.mxu0 0.0
    %2818 = vmatpush2.msra.mxu0 0.0
    %2819 = vmatprep.subr.mxu0 0.0
    %2820 = vmatpush2.msra.mxu0 0.0
    %2821 = vmatprep.subr.mxu0 0.0
    %2822 = vmatpush2.msra.mxu0 0.0
    %2823 = vmatprep.subr.mxu0 0.0
    %2824 = vmatpush2.msra.mxu0 0.0
    %2825 = vmatprep.subr.mxu0 0.0
    %2826 = vmatpush2.msra.mxu0 0.0
    %2827 = vmatprep.subr.mxu0 0.0
    %2828 = vmatpush2.msra.mxu0 0.0
    %2829 = vmatprep.subr.mxu0 0.0
    %2830 = vmatpush2.msra.mxu0 0.0
    %2831 = vmatprep.subr.mxu0 0.0
    %2832 = vmatpush2.msra.mxu0 0.0
    %2833 = vmatprep.subr.mxu0 0.0
    %2834 = vmatpush2.msra.mxu0 0.0
    %2835 = vmatprep.subr.mxu0 0.0
    %2836 = vmatpush2.msra.mxu0 0.0
    %2837 = vmatprep.subr.mxu0 0.0
    %2838 = vmatpush2.msra.mxu0 0.0
    %2839 = vmatprep.subr.mxu0 0.0
    %2840 = vmatpush2.msra.mxu0 0.0
    %2841 = vmatprep.subr.mxu0 0.0
    %2842 = vmatpush2.msra.mxu0 0.0
    %2843 = vmatprep.subr.mxu0 0.0
    %2844 = vmatpush2.msra.mxu0 0.0
    %2845 = vmatprep.subr.mxu0 0.0
    %2846 = vmatpush2.msra.mxu0 0.0
    %2847 = vmatprep.mubr.f32.mxu0 0.0
    %2848 = vmatmul.mubr.f32.gmra.mxu0 %v2781
    %v2849 = vpop.f32.mrf.mxu0
    %v2850 = vadd.f32 %v94, %v2849
    %v2851 = vpop.f32.mrf.mxu0
    %2852 = vdwg.mxu0
    %v2853 = vmul.f32 %v2850, 0.01
    %v2854 = vmax.f32 %v2850, %v2853
    %2855 = vmatprep.subr.mxu0 0.0
    %2856 = vmatpush1.msra.mxu0 0.0
    %2857 = vmatprep.subr.mxu0 0.0
    %2858 = vmatpush1.msra.mxu0 0.0
    %2859 = vmatprep.subr.mxu0 0.0
    %2860 = vmatpush1.msra.mxu0 0.0
    %2861 = vmatprep.subr.mxu0 0.0
    %2862 = vmatpush1.msra.mxu0 0.0
    %2863 = vmatprep.subr.mxu0 0.0
    %2864 = vmatpush1.msra.mxu0 0.0
    %2865 = vmatprep.subr.mxu0 0.0
    %2866 = vmatpush1.msra.mxu0 0.0
    %2867 = vmatprep.subr.mxu0 0.0
    %2868 = vmatpush1.msra.mxu0 0.0
    %2869 = vmatprep.subr.mxu0 0.0
    %2870 = vmatpush1.msra.mxu0 0.0
    %2871 = vmatprep.subr.mxu0 0.0
    %2872 = vmatpush1.msra.mxu0 0.0
    %2873 = vmatprep.subr.mxu0 0.0
    %2874 = vmatpush1.msra.mxu0 0.0
    %2875 = vmatprep.subr.mxu0 0.0
    %2876 = vmatpush1.msra.mxu0 0.0
    %2877 = vmatprep.subr.mxu0 0.0
    %2878 = vmatpush1.msra.mxu0 0.0
    %2879 = vmatprep.subr.mxu0 0.0
    %2880 = vmatpush1.msra.mxu0 0.0
    %2881 = vmatprep.subr.mxu0 0.0
    %2882 = vmatpush1.msra.mxu0 0.0
    %2883 = vmatprep.subr.mxu0 0.0
    %2884 = vmatpush1.msra.mxu0 0.0
    %2885 = vmatprep.subr.mxu0 0.0
    %2886 = vmatpush1.msra.mxu0 %v2854
    %2887 = vmatprep.subr.mxu0 0.0
    %2888 = vmatpush2.msra.mxu0 0.0
    %2889 = vmatprep.subr.mxu0 0.0
    %2890 = vmatpush2.msra.mxu0 0.0
    %2891 = vmatprep.subr.mxu0 0.0
    %2892 = vmatpush2.msra.mxu0 0.0
    %2893 = vmatprep.subr.mxu0 0.0
    %2894 = vmatpush2.msra.mxu0 0.0
    %2895 = vmatprep.subr.mxu0 0.0
    %2896 = vmatpush2.msra.mxu0 0.0
    %2897 = vmatprep.subr.mxu0 0.0
    %2898 = vmatpush2.msra.mxu0 0.0
    %2899 = vmatprep.subr.mxu0 0.0
    %2900 = vmatpush2.msra.mxu0 0.0
    %2901 = vmatprep.subr.mxu0 0.0
    %2902 = vmatpush2.msra.mxu0 0.0
    %2903 = vmatprep.subr.mxu0 0.0
    %2904 = vmatpush2.msra.mxu0 0.0
    %2905 = vmatprep.subr.mxu0 0.0
    %2906 = vmatpush2.msra.mxu0 0.0
    %2907 = vmatprep.subr.mxu0 0.0
    %2908 = vmatpush2.msra.mxu0 0.0
    %2909 = vmatprep.subr.mxu0 0.0
    %2910 = vmatpush2.msra.mxu0 0.0
    %2911 = vmatprep.subr.mxu0 0.0
    %2912 = vmatpush2.msra.mxu0 0.0
    %2913 = vmatprep.subr.mxu0 0.0
    %2914 = vmatpush2.msra.mxu0 0.0
    %2915 = vmatprep.subr.mxu0 0.0
    %2916 = vmatpush2.msra.mxu0 0.0
    %2917 = vmatprep.subr.mxu0 0.0
    %2918 = vmatpush2.msra.mxu0 0.0
    %2919 = vmatprep.mubr.f32.mxu0 0.0
    %2920 = vmatmul.mubr.f32.gmra.mxu0 %v621
    %v2921 = vpop.f32.mrf.mxu0
    %v2922 = vadd.f32 0.0, %v2921
    %v2923 = vpop.f32.mrf.mxu0
    %2924 = vdwg.mxu0
    %2926 = vrot.lane.b32.xlu0 %v2922, 32
    %v2927 = vpop.permute.xlu0 %2926
    %v2929 = vsel %vm295, %v2446, %v2927
    %v2931 = vsel %vm298, %v2929, 0
    %2933 = vmatprep.subr.mxu0 0.0
    %2934 = vmatpush1.msra.mxu0 0.0
    %2935 = vmatprep.subr.mxu0 0.0
    %2936 = vmatpush1.msra.mxu0 0.0
    %2937 = vmatprep.subr.mxu0 0.0
    %2938 = vmatpush1.msra.mxu0 0.0
    %2939 = vmatprep.subr.mxu0 0.0
    %2940 = vmatpush1.msra.mxu0 0.0
    %2941 = vmatprep.subr.mxu0 0.0
    %2942 = vmatpush1.msra.mxu0 0.0
    %2943 = vmatprep.subr.mxu0 0.0
    %2944 = vmatpush1.msra.mxu0 0.0
    %2945 = vmatprep.subr.mxu0 0.0
    %2946 = vmatpush1.msra.mxu0 0.0
    %2947 = vmatprep.subr.mxu0 0.0
    %2948 = vmatpush1.msra.mxu0 0.0
    %2949 = vmatprep.subr.mxu0 0.0
    %2950 = vmatpush1.msra.mxu0 %v88
    %2951 = vmatprep.subr.mxu0 0.0
    %2952 = vmatpush1.msra.mxu0 %v87
    %2953 = vmatprep.subr.mxu0 0.0
    %2954 = vmatpush1.msra.mxu0 %v86
    %2955 = vmatprep.subr.mxu0 0.0
    %2956 = vmatpush1.msra.mxu0 %v85
    %2957 = vmatprep.subr.mxu0 0.0
    %2958 = vmatpush1.msra.mxu0 %v84
    %2959 = vmatprep.subr.mxu0 0.0
    %2960 = vmatpush1.msra.mxu0 %v83
    %2961 = vmatprep.subr.mxu0 0.0
    %2962 = vmatpush1.msra.mxu0 %v82
    %2963 = vmatprep.subr.mxu0 0.0
    %2964 = vmatpush1.msra.mxu0 %v81
    %2965 = vmatprep.subr.mxu0 0.0
    %2966 = vmatpush2.msra.mxu0 0.0
    %2967 = vmatprep.subr.mxu0 0.0
    %2968 = vmatpush2.msra.mxu0 0.0
    %2969 = vmatprep.subr.mxu0 0.0
    %2970 = vmatpush2.msra.mxu0 0.0
    %2971 = vmatprep.subr.mxu0 0.0
    %2972 = vmatpush2.msra.mxu0 0.0
    %2973 = vmatprep.subr.mxu0 0.0
    %2974 = vmatpush2.msra.mxu0 0.0
    %2975 = vmatprep.subr.mxu0 0.0
    %2976 = vmatpush2.msra.mxu0 0.0
    %2977 = vmatprep.subr.mxu0 0.0
    %2978 = vmatpush2.msra.mxu0 0.0
    %2979 = vmatprep.subr.mxu0 0.0
    %2980 = vmatpush2.msra.mxu0 0.0
    %2981 = vmatprep.subr.mxu0 0.0
    %2982 = vmatpush2.msra.mxu0 0.0
    %2983 = vmatprep.subr.mxu0 0.0
    %2984 = vmatpush2.msra.mxu0 0.0
    %2985 = vmatprep.subr.mxu0 0.0
    %2986 = vmatpush2.msra.mxu0 0.0
    %2987 = vmatprep.subr.mxu0 0.0
    %2988 = vmatpush2.msra.mxu0 0.0
    %2989 = vmatprep.subr.mxu0 0.0
    %2990 = vmatpush2.msra.mxu0 0.0
    %2991 = vmatprep.subr.mxu0 0.0
    %2992 = vmatpush2.msra.mxu0 0.0
    %2993 = vmatprep.subr.mxu0 0.0
    %2994 = vmatpush2.msra.mxu0 0.0
    %2995 = vmatprep.subr.mxu0 0.0
    %2996 = vmatpush2.msra.mxu0 0.0
    %2997 = vmatprep.mubr.f32.mxu0 0.0
    %2998 = vmatmul.mubr.f32.gmra.mxu0 %v2931
    %v2999 = vpop.f32.mrf.mxu0
    %v3000 = vadd.f32 %v98, %v2999
    %v3001 = vpop.f32.mrf.mxu0
    %3002 = vdwg.mxu0
    %v3003 = vmul.f32 %v3000, 0.01
    %v3004 = vmax.f32 %v3000, %v3003
    %3005 = vst.msk [vmem:[#allocation2] sm:$0xff] %vm295, %v2854
    %vm3006 = vcmask 254976
    %3007 = vst.msk [vmem:[#allocation4] sm:$0x3] %vm3006, %v3004
    // Predicated region
    $region38: #{tpu_custom_call.1} parent=1 // pred_check
      _
    $region39: #{tpu_custom_call.1} parent=1 // pred_check_branch
      %3009 = sbr.rel (0) target = $region41
    $region40: #{tpu_custom_call.1} parent=1 // pred_region
      %s3011 = ssub.s32 128, 128
      %3012 = vsyncadd [#allocation3], %s3011
      %s3014 = sshll.u32 [#allocation2], 4
      %s3015 = int_to_ptr.vmem [resolvable:$true] %s3014
      %3017 = dma.vmem_to_hbm [thread:$0]  %s3015, 128, %s9, [#allocation3]
    $region41: #{tpu_custom_call.1} parent=1 // pred_fallthru
      _
    // Predicated region
    $region42: #{tpu_custom_call.1} parent=1 // pred_check
      _
    $region43: #{tpu_custom_call.1} parent=1 // pred_check_branch
      %3019 = sbr.rel (0) target = $region45
    $region44: #{tpu_custom_call.1} parent=1 // pred_region
      %s3021 = ssub.s32 32, 32
      %3022 = vsyncadd [#allocation5], %s3021
      %s3024 = sshll.u32 [#allocation4], 4
      %s3025 = int_to_ptr.vmem [resolvable:$true] %s3024
      %3027 = dma.vmem_to_hbm [thread:$0]  %s3025, 32, %s10, [#allocation5]
    $region45: #{tpu_custom_call.1} parent=1 // pred_fallthru
      _
    // Predicated region
    $region46: #{tpu_custom_call.1} parent=1 // pred_check
      _
    $region47: #{tpu_custom_call.1} parent=1 // pred_check_branch
      %3029 = sbr.rel (0) target = $region49
    $region48: #{tpu_custom_call.1} parent=1 // pred_region
      %3030 = dma.done [#allocation3], 128
    $region49: #{tpu_custom_call.1} parent=1 // pred_fallthru
      _
    // Predicated region
    $region50: #{tpu_custom_call.1} parent=1 // pred_check
      _
    $region51: #{tpu_custom_call.1} parent=1 // pred_check_branch
      %3032 = sbr.rel (0) target = $region53
    $region52: #{tpu_custom_call.1} parent=1 // pred_region
      %3033 = dma.done [#allocation5], 32
    $region53: #{tpu_custom_call.1} parent=1 // pred_fallthru
      _
    %3034 = vsyncpa [#allocation3], 1
    %3035 = vsyncpa [#allocation5], 1

</llo_original>
